<compile_context>
chip_gen: v7x
topology: tpu7x:2x2x1
jax: 0.10.0
libtpu: 0.0.40
codegen_flags: <defaults>
</compile_context>

<pallas_src>
import numpy as np
import jax
import jax.numpy as jnp
from jax.experimental import pallas as pl
from jax.experimental.pallas import tpu as pltpu

# ----- model hyper-parameters (small synthetic sizes) -----
IN_DIM = 4        # in_dim
NODE_NUM = 16     # node_num
H1 = 10           # hidden_dim_spatial1
H2 = 20           # hidden_dim_spatial2
HL = 100          # hidden_dim_linear
HLP = 128         # HL padded to a full lane group (lane-dense h / out / slab)
BATCH = 2
K = 5             # conv kernel size
PAD = 2           # conv padding ("same")
M = NODE_NUM * BATCH   # rows of the node-major activation matrix (r = n*BATCH + b)


def _align8(v):
    return (v + 7) & ~7


# ----- packed parameter slab layout (SLAB_ROWS x 128 lanes, f32) -----
OFF_W1 = 0                                   # (K*IN_DIM, H1), row = k*IN_DIM + c
OFF_W2 = _align8(OFF_W1 + K * IN_DIM)        # (K*H1, H1)
OFF_W3 = _align8(OFF_W2 + K * H1)            # (K*H1, H2)
OFF_B1 = _align8(OFF_W3 + K * H1)            # (1, H1)
OFF_B2 = OFF_B1 + 8                          # (1, H1)
OFF_B3 = OFF_B2 + 8                          # (1, H2)
OFF_WL1 = _align8(OFF_B3 + 8)                # (N*H2, HLP), row = n*H2 + c
OFF_BL1 = _align8(OFF_WL1 + NODE_NUM * H2)   # (1, HLP)
OFF_WL2 = _align8(OFF_BL1 + 8)               # (HLP, HLP)
OFF_BL2 = _align8(OFF_WL2 + HLP)             # (1, HLP)
SLAB_ROWS = _align8(OFF_BL2 + 8)             # 624


def spatial_encoder_kernel(x_ref, p_ref, out_ref):
    """Full SpatialEncoder forward; activations never leave vector registers.

    Row layout is node-major (row r = n*BATCH + b).  Conv1d(k=5, pad=2) is five
    accumulated tap-matmuls on sublane-shifted copies of the activation; the
    zero halos come from the concat padding (node is the slow row axis, so
    out-of-range taps fall off the ends of the whole matrix -- no masks).
    part2's channel-major flatten is folded into per-node Linear1 weight blocks
    (out1 = sum_n Y_n @ W_n), so no relayout and no scratch buffers are needed.
    """

    def conv_relu(act, w_off, b_off, c_in, c_out):
        w_all = p_ref[w_off:w_off + K * c_in, :c_out]          # (K*c_in, c_out)
        bias = p_ref[b_off:b_off + 1, :c_out]                  # (1, c_out)
        halo = jnp.zeros((PAD * BATCH, c_in), jnp.float32)
        ext = jnp.concatenate([halo, act, halo], axis=0)       # (M + 2*PAD*B, c_in)
        acc = jnp.zeros((M, c_out), jnp.float32)
        for k in range(K):                                     # 5 taps, unrolled
            tap = ext[k * BATCH:k * BATCH + M, :]              # rows shifted by (k-PAD) nodes
            w_k = w_all[k * c_in:(k + 1) * c_in, :]            # (c_in, c_out) = torch w[:, :, k].T
            acc = acc + jnp.dot(tap, w_k, preferred_element_type=jnp.float32)
        return jnp.maximum(acc + bias, 0.0)                    # (M, c_out)

    y = conv_relu(x_ref[...], OFF_W1, OFF_B1, IN_DIM, H1)      # (M, H1)
    y = conv_relu(y, OFF_W2, OFF_B2, H1, H1)                   # (M, H1)
    y = conv_relu(y, OFF_W3, OFF_B3, H1, H2)                   # (M, H2)

    # part2 Linear1 (+ReLU): torch's channel-major flatten is absorbed into the
    # per-node weight blocks (slab row n*H2 + c), so Linear1 is a running sum of
    # 16 small matmuls over contiguous 2-row slices of y -- no flatten, no scratch.
    acc1 = jnp.zeros((BATCH, HLP), jnp.float32)
    for n in range(NODE_NUM):
        y_n = y[n * BATCH:(n + 1) * BATCH, :]                           # (B, H2)
        w_n = p_ref[OFF_WL1 + n * H2:OFF_WL1 + (n + 1) * H2, :]         # (H2, HLP)
        acc1 = acc1 + jnp.dot(y_n, w_n, preferred_element_type=jnp.float32)
    h = jnp.maximum(acc1 + p_ref[OFF_BL1:OFF_BL1 + 1, :], 0.0)          # (B, HLP)

    # Linear2 (lane-dense 128-wide; padded columns stay exactly zero).
    out_ref[...] = (jnp.dot(h, p_ref[OFF_WL2:OFF_WL2 + HLP, :],
                            preferred_element_type=jnp.float32)
                    + p_ref[OFF_BL2:OFF_BL2 + 1, :])


def spatial_encoder_forward(x, slab):
    B, N, Cin = x.shape
    assert (B, N, Cin) == (BATCH, NODE_NUM, IN_DIM)
    # Node-major rows: r = n*B + b (makes conv halos whole-array, flatten per-node).
    xr = jnp.transpose(x, (1, 0, 2)).reshape(N * B, Cin)

    out_full = pl.pallas_call(
        spatial_encoder_kernel,
        out_shape=jax.ShapeDtypeStruct((B, HLP), jnp.float32),
        grid=(1,),
        in_specs=[pl.BlockSpec(xr.shape, lambda i: (0, 0)),
                  pl.BlockSpec(slab.shape, lambda i: (0, 0))],
        out_specs=pl.BlockSpec((B, HLP), lambda i: (0, 0)),
        compiler_params=pltpu.CompilerParams(dimension_semantics=("arbitrary",)),
    )(xr, slab)
    return out_full[:, :HL]            # drop the zero lane padding (100..127)


# ----- deterministic parameter init (PyTorch-style layouts) -----
def init_torch_params(key):
    ks = jax.random.split(key, 10)

    def u(k, shape, fan_in):
        bound = 1.0 / np.sqrt(fan_in)
        return jax.random.uniform(k, shape, jnp.float32, -bound, bound)

    w1 = u(ks[0], (H1, IN_DIM, K), IN_DIM * K)
    b1 = u(ks[1], (H1,), IN_DIM * K)
    w2 = u(ks[2], (H1, H1, K), H1 * K)
    b2 = u(ks[3], (H1,), H1 * K)
    w3 = u(ks[4], (H2, H1, K), H1 * K)
    b3 = u(ks[5], (H2,), H1 * K)
    wl1 = u(ks[6], (HL, NODE_NUM * H2), NODE_NUM * H2)
    bl1 = u(ks[7], (HL,), NODE_NUM * H2)
    wl2 = u(ks[8], (HL, HL), HL)
    bl2 = u(ks[9], (HL,), HL)
    return (w1, b1, w2, b2, w3, b3, wl1, bl1, wl2, bl2)


def build_param_slab(p):
    """Pack all 10 torch-layout parameters into one (SLAB_ROWS, 128) f32 slab."""
    w1, b1, w2, b2, w3, b3, wl1, bl1, wl2, bl2 = p
    slab = jnp.zeros((SLAB_ROWS, HLP), jnp.float32)

    def put(s, off, block):
        r, c = block.shape
        return s.at[off:off + r, :c].set(block)

    # Conv weights: row k*C_in + c, column o  (== torch w[o, c, k]).
    w1k = jnp.transpose(w1, (2, 1, 0)).reshape(K * IN_DIM, H1)
    w2k = jnp.transpose(w2, (2, 1, 0)).reshape(K * H1, H1)
    w3k = jnp.transpose(w3, (2, 1, 0)).reshape(K * H1, H2)
    # Linear1: torch flat index c*N + n  ->  per-node block W_n[c, j] at row n*H2 + c.
    wl1k = jnp.transpose(wl1.reshape(HL, H2, NODE_NUM), (2, 1, 0)).reshape(NODE_NUM * H2, HL)

    slab = put(slab, OFF_W1, w1k)
    slab = put(slab, OFF_W2, w2k)
    slab = put(slab, OFF_W3, w3k)
    slab = put(slab, OFF_B1, b1.reshape(1, H1))
    slab = put(slab, OFF_B2, b2.reshape(1, H1))
    slab = put(slab, OFF_B3, b3.reshape(1, H2))
    slab = put(slab, OFF_WL1, wl1k)
    slab = put(slab, OFF_BL1, bl1.reshape(1, HL))
    slab = put(slab, OFF_WL2, wl2.T)
    slab = put(slab, OFF_BL2, bl2.reshape(1, HL))
    return slab


# ----- pure numpy reference (mirrors the PyTorch forward exactly) -----
def reference_forward(x, p):
    w1, b1, w2, b2, w3, b3, wl1, bl1, wl2, bl2 = [np.asarray(t, np.float32) for t in p]
    xt = np.asarray(x, np.float32).transpose(0, 2, 1)   # x.transpose(1, 2) -> (B, C, N)

    def conv1d(inp, w, b):
        Bc, C, Nn = inp.shape
        padded = np.pad(inp, ((0, 0), (0, 0), (PAD, PAD)))
        out = np.zeros((Bc, w.shape[0], Nn), np.float32)
        for n in range(Nn):
            out[:, :, n] = np.einsum('bck,ock->bo', padded[:, :, n:n + K], w) + b
        return out

    h = np.maximum(conv1d(xt, w1, b1), 0.0)
    h = np.maximum(conv1d(h, w2, b2), 0.0)
    h = np.maximum(conv1d(h, w3, b3), 0.0)
    flat = h.reshape(h.shape[0], -1)                     # .view(-1, node_num*H2), channel-major
    l1 = np.maximum(flat @ wl1.T + bl1, 0.0)
    return l1 @ wl2.T + bl2


if __name__ == "__main__":
    key = jax.random.PRNGKey(0)
    kx, kp = jax.random.split(key)
    x = jax.random.normal(kx, (BATCH, NODE_NUM, IN_DIM), jnp.float32)

    torch_params = init_torch_params(kp)
    slab = build_param_slab(torch_params)

    out = spatial_encoder_forward(x, slab)
    out = jax.block_until_ready(out)

    ref = reference_forward(x, torch_params)
    assert out.shape == (BATCH, HL)
    np.testing.assert_allclose(np.asarray(out), ref, rtol=1e-2, atol=1e-2)
    print("KERNEL_OK")
</pallas_src>

<mosaic_0001>
module attributes {stable_mosaic.version = 11 : i64} {
  func.func @spatial_encoder_kernel(%arg0: i32, %arg1: memref<32x4xf32, #tpu.memory_space<vmem>>, %arg2: memref<624x128xf32, #tpu.memory_space<vmem>>, %arg3: memref<2x128xf32, #tpu.memory_space<vmem>>) attributes {dimension_semantics = [#tpu.dimension_semantics<arbitrary>], iteration_bounds = array<i64: 1>, scalar_prefetch = 0 : i64, scratch_operands = 0 : i64, tpu.core_type = #tpu.core_type<tc>, window_params = [{pipeline_mode = #tpu.pipeline_mode<synchronous>, transform_indices = @transform_0, window_bounds = array<i64: 32, 4>}, {pipeline_mode = #tpu.pipeline_mode<synchronous>, transform_indices = @transform_1, window_bounds = array<i64: 624, 128>}, {pipeline_mode = #tpu.pipeline_mode<synchronous>, transform_indices = @transform_2, window_bounds = array<i64: 2, 128>}]} {
    %c0 = arith.constant 0 : index
    %c0_0 = arith.constant 0 : index
    %0 = vector.load %arg1[%c0, %c0_0] : memref<32x4xf32, #tpu.memory_space<vmem>>, vector<32x4xf32>
    %c0_1 = arith.constant 0 : index
    %c0_2 = arith.constant 0 : index
    %1 = vector.load %arg2[%c0_1, %c0_2] : memref<624x128xf32, #tpu.memory_space<vmem>>, vector<20x10xf32>
    %c136 = arith.constant 136 : index
    %c0_3 = arith.constant 0 : index
    %2 = vector.load %arg2[%c136, %c0_3] : memref<624x128xf32, #tpu.memory_space<vmem>>, vector<1x10xf32>
    %cst = arith.constant 0.000000e+00 : f32
    %3 = vector.broadcast %cst : f32 to vector<4x4xf32>
    %4 = tpu.concatenate %3, %0, %3 in 0 : vector<4x4xf32>, vector<32x4xf32>, vector<4x4xf32> -> vector<40x4xf32>
    %cst_4 = arith.constant 0.000000e+00 : f32
    %5 = vector.broadcast %cst_4 : f32 to vector<32x10xf32>
    %6 = vector.extract_strided_slice %4 {offsets = [0, 0], sizes = [32, 4], strides = [1, 1]} : vector<40x4xf32> to vector<32x4xf32>
    %7 = vector.extract_strided_slice %1 {offsets = [0, 0], sizes = [4, 10], strides = [1, 1]} : vector<20x10xf32> to vector<4x10xf32>
    %cst_5 = arith.constant dense<0.000000e+00> : vector<32x10xf32>
    %8 = tpu.matmul %6, %7, %cst_5 {dimension_numbers = #tpu.dot_dimension_numbers<[1], [0], [0], [1], [0, 0, 1, 1], [], []>} : vector<32x4xf32>, vector<4x10xf32>, vector<32x10xf32> -> vector<32x10xf32>
    %9 = arith.addf %5, %8 : vector<32x10xf32>
    %10 = vector.extract_strided_slice %4 {offsets = [2, 0], sizes = [32, 4], strides = [1, 1]} : vector<40x4xf32> to vector<32x4xf32>
    %11 = vector.extract_strided_slice %1 {offsets = [4, 0], sizes = [4, 10], strides = [1, 1]} : vector<20x10xf32> to vector<4x10xf32>
    %cst_6 = arith.constant dense<0.000000e+00> : vector<32x10xf32>
    %12 = tpu.matmul %10, %11, %cst_6 {dimension_numbers = #tpu.dot_dimension_numbers<[1], [0], [0], [1], [0, 0, 1, 1], [], []>} : vector<32x4xf32>, vector<4x10xf32>, vector<32x10xf32> -> vector<32x10xf32>
    %13 = arith.addf %9, %12 : vector<32x10xf32>
    %14 = vector.extract_strided_slice %4 {offsets = [4, 0], sizes = [32, 4], strides = [1, 1]} : vector<40x4xf32> to vector<32x4xf32>
    %15 = vector.extract_strided_slice %1 {offsets = [8, 0], sizes = [4, 10], strides = [1, 1]} : vector<20x10xf32> to vector<4x10xf32>
    %cst_7 = arith.constant dense<0.000000e+00> : vector<32x10xf32>
    %16 = tpu.matmul %14, %15, %cst_7 {dimension_numbers = #tpu.dot_dimension_numbers<[1], [0], [0], [1], [0, 0, 1, 1], [], []>} : vector<32x4xf32>, vector<4x10xf32>, vector<32x10xf32> -> vector<32x10xf32>
    %17 = arith.addf %13, %16 : vector<32x10xf32>
    %18 = vector.extract_strided_slice %4 {offsets = [6, 0], sizes = [32, 4], strides = [1, 1]} : vector<40x4xf32> to vector<32x4xf32>
    %19 = vector.extract_strided_slice %1 {offsets = [12, 0], sizes = [4, 10], strides = [1, 1]} : vector<20x10xf32> to vector<4x10xf32>
    %cst_8 = arith.constant dense<0.000000e+00> : vector<32x10xf32>
    %20 = tpu.matmul %18, %19, %cst_8 {dimension_numbers = #tpu.dot_dimension_numbers<[1], [0], [0], [1], [0, 0, 1, 1], [], []>} : vector<32x4xf32>, vector<4x10xf32>, vector<32x10xf32> -> vector<32x10xf32>
    %21 = arith.addf %17, %20 : vector<32x10xf32>
    %22 = vector.extract_strided_slice %4 {offsets = [8, 0], sizes = [32, 4], strides = [1, 1]} : vector<40x4xf32> to vector<32x4xf32>
    %23 = vector.extract_strided_slice %1 {offsets = [16, 0], sizes = [4, 10], strides = [1, 1]} : vector<20x10xf32> to vector<4x10xf32>
    %cst_9 = arith.constant dense<0.000000e+00> : vector<32x10xf32>
    %24 = tpu.matmul %22, %23, %cst_9 {dimension_numbers = #tpu.dot_dimension_numbers<[1], [0], [0], [1], [0, 0, 1, 1], [], []>} : vector<32x4xf32>, vector<4x10xf32>, vector<32x10xf32> -> vector<32x10xf32>
    %25 = arith.addf %21, %24 : vector<32x10xf32>
    %26 = vector.broadcast %2 : vector<1x10xf32> to vector<32x10xf32>
    %27 = arith.addf %25, %26 : vector<32x10xf32>
    %cst_10 = arith.constant 0.000000e+00 : f32
    %28 = vector.broadcast %cst_10 : f32 to vector<32x10xf32>
    %29 = arith.maximumf %27, %28 : vector<32x10xf32>
    %c24 = arith.constant 24 : index
    %c0_11 = arith.constant 0 : index
    %30 = vector.load %arg2[%c24, %c0_11] : memref<624x128xf32, #tpu.memory_space<vmem>>, vector<50x10xf32>
    %c144 = arith.constant 144 : index
    %c0_12 = arith.constant 0 : index
    %31 = vector.load %arg2[%c144, %c0_12] : memref<624x128xf32, #tpu.memory_space<vmem>>, vector<1x10xf32>
    %cst_13 = arith.constant 0.000000e+00 : f32
    %32 = vector.broadcast %cst_13 : f32 to vector<4x10xf32>
    %33 = tpu.concatenate %32, %29, %32 in 0 : vector<4x10xf32>, vector<32x10xf32>, vector<4x10xf32> -> vector<40x10xf32>
    %cst_14 = arith.constant 0.000000e+00 : f32
    %34 = vector.broadcast %cst_14 : f32 to vector<32x10xf32>
    %35 = vector.extract_strided_slice %33 {offsets = [0, 0], sizes = [32, 10], strides = [1, 1]} : vector<40x10xf32> to vector<32x10xf32>
    %36 = vector.extract_strided_slice %30 {offsets = [0, 0], sizes = [10, 10], strides = [1, 1]} : vector<50x10xf32> to vector<10x10xf32>
    %cst_15 = arith.constant dense<0.000000e+00> : vector<32x10xf32>
    %37 = tpu.matmul %35, %36, %cst_15 {dimension_numbers = #tpu.dot_dimension_numbers<[1], [0], [0], [1], [0, 0, 1, 1], [], []>} : vector<32x10xf32>, vector<10x10xf32>, vector<32x10xf32> -> vector<32x10xf32>
    %38 = arith.addf %34, %37 : vector<32x10xf32>
    %39 = vector.extract_strided_slice %33 {offsets = [2, 0], sizes = [32, 10], strides = [1, 1]} : vector<40x10xf32> to vector<32x10xf32>
    %40 = vector.extract_strided_slice %30 {offsets = [10, 0], sizes = [10, 10], strides = [1, 1]} : vector<50x10xf32> to vector<10x10xf32>
    %cst_16 = arith.constant dense<0.000000e+00> : vector<32x10xf32>
    %41 = tpu.matmul %39, %40, %cst_16 {dimension_numbers = #tpu.dot_dimension_numbers<[1], [0], [0], [1], [0, 0, 1, 1], [], []>} : vector<32x10xf32>, vector<10x10xf32>, vector<32x10xf32> -> vector<32x10xf32>
    %42 = arith.addf %38, %41 : vector<32x10xf32>
    %43 = vector.extract_strided_slice %33 {offsets = [4, 0], sizes = [32, 10], strides = [1, 1]} : vector<40x10xf32> to vector<32x10xf32>
    %44 = vector.extract_strided_slice %30 {offsets = [20, 0], sizes = [10, 10], strides = [1, 1]} : vector<50x10xf32> to vector<10x10xf32>
    %cst_17 = arith.constant dense<0.000000e+00> : vector<32x10xf32>
    %45 = tpu.matmul %43, %44, %cst_17 {dimension_numbers = #tpu.dot_dimension_numbers<[1], [0], [0], [1], [0, 0, 1, 1], [], []>} : vector<32x10xf32>, vector<10x10xf32>, vector<32x10xf32> -> vector<32x10xf32>
    %46 = arith.addf %42, %45 : vector<32x10xf32>
    %47 = vector.extract_strided_slice %33 {offsets = [6, 0], sizes = [32, 10], strides = [1, 1]} : vector<40x10xf32> to vector<32x10xf32>
    %48 = vector.extract_strided_slice %30 {offsets = [30, 0], sizes = [10, 10], strides = [1, 1]} : vector<50x10xf32> to vector<10x10xf32>
    %cst_18 = arith.constant dense<0.000000e+00> : vector<32x10xf32>
    %49 = tpu.matmul %47, %48, %cst_18 {dimension_numbers = #tpu.dot_dimension_numbers<[1], [0], [0], [1], [0, 0, 1, 1], [], []>} : vector<32x10xf32>, vector<10x10xf32>, vector<32x10xf32> -> vector<32x10xf32>
    %50 = arith.addf %46, %49 : vector<32x10xf32>
    %51 = vector.extract_strided_slice %33 {offsets = [8, 0], sizes = [32, 10], strides = [1, 1]} : vector<40x10xf32> to vector<32x10xf32>
    %52 = vector.extract_strided_slice %30 {offsets = [40, 0], sizes = [10, 10], strides = [1, 1]} : vector<50x10xf32> to vector<10x10xf32>
    %cst_19 = arith.constant dense<0.000000e+00> : vector<32x10xf32>
    %53 = tpu.matmul %51, %52, %cst_19 {dimension_numbers = #tpu.dot_dimension_numbers<[1], [0], [0], [1], [0, 0, 1, 1], [], []>} : vector<32x10xf32>, vector<10x10xf32>, vector<32x10xf32> -> vector<32x10xf32>
    %54 = arith.addf %50, %53 : vector<32x10xf32>
    %55 = vector.broadcast %31 : vector<1x10xf32> to vector<32x10xf32>
    %56 = arith.addf %54, %55 : vector<32x10xf32>
    %cst_20 = arith.constant 0.000000e+00 : f32
    %57 = vector.broadcast %cst_20 : f32 to vector<32x10xf32>
    %58 = arith.maximumf %56, %57 : vector<32x10xf32>
    %c80 = arith.constant 80 : index
    %c0_21 = arith.constant 0 : index
    %59 = vector.load %arg2[%c80, %c0_21] : memref<624x128xf32, #tpu.memory_space<vmem>>, vector<50x20xf32>
    %c152 = arith.constant 152 : index
    %c0_22 = arith.constant 0 : index
    %60 = vector.load %arg2[%c152, %c0_22] : memref<624x128xf32, #tpu.memory_space<vmem>>, vector<1x20xf32>
    %cst_23 = arith.constant 0.000000e+00 : f32
    %61 = vector.broadcast %cst_23 : f32 to vector<4x10xf32>
    %62 = tpu.concatenate %61, %58, %61 in 0 : vector<4x10xf32>, vector<32x10xf32>, vector<4x10xf32> -> vector<40x10xf32>
    %cst_24 = arith.constant 0.000000e+00 : f32
    %63 = vector.broadcast %cst_24 : f32 to vector<32x20xf32>
    %64 = vector.extract_strided_slice %62 {offsets = [0, 0], sizes = [32, 10], strides = [1, 1]} : vector<40x10xf32> to vector<32x10xf32>
    %65 = vector.extract_strided_slice %59 {offsets = [0, 0], sizes = [10, 20], strides = [1, 1]} : vector<50x20xf32> to vector<10x20xf32>
    %cst_25 = arith.constant dense<0.000000e+00> : vector<32x20xf32>
    %66 = tpu.matmul %64, %65, %cst_25 {dimension_numbers = #tpu.dot_dimension_numbers<[1], [0], [0], [1], [0, 0, 1, 1], [], []>} : vector<32x10xf32>, vector<10x20xf32>, vector<32x20xf32> -> vector<32x20xf32>
    %67 = arith.addf %63, %66 : vector<32x20xf32>
    %68 = vector.extract_strided_slice %62 {offsets = [2, 0], sizes = [32, 10], strides = [1, 1]} : vector<40x10xf32> to vector<32x10xf32>
    %69 = vector.extract_strided_slice %59 {offsets = [10, 0], sizes = [10, 20], strides = [1, 1]} : vector<50x20xf32> to vector<10x20xf32>
    %cst_26 = arith.constant dense<0.000000e+00> : vector<32x20xf32>
    %70 = tpu.matmul %68, %69, %cst_26 {dimension_numbers = #tpu.dot_dimension_numbers<[1], [0], [0], [1], [0, 0, 1, 1], [], []>} : vector<32x10xf32>, vector<10x20xf32>, vector<32x20xf32> -> vector<32x20xf32>
    %71 = arith.addf %67, %70 : vector<32x20xf32>
    %72 = vector.extract_strided_slice %62 {offsets = [4, 0], sizes = [32, 10], strides = [1, 1]} : vector<40x10xf32> to vector<32x10xf32>
    %73 = vector.extract_strided_slice %59 {offsets = [20, 0], sizes = [10, 20], strides = [1, 1]} : vector<50x20xf32> to vector<10x20xf32>
    %cst_27 = arith.constant dense<0.000000e+00> : vector<32x20xf32>
    %74 = tpu.matmul %72, %73, %cst_27 {dimension_numbers = #tpu.dot_dimension_numbers<[1], [0], [0], [1], [0, 0, 1, 1], [], []>} : vector<32x10xf32>, vector<10x20xf32>, vector<32x20xf32> -> vector<32x20xf32>
    %75 = arith.addf %71, %74 : vector<32x20xf32>
    %76 = vector.extract_strided_slice %62 {offsets = [6, 0], sizes = [32, 10], strides = [1, 1]} : vector<40x10xf32> to vector<32x10xf32>
    %77 = vector.extract_strided_slice %59 {offsets = [30, 0], sizes = [10, 20], strides = [1, 1]} : vector<50x20xf32> to vector<10x20xf32>
    %cst_28 = arith.constant dense<0.000000e+00> : vector<32x20xf32>
    %78 = tpu.matmul %76, %77, %cst_28 {dimension_numbers = #tpu.dot_dimension_numbers<[1], [0], [0], [1], [0, 0, 1, 1], [], []>} : vector<32x10xf32>, vector<10x20xf32>, vector<32x20xf32> -> vector<32x20xf32>
    %79 = arith.addf %75, %78 : vector<32x20xf32>
    %80 = vector.extract_strided_slice %62 {offsets = [8, 0], sizes = [32, 10], strides = [1, 1]} : vector<40x10xf32> to vector<32x10xf32>
    %81 = vector.extract_strided_slice %59 {offsets = [40, 0], sizes = [10, 20], strides = [1, 1]} : vector<50x20xf32> to vector<10x20xf32>
    %cst_29 = arith.constant dense<0.000000e+00> : vector<32x20xf32>
    %82 = tpu.matmul %80, %81, %cst_29 {dimension_numbers = #tpu.dot_dimension_numbers<[1], [0], [0], [1], [0, 0, 1, 1], [], []>} : vector<32x10xf32>, vector<10x20xf32>, vector<32x20xf32> -> vector<32x20xf32>
    %83 = arith.addf %79, %82 : vector<32x20xf32>
    %84 = vector.broadcast %60 : vector<1x20xf32> to vector<32x20xf32>
    %85 = arith.addf %83, %84 : vector<32x20xf32>
    %cst_30 = arith.constant 0.000000e+00 : f32
    %86 = vector.broadcast %cst_30 : f32 to vector<32x20xf32>
    %87 = arith.maximumf %85, %86 : vector<32x20xf32>
    %cst_31 = arith.constant 0.000000e+00 : f32
    %88 = vector.broadcast %cst_31 : f32 to vector<2x128xf32>
    %89 = vector.extract_strided_slice %87 {offsets = [0, 0], sizes = [2, 20], strides = [1, 1]} : vector<32x20xf32> to vector<2x20xf32>
    %c160 = arith.constant 160 : index
    %c0_32 = arith.constant 0 : index
    %90 = vector.load %arg2[%c160, %c0_32] : memref<624x128xf32, #tpu.memory_space<vmem>>, vector<20x128xf32>
    %cst_33 = arith.constant dense<0.000000e+00> : vector<2x128xf32>
    %91 = tpu.matmul %89, %90, %cst_33 {dimension_numbers = #tpu.dot_dimension_numbers<[1], [0], [0], [1], [0, 0, 1, 1], [], []>} : vector<2x20xf32>, vector<20x128xf32>, vector<2x128xf32> -> vector<2x128xf32>
    %92 = arith.addf %88, %91 : vector<2x128xf32>
    %93 = vector.extract_strided_slice %87 {offsets = [2, 0], sizes = [2, 20], strides = [1, 1]} : vector<32x20xf32> to vector<2x20xf32>
    %c180 = arith.constant 180 : index
    %c0_34 = arith.constant 0 : index
    %94 = vector.load %arg2[%c180, %c0_34] : memref<624x128xf32, #tpu.memory_space<vmem>>, vector<20x128xf32>
    %cst_35 = arith.constant dense<0.000000e+00> : vector<2x128xf32>
    %95 = tpu.matmul %93, %94, %cst_35 {dimension_numbers = #tpu.dot_dimension_numbers<[1], [0], [0], [1], [0, 0, 1, 1], [], []>} : vector<2x20xf32>, vector<20x128xf32>, vector<2x128xf32> -> vector<2x128xf32>
    %96 = arith.addf %92, %95 : vector<2x128xf32>
    %97 = vector.extract_strided_slice %87 {offsets = [4, 0], sizes = [2, 20], strides = [1, 1]} : vector<32x20xf32> to vector<2x20xf32>
    %c200 = arith.constant 200 : index
    %c0_36 = arith.constant 0 : index
    %98 = vector.load %arg2[%c200, %c0_36] : memref<624x128xf32, #tpu.memory_space<vmem>>, vector<20x128xf32>
    %cst_37 = arith.constant dense<0.000000e+00> : vector<2x128xf32>
    %99 = tpu.matmul %97, %98, %cst_37 {dimension_numbers = #tpu.dot_dimension_numbers<[1], [0], [0], [1], [0, 0, 1, 1], [], []>} : vector<2x20xf32>, vector<20x128xf32>, vector<2x128xf32> -> vector<2x128xf32>
    %100 = arith.addf %96, %99 : vector<2x128xf32>
    %101 = vector.extract_strided_slice %87 {offsets = [6, 0], sizes = [2, 20], strides = [1, 1]} : vector<32x20xf32> to vector<2x20xf32>
    %c220 = arith.constant 220 : index
    %c0_38 = arith.constant 0 : index
    %102 = vector.load %arg2[%c220, %c0_38] : memref<624x128xf32, #tpu.memory_space<vmem>>, vector<20x128xf32>
    %cst_39 = arith.constant dense<0.000000e+00> : vector<2x128xf32>
    %103 = tpu.matmul %101, %102, %cst_39 {dimension_numbers = #tpu.dot_dimension_numbers<[1], [0], [0], [1], [0, 0, 1, 1], [], []>} : vector<2x20xf32>, vector<20x128xf32>, vector<2x128xf32> -> vector<2x128xf32>
    %104 = arith.addf %100, %103 : vector<2x128xf32>
    %105 = vector.extract_strided_slice %87 {offsets = [8, 0], sizes = [2, 20], strides = [1, 1]} : vector<32x20xf32> to vector<2x20xf32>
    %c240 = arith.constant 240 : index
    %c0_40 = arith.constant 0 : index
    %106 = vector.load %arg2[%c240, %c0_40] : memref<624x128xf32, #tpu.memory_space<vmem>>, vector<20x128xf32>
    %cst_41 = arith.constant dense<0.000000e+00> : vector<2x128xf32>
    %107 = tpu.matmul %105, %106, %cst_41 {dimension_numbers = #tpu.dot_dimension_numbers<[1], [0], [0], [1], [0, 0, 1, 1], [], []>} : vector<2x20xf32>, vector<20x128xf32>, vector<2x128xf32> -> vector<2x128xf32>
    %108 = arith.addf %104, %107 : vector<2x128xf32>
    %109 = vector.extract_strided_slice %87 {offsets = [10, 0], sizes = [2, 20], strides = [1, 1]} : vector<32x20xf32> to vector<2x20xf32>
    %c260 = arith.constant 260 : index
    %c0_42 = arith.constant 0 : index
    %110 = vector.load %arg2[%c260, %c0_42] : memref<624x128xf32, #tpu.memory_space<vmem>>, vector<20x128xf32>
    %cst_43 = arith.constant dense<0.000000e+00> : vector<2x128xf32>
    %111 = tpu.matmul %109, %110, %cst_43 {dimension_numbers = #tpu.dot_dimension_numbers<[1], [0], [0], [1], [0, 0, 1, 1], [], []>} : vector<2x20xf32>, vector<20x128xf32>, vector<2x128xf32> -> vector<2x128xf32>
    %112 = arith.addf %108, %111 : vector<2x128xf32>
    %113 = vector.extract_strided_slice %87 {offsets = [12, 0], sizes = [2, 20], strides = [1, 1]} : vector<32x20xf32> to vector<2x20xf32>
    %c280 = arith.constant 280 : index
    %c0_44 = arith.constant 0 : index
    %114 = vector.load %arg2[%c280, %c0_44] : memref<624x128xf32, #tpu.memory_space<vmem>>, vector<20x128xf32>
    %cst_45 = arith.constant dense<0.000000e+00> : vector<2x128xf32>
    %115 = tpu.matmul %113, %114, %cst_45 {dimension_numbers = #tpu.dot_dimension_numbers<[1], [0], [0], [1], [0, 0, 1, 1], [], []>} : vector<2x20xf32>, vector<20x128xf32>, vector<2x128xf32> -> vector<2x128xf32>
    %116 = arith.addf %112, %115 : vector<2x128xf32>
    %117 = vector.extract_strided_slice %87 {offsets = [14, 0], sizes = [2, 20], strides = [1, 1]} : vector<32x20xf32> to vector<2x20xf32>
    %c300 = arith.constant 300 : index
    %c0_46 = arith.constant 0 : index
    %118 = vector.load %arg2[%c300, %c0_46] : memref<624x128xf32, #tpu.memory_space<vmem>>, vector<20x128xf32>
    %cst_47 = arith.constant dense<0.000000e+00> : vector<2x128xf32>
    %119 = tpu.matmul %117, %118, %cst_47 {dimension_numbers = #tpu.dot_dimension_numbers<[1], [0], [0], [1], [0, 0, 1, 1], [], []>} : vector<2x20xf32>, vector<20x128xf32>, vector<2x128xf32> -> vector<2x128xf32>
    %120 = arith.addf %116, %119 : vector<2x128xf32>
    %121 = vector.extract_strided_slice %87 {offsets = [16, 0], sizes = [2, 20], strides = [1, 1]} : vector<32x20xf32> to vector<2x20xf32>
    %c320 = arith.constant 320 : index
    %c0_48 = arith.constant 0 : index
    %122 = vector.load %arg2[%c320, %c0_48] : memref<624x128xf32, #tpu.memory_space<vmem>>, vector<20x128xf32>
    %cst_49 = arith.constant dense<0.000000e+00> : vector<2x128xf32>
    %123 = tpu.matmul %121, %122, %cst_49 {dimension_numbers = #tpu.dot_dimension_numbers<[1], [0], [0], [1], [0, 0, 1, 1], [], []>} : vector<2x20xf32>, vector<20x128xf32>, vector<2x128xf32> -> vector<2x128xf32>
    %124 = arith.addf %120, %123 : vector<2x128xf32>
    %125 = vector.extract_strided_slice %87 {offsets = [18, 0], sizes = [2, 20], strides = [1, 1]} : vector<32x20xf32> to vector<2x20xf32>
    %c340 = arith.constant 340 : index
    %c0_50 = arith.constant 0 : index
    %126 = vector.load %arg2[%c340, %c0_50] : memref<624x128xf32, #tpu.memory_space<vmem>>, vector<20x128xf32>
    %cst_51 = arith.constant dense<0.000000e+00> : vector<2x128xf32>
    %127 = tpu.matmul %125, %126, %cst_51 {dimension_numbers = #tpu.dot_dimension_numbers<[1], [0], [0], [1], [0, 0, 1, 1], [], []>} : vector<2x20xf32>, vector<20x128xf32>, vector<2x128xf32> -> vector<2x128xf32>
    %128 = arith.addf %124, %127 : vector<2x128xf32>
    %129 = vector.extract_strided_slice %87 {offsets = [20, 0], sizes = [2, 20], strides = [1, 1]} : vector<32x20xf32> to vector<2x20xf32>
    %c360 = arith.constant 360 : index
    %c0_52 = arith.constant 0 : index
    %130 = vector.load %arg2[%c360, %c0_52] : memref<624x128xf32, #tpu.memory_space<vmem>>, vector<20x128xf32>
    %cst_53 = arith.constant dense<0.000000e+00> : vector<2x128xf32>
    %131 = tpu.matmul %129, %130, %cst_53 {dimension_numbers = #tpu.dot_dimension_numbers<[1], [0], [0], [1], [0, 0, 1, 1], [], []>} : vector<2x20xf32>, vector<20x128xf32>, vector<2x128xf32> -> vector<2x128xf32>
    %132 = arith.addf %128, %131 : vector<2x128xf32>
    %133 = vector.extract_strided_slice %87 {offsets = [22, 0], sizes = [2, 20], strides = [1, 1]} : vector<32x20xf32> to vector<2x20xf32>
    %c380 = arith.constant 380 : index
    %c0_54 = arith.constant 0 : index
    %134 = vector.load %arg2[%c380, %c0_54] : memref<624x128xf32, #tpu.memory_space<vmem>>, vector<20x128xf32>
    %cst_55 = arith.constant dense<0.000000e+00> : vector<2x128xf32>
    %135 = tpu.matmul %133, %134, %cst_55 {dimension_numbers = #tpu.dot_dimension_numbers<[1], [0], [0], [1], [0, 0, 1, 1], [], []>} : vector<2x20xf32>, vector<20x128xf32>, vector<2x128xf32> -> vector<2x128xf32>
    %136 = arith.addf %132, %135 : vector<2x128xf32>
    %137 = vector.extract_strided_slice %87 {offsets = [24, 0], sizes = [2, 20], strides = [1, 1]} : vector<32x20xf32> to vector<2x20xf32>
    %c400 = arith.constant 400 : index
    %c0_56 = arith.constant 0 : index
    %138 = vector.load %arg2[%c400, %c0_56] : memref<624x128xf32, #tpu.memory_space<vmem>>, vector<20x128xf32>
    %cst_57 = arith.constant dense<0.000000e+00> : vector<2x128xf32>
    %139 = tpu.matmul %137, %138, %cst_57 {dimension_numbers = #tpu.dot_dimension_numbers<[1], [0], [0], [1], [0, 0, 1, 1], [], []>} : vector<2x20xf32>, vector<20x128xf32>, vector<2x128xf32> -> vector<2x128xf32>
    %140 = arith.addf %136, %139 : vector<2x128xf32>
    %141 = vector.extract_strided_slice %87 {offsets = [26, 0], sizes = [2, 20], strides = [1, 1]} : vector<32x20xf32> to vector<2x20xf32>
    %c420 = arith.constant 420 : index
    %c0_58 = arith.constant 0 : index
    %142 = vector.load %arg2[%c420, %c0_58] : memref<624x128xf32, #tpu.memory_space<vmem>>, vector<20x128xf32>
    %cst_59 = arith.constant dense<0.000000e+00> : vector<2x128xf32>
    %143 = tpu.matmul %141, %142, %cst_59 {dimension_numbers = #tpu.dot_dimension_numbers<[1], [0], [0], [1], [0, 0, 1, 1], [], []>} : vector<2x20xf32>, vector<20x128xf32>, vector<2x128xf32> -> vector<2x128xf32>
    %144 = arith.addf %140, %143 : vector<2x128xf32>
    %145 = vector.extract_strided_slice %87 {offsets = [28, 0], sizes = [2, 20], strides = [1, 1]} : vector<32x20xf32> to vector<2x20xf32>
    %c440 = arith.constant 440 : index
    %c0_60 = arith.constant 0 : index
    %146 = vector.load %arg2[%c440, %c0_60] : memref<624x128xf32, #tpu.memory_space<vmem>>, vector<20x128xf32>
    %cst_61 = arith.constant dense<0.000000e+00> : vector<2x128xf32>
    %147 = tpu.matmul %145, %146, %cst_61 {dimension_numbers = #tpu.dot_dimension_numbers<[1], [0], [0], [1], [0, 0, 1, 1], [], []>} : vector<2x20xf32>, vector<20x128xf32>, vector<2x128xf32> -> vector<2x128xf32>
    %148 = arith.addf %144, %147 : vector<2x128xf32>
    %149 = vector.extract_strided_slice %87 {offsets = [30, 0], sizes = [2, 20], strides = [1, 1]} : vector<32x20xf32> to vector<2x20xf32>
    %c460 = arith.constant 460 : index
    %c0_62 = arith.constant 0 : index
    %150 = vector.load %arg2[%c460, %c0_62] : memref<624x128xf32, #tpu.memory_space<vmem>>, vector<20x128xf32>
    %cst_63 = arith.constant dense<0.000000e+00> : vector<2x128xf32>
    %151 = tpu.matmul %149, %150, %cst_63 {dimension_numbers = #tpu.dot_dimension_numbers<[1], [0], [0], [1], [0, 0, 1, 1], [], []>} : vector<2x20xf32>, vector<20x128xf32>, vector<2x128xf32> -> vector<2x128xf32>
    %152 = arith.addf %148, %151 : vector<2x128xf32>
    %c480 = arith.constant 480 : index
    %c0_64 = arith.constant 0 : index
    %153 = vector.load %arg2[%c480, %c0_64] : memref<624x128xf32, #tpu.memory_space<vmem>>, vector<1x128xf32>
    %154 = vector.broadcast %153 : vector<1x128xf32> to vector<2x128xf32>
    %155 = arith.addf %152, %154 : vector<2x128xf32>
    %cst_65 = arith.constant 0.000000e+00 : f32
    %156 = vector.broadcast %cst_65 : f32 to vector<2x128xf32>
    %157 = arith.maximumf %155, %156 : vector<2x128xf32>
    %c488 = arith.constant 488 : index
    %c0_66 = arith.constant 0 : index
    %158 = vector.load %arg2[%c488, %c0_66] : memref<624x128xf32, #tpu.memory_space<vmem>>, vector<128x128xf32>
    %cst_67 = arith.constant dense<0.000000e+00> : vector<2x128xf32>
    %159 = tpu.matmul %157, %158, %cst_67 {dimension_numbers = #tpu.dot_dimension_numbers<[1], [0], [0], [1], [0, 0, 1, 1], [], []>} : vector<2x128xf32>, vector<128x128xf32>, vector<2x128xf32> -> vector<2x128xf32>
    %c616 = arith.constant 616 : index
    %c0_68 = arith.constant 0 : index
    %160 = vector.load %arg2[%c616, %c0_68] : memref<624x128xf32, #tpu.memory_space<vmem>>, vector<1x128xf32>
    %161 = vector.broadcast %160 : vector<1x128xf32> to vector<2x128xf32>
    %162 = arith.addf %159, %161 : vector<2x128xf32>
    %c0_69 = arith.constant 0 : index
    %c0_70 = arith.constant 0 : index
    %163 = vector.load %arg3[%c0_69, %c0_70] : memref<2x128xf32, #tpu.memory_space<vmem>>, vector<2x128xf32>
    tpu.vector_store %arg3[%c0_69, %c0_70], %162 {strides = array<i32>} : memref<2x128xf32, #tpu.memory_space<vmem>>, vector<2x128xf32>,
    return
  }
  func.func @transform_0(%arg0: i32) -> (i32, i32) {
    %c0_i32 = arith.constant 0 : i32
    %c0_i32_0 = arith.constant 0 : i32
    %c0_i32_1 = arith.constant 0 : i32
    return %c0_i32, %c0_i32_0 : i32, i32
  }
  func.func @transform_1(%arg0: i32) -> (i32, i32) {
    %c0_i32 = arith.constant 0 : i32
    %c0_i32_0 = arith.constant 0 : i32
    %c0_i32_1 = arith.constant 0 : i32
    return %c0_i32, %c0_i32_0 : i32, i32
  }
  func.func @transform_2(%arg0: i32) -> (i32, i32) {
    %c0_i32 = arith.constant 0 : i32
    %c0_i32_0 = arith.constant 0 : i32
    %c0_i32_1 = arith.constant 0 : i32
    return %c0_i32, %c0_i32_0 : i32, i32
  }
}

</mosaic_0001>

<llo_original>
// kernel: tpu_custom_call.1
$region0: #{tpu_custom_call.1}
  #allocation0 [shape = 'u32[]', space=smem, size = 0x4, offset = 0x4, fixed_abs, tag = 'smem constant byte address 0x4 - core index']
  #allocation1 [shape = 'u32[144,128]{1,0:T(1,128)}', space=vmem, size = 0x12000, scoped, tag = 'internal scratch']
  %s0 = inlined_call_operand.vmem [shape: f32[32,4], index: 0, kind: input, shape index: {}]
  %s1 = inlined_call_operand.hbm [shape: f32[624,128], index: 1, kind: input, shape index: {}]
  %s2 = inlined_call_operand.hbm [shape: f32[2,128], index: 2, kind: output, shape index: {}]
  %s3 = sld [smem:[#allocation0]]
  $region22: #{tpu_custom_call.1} parent=0
    _
  %s5 = ssub.s32 1, %s3
  %s6 = scalar_select 0, %s5, %s3
  $region1: #{tpu_custom_call.1} parent=0
    #allocation2 [shape = 'u8[319488]{0}', space=vmem, size = 0x4e000, scoped, tag = 'input window, operand 1, single buffered']
    #allocation3 [shape = 's32[1]{0}', space=sflag, size = 0x4, scoped, tag = 'scoped memory for tpu_custom_call.1']
    #allocation4 [shape = 's32[1]{0}', space=sflag, size = 0x4, scoped, tag = 'scoped memory for tpu_custom_call.1']
    #allocation5 [shape = 'u8[1024]{0}', space=vmem, size = 0x400, scoped, tag = 'output window, operand 0, single buffered']
    %7 = vsyncpa [#allocation3], 0
    %8 = vsyncpa [#allocation4], 0
    // Predicated region
    $region2: #{tpu_custom_call.1} parent=1 // pred_check
      _
    $region3: #{tpu_custom_call.1} parent=1 // pred_check_branch
      %10 = sbr.rel (0) target = $region5
    $region4: #{tpu_custom_call.1} parent=1 // pred_region
      _
    $region5: #{tpu_custom_call.1} parent=1 // pred_fallthru
      _
    // Predicated region
    $region6: #{tpu_custom_call.1} parent=1 // pred_check
      _
    $region7: #{tpu_custom_call.1} parent=1 // pred_check_branch
      %12 = sbr.rel (0) target = $region9
    $region8: #{tpu_custom_call.1} parent=1 // pred_region
      %s14 = ssub.s32 9984, 9984
      %15 = vsyncadd [#allocation3], %s14
      %s16 = sshll.u32 [#allocation2], 4
      %s17 = int_to_ptr.vmem [resolvable:$true] %s16
      %22 = dma.hbm_to_vmem [thread:$0]  %s1, 9984, %s17, [#allocation3], 128, 128, 8
    $region9: #{tpu_custom_call.1} parent=1 // pred_fallthru
      _
    // Predicated region
    $region10: #{tpu_custom_call.1} parent=1 // pred_check
      _
    $region11: #{tpu_custom_call.1} parent=1 // pred_check_branch
      %24 = sbr.rel (0) target = $region13
    $region12: #{tpu_custom_call.1} parent=1 // pred_region
      %25 = dma.done [#allocation3], 9984
    $region13: #{tpu_custom_call.1} parent=1 // pred_fallthru
      _
    %v26 = vld [vmem:[%s0] sm:$0xff]
    %v27 = vld [vmem:[%s0 + $0x8] sm:$0xff]
    %v28 = vld [vmem:[%s0 + $0x10] sm:$0xff]
    %v29 = vld [vmem:[%s0 + $0x18] sm:$0xff]
    %v30 = vld [vmem:[#allocation2] sm:$0xff]
    %v31 = vld [vmem:[#allocation2 + $0x8] sm:$0xff]
    %v32 = vld [vmem:[#allocation2 + $0x10] sm:$0xf]
    %v33 = vld [vmem:[#allocation2 + $0x88] sm:$0x1]
    %vm38 = vcmask 1043456
    %v39 = vrot.slane %v26, 4
    %v40 = vrot.slane %v27, 4
    %v41 = vsel %vm38, %v39, %v40
    %v42 = vrot.slane %v28, 4
    %v43 = vsel %vm38, %v40, %v42
    %v44 = vrot.slane %v29, 4
    %v45 = vsel %vm38, %v42, %v44
    %v48 = vsel %vm38, 0.0, %v39
    %v49 = vsel %vm38, %v44, 0.0
    %vm52 = vcmask 1045504
    %v53 = vrot.slane %v48, 2
    %v54 = vrot.slane %v41, 2
    %v55 = vsel %vm52, %v53, %v54
    %v56 = vrot.slane %v43, 2
    %v57 = vsel %vm52, %v54, %v56
    %v58 = vrot.slane %v45, 2
    %v59 = vsel %vm52, %v56, %v58
    %v60 = vrot.slane %v49, 2
    %v61 = vsel %vm52, %v58, %v60
    %v63 = vrot.slane %v30, 4
    %vm64 = vcmask 31744
    %v65 = vsel %vm64, %v55, 0
    %v67 = vsel %vm64, %v57, 0
    %v69 = vsel %vm64, %v59, 0
    %v71 = vsel %vm64, %v61, 0
    %v73 = vsel %vm38, %v63, 0
    %75 = vmatprep.subr.mxu0 0.0
    %76 = vmatpush1.msra.mxu0 %v73
    %77 = vmatprep.subr.mxu0 0.0
    %78 = vmatpush1.msra.mxu0 0.0
    %79 = vmatprep.subr.mxu0 0.0
    %80 = vmatpush1.msra.mxu0 0.0
    %81 = vmatprep.subr.mxu0 0.0
    %82 = vmatpush1.msra.mxu0 0.0
    %83 = vmatprep.subr.mxu0 0.0
    %84 = vmatpush1.msra.mxu0 0.0
    %85 = vmatprep.subr.mxu0 0.0
    %86 = vmatpush1.msra.mxu0 0.0
    %87 = vmatprep.subr.mxu0 0.0
    %88 = vmatpush1.msra.mxu0 0.0
    %89 = vmatprep.subr.mxu0 0.0
    %90 = vmatpush1.msra.mxu0 0.0
    %91 = vmatprep.subr.mxu0 0.0
    %92 = vmatpush1.msra.mxu0 0.0
    %93 = vmatprep.subr.mxu0 0.0
    %94 = vmatpush1.msra.mxu0 0.0
    %95 = vmatprep.subr.mxu0 0.0
    %96 = vmatpush1.msra.mxu0 0.0
    %97 = vmatprep.subr.mxu0 0.0
    %98 = vmatpush1.msra.mxu0 0.0
    %99 = vmatprep.subr.mxu0 0.0
    %100 = vmatpush1.msra.mxu0 0.0
    %101 = vmatprep.subr.mxu0 0.0
    %102 = vmatpush1.msra.mxu0 0.0
    %103 = vmatprep.subr.mxu0 0.0
    %104 = vmatpush1.msra.mxu0 0.0
    %105 = vmatprep.subr.mxu0 0.0
    %106 = vmatpush1.msra.mxu0 0.0
    %107 = vmatprep.subr.mxu0 0.0
    %108 = vmatpush1.msra.mxu0 0.0
    %109 = vmatprep.subr.mxu0 0.0
    %110 = vmatpush1.msra.mxu0 0.0
    %111 = vmatprep.subr.mxu0 0.0
    %112 = vmatpush1.msra.mxu0 0.0
    %113 = vmatprep.subr.mxu0 0.0
    %114 = vmatpush1.msra.mxu0 0.0
    %115 = vmatprep.subr.mxu0 0.0
    %116 = vmatpush1.msra.mxu0 0.0
    %117 = vmatprep.subr.mxu0 0.0
    %118 = vmatpush1.msra.mxu0 0.0
    %119 = vmatprep.subr.mxu0 0.0
    %120 = vmatpush1.msra.mxu0 0.0
    %121 = vmatprep.subr.mxu0 0.0
    %122 = vmatpush1.msra.mxu0 0.0
    %123 = vmatprep.subr.mxu0 0.0
    %124 = vmatpush1.msra.mxu0 0.0
    %125 = vmatprep.subr.mxu0 0.0
    %126 = vmatpush1.msra.mxu0 0.0
    %127 = vmatprep.subr.mxu0 0.0
    %128 = vmatpush1.msra.mxu0 0.0
    %129 = vmatprep.subr.mxu0 0.0
    %130 = vmatpush1.msra.mxu0 0.0
    %131 = vmatprep.subr.mxu0 0.0
    %132 = vmatpush1.msra.mxu0 0.0
    %133 = vmatprep.subr.mxu0 0.0
    %134 = vmatpush1.msra.mxu0 0.0
    %135 = vmatprep.subr.mxu0 0.0
    %136 = vmatpush1.msra.mxu0 0.0
    %137 = vmatprep.subr.mxu0 0.0
    %138 = vmatpush1.msra.mxu0 0.0
    %139 = vmatprep.mubr.f32.mxu0 0.0
    %140 = vmatmul.mubr.f32.gmra.mrb[0].mxu0 %v65
    %v141 = vpop.f32.mrb[0].mxu0
    %v142 = vadd.f32 0.0, %v141
    %v143 = vpop.f32.mrb[0].mxu0
    %144 = vmatprep.mubr.f32.mxu0 0.0
    %145 = vmatmul.mubr.f32.gmra.mrb[0].mxu0 %v67
    %v146 = vpop.f32.mrb[0].mxu0
    %v147 = vadd.f32 0.0, %v146
    %v148 = vpop.f32.mrb[0].mxu0
    %149 = vmatprep.mubr.f32.mxu0 0.0
    %150 = vmatmul.mubr.f32.gmra.mrb[0].mxu0 %v69
    %v151 = vpop.f32.mrb[0].mxu0
    %v152 = vadd.f32 0.0, %v151
    %v153 = vpop.f32.mrb[0].mxu0
    %154 = vmatprep.mubr.f32.mxu0 0.0
    %155 = vmatmul.mubr.f32.gmra.mrb[0].mxu0 %v71
    %v156 = vpop.f32.mrb[0].mxu0
    %v157 = vadd.f32 0.0, %v156
    %v158 = vpop.f32.mrb[0].mxu0
    %159 = vdwg.mxu0
    %v160 = vsel %vm64, %v48, 0
    %v162 = vsel %vm64, %v41, 0
    %v164 = vsel %vm64, %v43, 0
    %v166 = vsel %vm64, %v45, 0
    %v168 = vsel %vm38, %v30, 0
    %170 = vmatprep.subr.mxu0 0.0
    %171 = vmatpush1.msra.mxu0 %v168
    %172 = vmatprep.subr.mxu0 0.0
    %173 = vmatpush1.msra.mxu0 0.0
    %174 = vmatprep.subr.mxu0 0.0
    %175 = vmatpush1.msra.mxu0 0.0
    %176 = vmatprep.subr.mxu0 0.0
    %177 = vmatpush1.msra.mxu0 0.0
    %178 = vmatprep.subr.mxu0 0.0
    %179 = vmatpush1.msra.mxu0 0.0
    %180 = vmatprep.subr.mxu0 0.0
    %181 = vmatpush1.msra.mxu0 0.0
    %182 = vmatprep.subr.mxu0 0.0
    %183 = vmatpush1.msra.mxu0 0.0
    %184 = vmatprep.subr.mxu0 0.0
    %185 = vmatpush1.msra.mxu0 0.0
    %186 = vmatprep.subr.mxu0 0.0
    %187 = vmatpush1.msra.mxu0 0.0
    %188 = vmatprep.subr.mxu0 0.0
    %189 = vmatpush1.msra.mxu0 0.0
    %190 = vmatprep.subr.mxu0 0.0
    %191 = vmatpush1.msra.mxu0 0.0
    %192 = vmatprep.subr.mxu0 0.0
    %193 = vmatpush1.msra.mxu0 0.0
    %194 = vmatprep.subr.mxu0 0.0
    %195 = vmatpush1.msra.mxu0 0.0
    %196 = vmatprep.subr.mxu0 0.0
    %197 = vmatpush1.msra.mxu0 0.0
    %198 = vmatprep.subr.mxu0 0.0
    %199 = vmatpush1.msra.mxu0 0.0
    %200 = vmatprep.subr.mxu0 0.0
    %201 = vmatpush1.msra.mxu0 0.0
    %202 = vmatprep.subr.mxu0 0.0
    %203 = vmatpush1.msra.mxu0 0.0
    %204 = vmatprep.subr.mxu0 0.0
    %205 = vmatpush1.msra.mxu0 0.0
    %206 = vmatprep.subr.mxu0 0.0
    %207 = vmatpush1.msra.mxu0 0.0
    %208 = vmatprep.subr.mxu0 0.0
    %209 = vmatpush1.msra.mxu0 0.0
    %210 = vmatprep.subr.mxu0 0.0
    %211 = vmatpush1.msra.mxu0 0.0
    %212 = vmatprep.subr.mxu0 0.0
    %213 = vmatpush1.msra.mxu0 0.0
    %214 = vmatprep.subr.mxu0 0.0
    %215 = vmatpush1.msra.mxu0 0.0
    %216 = vmatprep.subr.mxu0 0.0
    %217 = vmatpush1.msra.mxu0 0.0
    %218 = vmatprep.subr.mxu0 0.0
    %219 = vmatpush1.msra.mxu0 0.0
    %220 = vmatprep.subr.mxu0 0.0
    %221 = vmatpush1.msra.mxu0 0.0
    %222 = vmatprep.subr.mxu0 0.0
    %223 = vmatpush1.msra.mxu0 0.0
    %224 = vmatprep.subr.mxu0 0.0
    %225 = vmatpush1.msra.mxu0 0.0
    %226 = vmatprep.subr.mxu0 0.0
    %227 = vmatpush1.msra.mxu0 0.0
    %228 = vmatprep.subr.mxu0 0.0
    %229 = vmatpush1.msra.mxu0 0.0
    %230 = vmatprep.subr.mxu0 0.0
    %231 = vmatpush1.msra.mxu0 0.0
    %232 = vmatprep.subr.mxu0 0.0
    %233 = vmatpush1.msra.mxu0 0.0
    %234 = vmatprep.mubr.f32.mxu0 0.0
    %235 = vmatmul.mubr.f32.gmra.mrb[0].mxu0 %v160
    %v236 = vpop.f32.mrb[0].mxu0
    %v237 = vadd.f32 %v142, %v236
    %v238 = vpop.f32.mrb[0].mxu0
    %239 = vmatprep.mubr.f32.mxu0 0.0
    %240 = vmatmul.mubr.f32.gmra.mrb[0].mxu0 %v162
    %v241 = vpop.f32.mrb[0].mxu0
    %v242 = vadd.f32 %v147, %v241
    %v243 = vpop.f32.mrb[0].mxu0
    %244 = vmatprep.mubr.f32.mxu0 0.0
    %245 = vmatmul.mubr.f32.gmra.mrb[0].mxu0 %v164
    %v246 = vpop.f32.mrb[0].mxu0
    %v247 = vadd.f32 %v152, %v246
    %v248 = vpop.f32.mrb[0].mxu0
    %249 = vmatprep.mubr.f32.mxu0 0.0
    %250 = vmatmul.mubr.f32.gmra.mrb[0].mxu0 %v166
    %v251 = vpop.f32.mrb[0].mxu0
    %v252 = vadd.f32 %v157, %v251
    %v253 = vpop.f32.mrb[0].mxu0
    %254 = vdwg.mxu0
    %v255 = vrot.slane %v48, 4
    %v256 = vrot.slane %v41, 4
    %v257 = vsel %vm38, %v255, %v256
    %v258 = vrot.slane %v43, 4
    %v259 = vsel %vm38, %v256, %v258
    %v260 = vrot.slane %v45, 4
    %v261 = vsel %vm38, %v258, %v260
    %v262 = vrot.slane %v49, 4
    %v263 = vsel %vm38, %v260, %v262
    %v264 = vsel %vm64, %v257, 0
    %v266 = vsel %vm64, %v259, 0
    %v268 = vsel %vm64, %v261, 0
    %v270 = vsel %vm64, %v263, 0
    %v273 = vsel %vm38, %v31, 0
    %275 = vmatprep.subr.mxu0 0.0
    %276 = vmatpush1.msra.mxu0 %v273
    %277 = vmatprep.subr.mxu0 0.0
    %278 = vmatpush1.msra.mxu0 0.0
    %279 = vmatprep.subr.mxu0 0.0
    %280 = vmatpush1.msra.mxu0 0.0
    %281 = vmatprep.subr.mxu0 0.0
    %282 = vmatpush1.msra.mxu0 0.0
    %283 = vmatprep.subr.mxu0 0.0
    %284 = vmatpush1.msra.mxu0 0.0
    %285 = vmatprep.subr.mxu0 0.0
    %286 = vmatpush1.msra.mxu0 0.0
    %287 = vmatprep.subr.mxu0 0.0
    %288 = vmatpush1.msra.mxu0 0.0
    %289 = vmatprep.subr.mxu0 0.0
    %290 = vmatpush1.msra.mxu0 0.0
    %291 = vmatprep.subr.mxu0 0.0
    %292 = vmatpush1.msra.mxu0 0.0
    %293 = vmatprep.subr.mxu0 0.0
    %294 = vmatpush1.msra.mxu0 0.0
    %295 = vmatprep.subr.mxu0 0.0
    %296 = vmatpush1.msra.mxu0 0.0
    %297 = vmatprep.subr.mxu0 0.0
    %298 = vmatpush1.msra.mxu0 0.0
    %299 = vmatprep.subr.mxu0 0.0
    %300 = vmatpush1.msra.mxu0 0.0
    %301 = vmatprep.subr.mxu0 0.0
    %302 = vmatpush1.msra.mxu0 0.0
    %303 = vmatprep.subr.mxu0 0.0
    %304 = vmatpush1.msra.mxu0 0.0
    %305 = vmatprep.subr.mxu0 0.0
    %306 = vmatpush1.msra.mxu0 0.0
    %307 = vmatprep.subr.mxu0 0.0
    %308 = vmatpush1.msra.mxu0 0.0
    %309 = vmatprep.subr.mxu0 0.0
    %310 = vmatpush1.msra.mxu0 0.0
    %311 = vmatprep.subr.mxu0 0.0
    %312 = vmatpush1.msra.mxu0 0.0
    %313 = vmatprep.subr.mxu0 0.0
    %314 = vmatpush1.msra.mxu0 0.0
    %315 = vmatprep.subr.mxu0 0.0
    %316 = vmatpush1.msra.mxu0 0.0
    %317 = vmatprep.subr.mxu0 0.0
    %318 = vmatpush1.msra.mxu0 0.0
    %319 = vmatprep.subr.mxu0 0.0
    %320 = vmatpush1.msra.mxu0 0.0
    %321 = vmatprep.subr.mxu0 0.0
    %322 = vmatpush1.msra.mxu0 0.0
    %323 = vmatprep.subr.mxu0 0.0
    %324 = vmatpush1.msra.mxu0 0.0
    %325 = vmatprep.subr.mxu0 0.0
    %326 = vmatpush1.msra.mxu0 0.0
    %327 = vmatprep.subr.mxu0 0.0
    %328 = vmatpush1.msra.mxu0 0.0
    %329 = vmatprep.subr.mxu0 0.0
    %330 = vmatpush1.msra.mxu0 0.0
    %331 = vmatprep.subr.mxu0 0.0
    %332 = vmatpush1.msra.mxu0 0.0
    %333 = vmatprep.subr.mxu0 0.0
    %334 = vmatpush1.msra.mxu0 0.0
    %335 = vmatprep.subr.mxu0 0.0
    %336 = vmatpush1.msra.mxu0 0.0
    %337 = vmatprep.subr.mxu0 0.0
    %338 = vmatpush1.msra.mxu0 0.0
    %339 = vmatprep.mubr.f32.mxu0 0.0
    %340 = vmatmul.mubr.f32.gmra.mrb[0].mxu0 %v264
    %v341 = vpop.f32.mrb[0].mxu0
    %v342 = vadd.f32 0.0, %v341
    %v343 = vpop.f32.mrb[0].mxu0
    %344 = vmatprep.mubr.f32.mxu0 0.0
    %345 = vmatmul.mubr.f32.gmra.mrb[0].mxu0 %v266
    %v346 = vpop.f32.mrb[0].mxu0
    %v347 = vadd.f32 0.0, %v346
    %v348 = vpop.f32.mrb[0].mxu0
    %349 = vmatprep.mubr.f32.mxu0 0.0
    %350 = vmatmul.mubr.f32.gmra.mrb[0].mxu0 %v268
    %v351 = vpop.f32.mrb[0].mxu0
    %v352 = vadd.f32 0.0, %v351
    %v353 = vpop.f32.mrb[0].mxu0
    %354 = vmatprep.mubr.f32.mxu0 0.0
    %355 = vmatmul.mubr.f32.gmra.mrb[0].mxu0 %v270
    %v356 = vpop.f32.mrb[0].mxu0
    %v357 = vadd.f32 0.0, %v356
    %v358 = vpop.f32.mrb[0].mxu0
    %359 = vdwg.mxu0
    %v360 = vadd.f32 %v237, %v342
    %v361 = vadd.f32 %v242, %v347
    %v362 = vadd.f32 %v247, %v352
    %v363 = vadd.f32 %v252, %v357
    %vm364 = vcmask 1041408
    %v365 = vrot.slane %v48, 6
    %v366 = vrot.slane %v41, 6
    %v367 = vsel %vm364, %v365, %v366
    %v368 = vrot.slane %v43, 6
    %v369 = vsel %vm364, %v366, %v368
    %v370 = vrot.slane %v45, 6
    %v371 = vsel %vm364, %v368, %v370
    %v372 = vrot.slane %v49, 6
    %v373 = vsel %vm364, %v370, %v372
    %v374 = vrot.slane %v31, 4
    %v375 = vsel %vm64, %v367, 0
    %v377 = vsel %vm64, %v369, 0
    %v379 = vsel %vm64, %v371, 0
    %v381 = vsel %vm64, %v373, 0
    %v383 = vsel %vm38, %v374, 0
    %385 = vmatprep.subr.mxu0 0.0
    %386 = vmatpush1.msra.mxu0 %v383
    %387 = vmatprep.subr.mxu0 0.0
    %388 = vmatpush1.msra.mxu0 0.0
    %389 = vmatprep.subr.mxu0 0.0
    %390 = vmatpush1.msra.mxu0 0.0
    %391 = vmatprep.subr.mxu0 0.0
    %392 = vmatpush1.msra.mxu0 0.0
    %393 = vmatprep.subr.mxu0 0.0
    %394 = vmatpush1.msra.mxu0 0.0
    %395 = vmatprep.subr.mxu0 0.0
    %396 = vmatpush1.msra.mxu0 0.0
    %397 = vmatprep.subr.mxu0 0.0
    %398 = vmatpush1.msra.mxu0 0.0
    %399 = vmatprep.subr.mxu0 0.0
    %400 = vmatpush1.msra.mxu0 0.0
    %401 = vmatprep.subr.mxu0 0.0
    %402 = vmatpush1.msra.mxu0 0.0
    %403 = vmatprep.subr.mxu0 0.0
    %404 = vmatpush1.msra.mxu0 0.0
    %405 = vmatprep.subr.mxu0 0.0
    %406 = vmatpush1.msra.mxu0 0.0
    %407 = vmatprep.subr.mxu0 0.0
    %408 = vmatpush1.msra.mxu0 0.0
    %409 = vmatprep.subr.mxu0 0.0
    %410 = vmatpush1.msra.mxu0 0.0
    %411 = vmatprep.subr.mxu0 0.0
    %412 = vmatpush1.msra.mxu0 0.0
    %413 = vmatprep.subr.mxu0 0.0
    %414 = vmatpush1.msra.mxu0 0.0
    %415 = vmatprep.subr.mxu0 0.0
    %416 = vmatpush1.msra.mxu0 0.0
    %417 = vmatprep.subr.mxu0 0.0
    %418 = vmatpush1.msra.mxu0 0.0
    %419 = vmatprep.subr.mxu0 0.0
    %420 = vmatpush1.msra.mxu0 0.0
    %421 = vmatprep.subr.mxu0 0.0
    %422 = vmatpush1.msra.mxu0 0.0
    %423 = vmatprep.subr.mxu0 0.0
    %424 = vmatpush1.msra.mxu0 0.0
    %425 = vmatprep.subr.mxu0 0.0
    %426 = vmatpush1.msra.mxu0 0.0
    %427 = vmatprep.subr.mxu0 0.0
    %428 = vmatpush1.msra.mxu0 0.0
    %429 = vmatprep.subr.mxu0 0.0
    %430 = vmatpush1.msra.mxu0 0.0
    %431 = vmatprep.subr.mxu0 0.0
    %432 = vmatpush1.msra.mxu0 0.0
    %433 = vmatprep.subr.mxu0 0.0
    %434 = vmatpush1.msra.mxu0 0.0
    %435 = vmatprep.subr.mxu0 0.0
    %436 = vmatpush1.msra.mxu0 0.0
    %437 = vmatprep.subr.mxu0 0.0
    %438 = vmatpush1.msra.mxu0 0.0
    %439 = vmatprep.subr.mxu0 0.0
    %440 = vmatpush1.msra.mxu0 0.0
    %441 = vmatprep.subr.mxu0 0.0
    %442 = vmatpush1.msra.mxu0 0.0
    %443 = vmatprep.subr.mxu0 0.0
    %444 = vmatpush1.msra.mxu0 0.0
    %445 = vmatprep.subr.mxu0 0.0
    %446 = vmatpush1.msra.mxu0 0.0
    %447 = vmatprep.subr.mxu0 0.0
    %448 = vmatpush1.msra.mxu0 0.0
    %449 = vmatprep.mubr.f32.mxu0 0.0
    %450 = vmatmul.mubr.f32.gmra.mrb[0].mxu0 %v375
    %v451 = vpop.f32.mrb[0].mxu0
    %v452 = vadd.f32 0.0, %v451
    %v453 = vpop.f32.mrb[0].mxu0
    %454 = vmatprep.mubr.f32.mxu0 0.0
    %455 = vmatmul.mubr.f32.gmra.mrb[0].mxu0 %v377
    %v456 = vpop.f32.mrb[0].mxu0
    %v457 = vadd.f32 0.0, %v456
    %v458 = vpop.f32.mrb[0].mxu0
    %459 = vmatprep.mubr.f32.mxu0 0.0
    %460 = vmatmul.mubr.f32.gmra.mrb[0].mxu0 %v379
    %v461 = vpop.f32.mrb[0].mxu0
    %v462 = vadd.f32 0.0, %v461
    %v463 = vpop.f32.mrb[0].mxu0
    %464 = vmatprep.mubr.f32.mxu0 0.0
    %465 = vmatmul.mubr.f32.gmra.mrb[0].mxu0 %v381
    %v466 = vpop.f32.mrb[0].mxu0
    %v467 = vadd.f32 0.0, %v466
    %v468 = vpop.f32.mrb[0].mxu0
    %469 = vdwg.mxu0
    %v470 = vadd.f32 %v360, %v452
    %v471 = vadd.f32 %v361, %v457
    %v472 = vadd.f32 %v362, %v462
    %v473 = vadd.f32 %v363, %v467
    %v474 = vsel %vm64, %v49, 0
    %v477 = vsel %vm38, %v32, 0
    %479 = vmatprep.subr.mxu0 0.0
    %480 = vmatpush1.msra.mxu0 %v477
    %481 = vmatprep.subr.mxu0 0.0
    %482 = vmatpush1.msra.mxu0 0.0
    %483 = vmatprep.subr.mxu0 0.0
    %484 = vmatpush1.msra.mxu0 0.0
    %485 = vmatprep.subr.mxu0 0.0
    %486 = vmatpush1.msra.mxu0 0.0
    %487 = vmatprep.subr.mxu0 0.0
    %488 = vmatpush1.msra.mxu0 0.0
    %489 = vmatprep.subr.mxu0 0.0
    %490 = vmatpush1.msra.mxu0 0.0
    %491 = vmatprep.subr.mxu0 0.0
    %492 = vmatpush1.msra.mxu0 0.0
    %493 = vmatprep.subr.mxu0 0.0
    %494 = vmatpush1.msra.mxu0 0.0
    %495 = vmatprep.subr.mxu0 0.0
    %496 = vmatpush1.msra.mxu0 0.0
    %497 = vmatprep.subr.mxu0 0.0
    %498 = vmatpush1.msra.mxu0 0.0
    %499 = vmatprep.subr.mxu0 0.0
    %500 = vmatpush1.msra.mxu0 0.0
    %501 = vmatprep.subr.mxu0 0.0
    %502 = vmatpush1.msra.mxu0 0.0
    %503 = vmatprep.subr.mxu0 0.0
    %504 = vmatpush1.msra.mxu0 0.0
    %505 = vmatprep.subr.mxu0 0.0
    %506 = vmatpush1.msra.mxu0 0.0
    %507 = vmatprep.subr.mxu0 0.0
    %508 = vmatpush1.msra.mxu0 0.0
    %509 = vmatprep.subr.mxu0 0.0
    %510 = vmatpush1.msra.mxu0 0.0
    %511 = vmatprep.subr.mxu0 0.0
    %512 = vmatpush1.msra.mxu0 0.0
    %513 = vmatprep.subr.mxu0 0.0
    %514 = vmatpush1.msra.mxu0 0.0
    %515 = vmatprep.subr.mxu0 0.0
    %516 = vmatpush1.msra.mxu0 0.0
    %517 = vmatprep.subr.mxu0 0.0
    %518 = vmatpush1.msra.mxu0 0.0
    %519 = vmatprep.subr.mxu0 0.0
    %520 = vmatpush1.msra.mxu0 0.0
    %521 = vmatprep.subr.mxu0 0.0
    %522 = vmatpush1.msra.mxu0 0.0
    %523 = vmatprep.subr.mxu0 0.0
    %524 = vmatpush1.msra.mxu0 0.0
    %525 = vmatprep.subr.mxu0 0.0
    %526 = vmatpush1.msra.mxu0 0.0
    %527 = vmatprep.subr.mxu0 0.0
    %528 = vmatpush1.msra.mxu0 0.0
    %529 = vmatprep.subr.mxu0 0.0
    %530 = vmatpush1.msra.mxu0 0.0
    %531 = vmatprep.subr.mxu0 0.0
    %532 = vmatpush1.msra.mxu0 0.0
    %533 = vmatprep.subr.mxu0 0.0
    %534 = vmatpush1.msra.mxu0 0.0
    %535 = vmatprep.subr.mxu0 0.0
    %536 = vmatpush1.msra.mxu0 0.0
    %537 = vmatprep.subr.mxu0 0.0
    %538 = vmatpush1.msra.mxu0 0.0
    %539 = vmatprep.subr.mxu0 0.0
    %540 = vmatpush1.msra.mxu0 0.0
    %541 = vmatprep.subr.mxu0 0.0
    %542 = vmatpush1.msra.mxu0 0.0
    %543 = vmatprep.mubr.f32.mxu0 0.0
    %544 = vmatmul.mubr.f32.gmra.mrb[0].mxu0 %v162
    %v545 = vpop.f32.mrb[0].mxu0
    %v546 = vadd.f32 0.0, %v545
    %v547 = vpop.f32.mrb[0].mxu0
    %548 = vmatprep.mubr.f32.mxu0 0.0
    %549 = vmatmul.mubr.f32.gmra.mrb[0].mxu0 %v164
    %v550 = vpop.f32.mrb[0].mxu0
    %v551 = vadd.f32 0.0, %v550
    %v552 = vpop.f32.mrb[0].mxu0
    %553 = vmatprep.mubr.f32.mxu0 0.0
    %554 = vmatmul.mubr.f32.gmra.mrb[0].mxu0 %v166
    %v555 = vpop.f32.mrb[0].mxu0
    %v556 = vadd.f32 0.0, %v555
    %v557 = vpop.f32.mrb[0].mxu0
    %558 = vmatprep.mubr.f32.mxu0 0.0
    %559 = vmatmul.mubr.f32.gmra.mrb[0].mxu0 %v474
    %v560 = vpop.f32.mrb[0].mxu0
    %v561 = vadd.f32 0.0, %v560
    %v562 = vpop.f32.mrb[0].mxu0
    %563 = vdwg.mxu0
    %v564 = vadd.f32 %v470, %v546
    %v565 = vadd.f32 %v471, %v551
    %v566 = vadd.f32 %v472, %v556
    %v567 = vadd.f32 %v473, %v561
    %v568 = vlaneseq
    %v569 = vshrl.u32 %v568, 7
    %v570 = vsub.s32 0, %v569
    %v571 = vrot.slane %v33, %v570
    %v572 = vadd.f32 %v564, %v571
    %v573 = vadd.f32 %v565, %v571
    %v574 = vadd.f32 %v566, %v571
    %v575 = vadd.f32 %v567, %v571
    %v576 = vmax.f32 %v572, 0.0
    %v577 = vmax.f32 %v573, 0.0
    %v578 = vmax.f32 %v574, 0.0
    %v579 = vmax.f32 %v575, 0.0
    %v580 = vld [vmem:[#allocation2 + $0x18] sm:$0xff]
    %v581 = vld [vmem:[#allocation2 + $0x20] sm:$0xff]
    %v582 = vld [vmem:[#allocation2 + $0x28] sm:$0xff]
    %v583 = vld [vmem:[#allocation2 + $0x30] sm:$0xff]
    %v584 = vld [vmem:[#allocation2 + $0x38] sm:$0xff]
    %v585 = vld [vmem:[#allocation2 + $0x40] sm:$0xff]
    %v586 = vld [vmem:[#allocation2 + $0x48] sm:$0x3]
    %v587 = vld [vmem:[#allocation2 + $0x90] sm:$0x1]
    %v592 = vrot.slane %v576, 4
    %v593 = vrot.slane %v577, 4
    %v594 = vsel %vm38, %v592, %v593
    %v595 = vrot.slane %v578, 4
    %v596 = vsel %vm38, %v593, %v595
    %v597 = vrot.slane %v579, 4
    %v598 = vsel %vm38, %v595, %v597
    %v601 = vsel %vm38, 0.0, %v592
    %v602 = vsel %vm38, %v597, 0.0
    %v605 = vrot.slane %v601, 2
    %v606 = vrot.slane %v594, 2
    %v607 = vsel %vm52, %v605, %v606
    %v608 = vrot.slane %v596, 2
    %v609 = vsel %vm52, %v606, %v608
    %v610 = vrot.slane %v598, 2
    %v611 = vsel %vm52, %v608, %v610
    %v612 = vrot.slane %v602, 2
    %v613 = vsel %vm52, %v610, %v612
    %v616 = vrot.slane %v581, 2
    %v617 = vrot.slane %v582, 2
    %v618 = vsel %vm52, %v616, %v617
    %vm620 = vcmask 80896
    %v621 = vsel %vm620, %v607, 0
    %v623 = vsel %vm620, %v609, 0
    %v625 = vsel %vm620, %v611, 0
    %v627 = vsel %vm620, %v613, 0
    %v629 = vsel %vm364, %v617, 0
    %631 = vmatprep.subr.mxu0 0.0
    %632 = vmatpush1.msra.mxu0 %v618
    %633 = vmatprep.subr.mxu0 0.0
    %634 = vmatpush1.msra.mxu0 %v629
    %635 = vmatprep.subr.mxu0 0.0
    %636 = vmatpush1.msra.mxu0 0.0
    %637 = vmatprep.subr.mxu0 0.0
    %638 = vmatpush1.msra.mxu0 0.0
    %639 = vmatprep.subr.mxu0 0.0
    %640 = vmatpush1.msra.mxu0 0.0
    %641 = vmatprep.subr.mxu0 0.0
    %642 = vmatpush1.msra.mxu0 0.0
    %643 = vmatprep.subr.mxu0 0.0
    %644 = vmatpush1.msra.mxu0 0.0
    %645 = vmatprep.subr.mxu0 0.0
    %646 = vmatpush1.msra.mxu0 0.0
    %647 = vmatprep.subr.mxu0 0.0
    %648 = vmatpush1.msra.mxu0 0.0
    %649 = vmatprep.subr.mxu0 0.0
    %650 = vmatpush1.msra.mxu0 0.0
    %651 = vmatprep.subr.mxu0 0.0
    %652 = vmatpush1.msra.mxu0 0.0
    %653 = vmatprep.subr.mxu0 0.0
    %654 = vmatpush1.msra.mxu0 0.0
    %655 = vmatprep.subr.mxu0 0.0
    %656 = vmatpush1.msra.mxu0 0.0
    %657 = vmatprep.subr.mxu0 0.0
    %658 = vmatpush1.msra.mxu0 0.0
    %659 = vmatprep.subr.mxu0 0.0
    %660 = vmatpush1.msra.mxu0 0.0
    %661 = vmatprep.subr.mxu0 0.0
    %662 = vmatpush1.msra.mxu0 0.0
    %663 = vmatprep.subr.mxu0 0.0
    %664 = vmatpush1.msra.mxu0 0.0
    %665 = vmatprep.subr.mxu0 0.0
    %666 = vmatpush1.msra.mxu0 0.0
    %667 = vmatprep.subr.mxu0 0.0
    %668 = vmatpush1.msra.mxu0 0.0
    %669 = vmatprep.subr.mxu0 0.0
    %670 = vmatpush1.msra.mxu0 0.0
    %671 = vmatprep.subr.mxu0 0.0
    %672 = vmatpush1.msra.mxu0 0.0
    %673 = vmatprep.subr.mxu0 0.0
    %674 = vmatpush1.msra.mxu0 0.0
    %675 = vmatprep.subr.mxu0 0.0
    %676 = vmatpush1.msra.mxu0 0.0
    %677 = vmatprep.subr.mxu0 0.0
    %678 = vmatpush1.msra.mxu0 0.0
    %679 = vmatprep.subr.mxu0 0.0
    %680 = vmatpush1.msra.mxu0 0.0
    %681 = vmatprep.subr.mxu0 0.0
    %682 = vmatpush1.msra.mxu0 0.0
    %683 = vmatprep.subr.mxu0 0.0
    %684 = vmatpush1.msra.mxu0 0.0
    %685 = vmatprep.subr.mxu0 0.0
    %686 = vmatpush1.msra.mxu0 0.0
    %687 = vmatprep.subr.mxu0 0.0
    %688 = vmatpush1.msra.mxu0 0.0
    %689 = vmatprep.subr.mxu0 0.0
    %690 = vmatpush1.msra.mxu0 0.0
    %691 = vmatprep.subr.mxu0 0.0
    %692 = vmatpush1.msra.mxu0 0.0
    %693 = vmatprep.subr.mxu0 0.0
    %694 = vmatpush1.msra.mxu0 0.0
    %695 = vmatprep.mubr.f32.mxu0 0.0
    %696 = vmatmul.mubr.f32.gmra.mrb[0].mxu0 %v621
    %v697 = vpop.f32.mrb[0].mxu0
    %v698 = vadd.f32 0.0, %v697
    %v699 = vpop.f32.mrb[0].mxu0
    %700 = vmatprep.mubr.f32.mxu0 0.0
    %701 = vmatmul.mubr.f32.gmra.mrb[0].mxu0 %v623
    %v702 = vpop.f32.mrb[0].mxu0
    %v703 = vadd.f32 0.0, %v702
    %v704 = vpop.f32.mrb[0].mxu0
    %705 = vmatprep.mubr.f32.mxu0 0.0
    %706 = vmatmul.mubr.f32.gmra.mrb[0].mxu0 %v625
    %v707 = vpop.f32.mrb[0].mxu0
    %v708 = vadd.f32 0.0, %v707
    %v709 = vpop.f32.mrb[0].mxu0
    %710 = vmatprep.mubr.f32.mxu0 0.0
    %711 = vmatmul.mubr.f32.gmra.mrb[0].mxu0 %v627
    %v712 = vpop.f32.mrb[0].mxu0
    %v713 = vadd.f32 0.0, %v712
    %v714 = vpop.f32.mrb[0].mxu0
    %715 = vdwg.mxu0
    %v716 = vsel %vm620, %v601, 0
    %v718 = vsel %vm620, %v594, 0
    %v720 = vsel %vm620, %v596, 0
    %v722 = vsel %vm620, %v598, 0
    %v724 = vsel %vm364, %v581, 0
    %726 = vmatprep.subr.mxu0 0.0
    %727 = vmatpush1.msra.mxu0 %v580
    %728 = vmatprep.subr.mxu0 0.0
    %729 = vmatpush1.msra.mxu0 %v724
    %730 = vmatprep.subr.mxu0 0.0
    %731 = vmatpush1.msra.mxu0 0.0
    %732 = vmatprep.subr.mxu0 0.0
    %733 = vmatpush1.msra.mxu0 0.0
    %734 = vmatprep.subr.mxu0 0.0
    %735 = vmatpush1.msra.mxu0 0.0
    %736 = vmatprep.subr.mxu0 0.0
    %737 = vmatpush1.msra.mxu0 0.0
    %738 = vmatprep.subr.mxu0 0.0
    %739 = vmatpush1.msra.mxu0 0.0
    %740 = vmatprep.subr.mxu0 0.0
    %741 = vmatpush1.msra.mxu0 0.0
    %742 = vmatprep.subr.mxu0 0.0
    %743 = vmatpush1.msra.mxu0 0.0
    %744 = vmatprep.subr.mxu0 0.0
    %745 = vmatpush1.msra.mxu0 0.0
    %746 = vmatprep.subr.mxu0 0.0
    %747 = vmatpush1.msra.mxu0 0.0
    %748 = vmatprep.subr.mxu0 0.0
    %749 = vmatpush1.msra.mxu0 0.0
    %750 = vmatprep.subr.mxu0 0.0
    %751 = vmatpush1.msra.mxu0 0.0
    %752 = vmatprep.subr.mxu0 0.0
    %753 = vmatpush1.msra.mxu0 0.0
    %754 = vmatprep.subr.mxu0 0.0
    %755 = vmatpush1.msra.mxu0 0.0
    %756 = vmatprep.subr.mxu0 0.0
    %757 = vmatpush1.msra.mxu0 0.0
    %758 = vmatprep.subr.mxu0 0.0
    %759 = vmatpush1.msra.mxu0 0.0
    %760 = vmatprep.subr.mxu0 0.0
    %761 = vmatpush1.msra.mxu0 0.0
    %762 = vmatprep.subr.mxu0 0.0
    %763 = vmatpush1.msra.mxu0 0.0
    %764 = vmatprep.subr.mxu0 0.0
    %765 = vmatpush1.msra.mxu0 0.0
    %766 = vmatprep.subr.mxu0 0.0
    %767 = vmatpush1.msra.mxu0 0.0
    %768 = vmatprep.subr.mxu0 0.0
    %769 = vmatpush1.msra.mxu0 0.0
    %770 = vmatprep.subr.mxu0 0.0
    %771 = vmatpush1.msra.mxu0 0.0
    %772 = vmatprep.subr.mxu0 0.0
    %773 = vmatpush1.msra.mxu0 0.0
    %774 = vmatprep.subr.mxu0 0.0
    %775 = vmatpush1.msra.mxu0 0.0
    %776 = vmatprep.subr.mxu0 0.0
    %777 = vmatpush1.msra.mxu0 0.0
    %778 = vmatprep.subr.mxu0 0.0
    %779 = vmatpush1.msra.mxu0 0.0
    %780 = vmatprep.subr.mxu0 0.0
    %781 = vmatpush1.msra.mxu0 0.0
    %782 = vmatprep.subr.mxu0 0.0
    %783 = vmatpush1.msra.mxu0 0.0
    %784 = vmatprep.subr.mxu0 0.0
    %785 = vmatpush1.msra.mxu0 0.0
    %786 = vmatprep.subr.mxu0 0.0
    %787 = vmatpush1.msra.mxu0 0.0
    %788 = vmatprep.subr.mxu0 0.0
    %789 = vmatpush1.msra.mxu0 0.0
    %790 = vmatprep.mubr.f32.mxu0 0.0
    %791 = vmatmul.mubr.f32.gmra.mrb[0].mxu0 %v716
    %v792 = vpop.f32.mrb[0].mxu0
    %v793 = vadd.f32 %v698, %v792
    %v794 = vpop.f32.mrb[0].mxu0
    %795 = vmatprep.mubr.f32.mxu0 0.0
    %796 = vmatmul.mubr.f32.gmra.mrb[0].mxu0 %v718
    %v797 = vpop.f32.mrb[0].mxu0
    %v798 = vadd.f32 %v703, %v797
    %v799 = vpop.f32.mrb[0].mxu0
    %800 = vmatprep.mubr.f32.mxu0 0.0
    %801 = vmatmul.mubr.f32.gmra.mrb[0].mxu0 %v720
    %v802 = vpop.f32.mrb[0].mxu0
    %v803 = vadd.f32 %v708, %v802
    %v804 = vpop.f32.mrb[0].mxu0
    %805 = vmatprep.mubr.f32.mxu0 0.0
    %806 = vmatmul.mubr.f32.gmra.mrb[0].mxu0 %v722
    %v807 = vpop.f32.mrb[0].mxu0
    %v808 = vadd.f32 %v713, %v807
    %v809 = vpop.f32.mrb[0].mxu0
    %810 = vdwg.mxu0
    %v811 = vrot.slane %v601, 4
    %v812 = vrot.slane %v594, 4
    %v813 = vsel %vm38, %v811, %v812
    %v814 = vrot.slane %v596, 4
    %v815 = vsel %vm38, %v812, %v814
    %v816 = vrot.slane %v598, 4
    %v817 = vsel %vm38, %v814, %v816
    %v818 = vrot.slane %v602, 4
    %v819 = vsel %vm38, %v816, %v818
    %v821 = vrot.slane %v582, 4
    %v822 = vrot.slane %v583, 4
    %v823 = vsel %vm38, %v821, %v822
    %v825 = vsel %vm620, %v813, 0
    %v827 = vsel %vm620, %v815, 0
    %v829 = vsel %vm620, %v817, 0
    %v831 = vsel %vm620, %v819, 0
    %v833 = vsel %vm364, %v822, 0
    %835 = vmatprep.subr.mxu0 0.0
    %836 = vmatpush1.msra.mxu0 %v823
    %837 = vmatprep.subr.mxu0 0.0
    %838 = vmatpush1.msra.mxu0 %v833
    %839 = vmatprep.subr.mxu0 0.0
    %840 = vmatpush1.msra.mxu0 0.0
    %841 = vmatprep.subr.mxu0 0.0
    %842 = vmatpush1.msra.mxu0 0.0
    %843 = vmatprep.subr.mxu0 0.0
    %844 = vmatpush1.msra.mxu0 0.0
    %845 = vmatprep.subr.mxu0 0.0
    %846 = vmatpush1.msra.mxu0 0.0
    %847 = vmatprep.subr.mxu0 0.0
    %848 = vmatpush1.msra.mxu0 0.0
    %849 = vmatprep.subr.mxu0 0.0
    %850 = vmatpush1.msra.mxu0 0.0
    %851 = vmatprep.subr.mxu0 0.0
    %852 = vmatpush1.msra.mxu0 0.0
    %853 = vmatprep.subr.mxu0 0.0
    %854 = vmatpush1.msra.mxu0 0.0
    %855 = vmatprep.subr.mxu0 0.0
    %856 = vmatpush1.msra.mxu0 0.0
    %857 = vmatprep.subr.mxu0 0.0
    %858 = vmatpush1.msra.mxu0 0.0
    %859 = vmatprep.subr.mxu0 0.0
    %860 = vmatpush1.msra.mxu0 0.0
    %861 = vmatprep.subr.mxu0 0.0
    %862 = vmatpush1.msra.mxu0 0.0
    %863 = vmatprep.subr.mxu0 0.0
    %864 = vmatpush1.msra.mxu0 0.0
    %865 = vmatprep.subr.mxu0 0.0
    %866 = vmatpush1.msra.mxu0 0.0
    %867 = vmatprep.subr.mxu0 0.0
    %868 = vmatpush1.msra.mxu0 0.0
    %869 = vmatprep.subr.mxu0 0.0
    %870 = vmatpush1.msra.mxu0 0.0
    %871 = vmatprep.subr.mxu0 0.0
    %872 = vmatpush1.msra.mxu0 0.0
    %873 = vmatprep.subr.mxu0 0.0
    %874 = vmatpush1.msra.mxu0 0.0
    %875 = vmatprep.subr.mxu0 0.0
    %876 = vmatpush1.msra.mxu0 0.0
    %877 = vmatprep.subr.mxu0 0.0
    %878 = vmatpush1.msra.mxu0 0.0
    %879 = vmatprep.subr.mxu0 0.0
    %880 = vmatpush1.msra.mxu0 0.0
    %881 = vmatprep.subr.mxu0 0.0
    %882 = vmatpush1.msra.mxu0 0.0
    %883 = vmatprep.subr.mxu0 0.0
    %884 = vmatpush1.msra.mxu0 0.0
    %885 = vmatprep.subr.mxu0 0.0
    %886 = vmatpush1.msra.mxu0 0.0
    %887 = vmatprep.subr.mxu0 0.0
    %888 = vmatpush1.msra.mxu0 0.0
    %889 = vmatprep.subr.mxu0 0.0
    %890 = vmatpush1.msra.mxu0 0.0
    %891 = vmatprep.subr.mxu0 0.0
    %892 = vmatpush1.msra.mxu0 0.0
    %893 = vmatprep.subr.mxu0 0.0
    %894 = vmatpush1.msra.mxu0 0.0
    %895 = vmatprep.subr.mxu0 0.0
    %896 = vmatpush1.msra.mxu0 0.0
    %897 = vmatprep.subr.mxu0 0.0
    %898 = vmatpush1.msra.mxu0 0.0
    %899 = vmatprep.mubr.f32.mxu0 0.0
    %900 = vmatmul.mubr.f32.gmra.mrb[0].mxu0 %v825
    %v901 = vpop.f32.mrb[0].mxu0
    %v902 = vadd.f32 0.0, %v901
    %v903 = vpop.f32.mrb[0].mxu0
    %904 = vmatprep.mubr.f32.mxu0 0.0
    %905 = vmatmul.mubr.f32.gmra.mrb[0].mxu0 %v827
    %v906 = vpop.f32.mrb[0].mxu0
    %v907 = vadd.f32 0.0, %v906
    %v908 = vpop.f32.mrb[0].mxu0
    %909 = vmatprep.mubr.f32.mxu0 0.0
    %910 = vmatmul.mubr.f32.gmra.mrb[0].mxu0 %v829
    %v911 = vpop.f32.mrb[0].mxu0
    %v912 = vadd.f32 0.0, %v911
    %v913 = vpop.f32.mrb[0].mxu0
    %914 = vmatprep.mubr.f32.mxu0 0.0
    %915 = vmatmul.mubr.f32.gmra.mrb[0].mxu0 %v831
    %v916 = vpop.f32.mrb[0].mxu0
    %v917 = vadd.f32 0.0, %v916
    %v918 = vpop.f32.mrb[0].mxu0
    %919 = vdwg.mxu0
    %v920 = vadd.f32 %v793, %v902
    %v921 = vadd.f32 %v798, %v907
    %v922 = vadd.f32 %v803, %v912
    %v923 = vadd.f32 %v808, %v917
    %v924 = vrot.slane %v601, 6
    %v925 = vrot.slane %v594, 6
    %v926 = vsel %vm364, %v924, %v925
    %v927 = vrot.slane %v596, 6
    %v928 = vsel %vm364, %v925, %v927
    %v929 = vrot.slane %v598, 6
    %v930 = vsel %vm364, %v927, %v929
    %v931 = vrot.slane %v602, 6
    %v932 = vsel %vm364, %v929, %v931
    %v934 = vrot.slane %v583, 6
    %v935 = vrot.slane %v584, 6
    %v936 = vsel %vm364, %v934, %v935
    %v938 = vsel %vm620, %v926, 0
    %v940 = vsel %vm620, %v928, 0
    %v942 = vsel %vm620, %v930, 0
    %v944 = vsel %vm620, %v932, 0
    %v946 = vsel %vm364, %v935, 0
    %948 = vmatprep.subr.mxu0 0.0
    %949 = vmatpush1.msra.mxu0 %v936
    %950 = vmatprep.subr.mxu0 0.0
    %951 = vmatpush1.msra.mxu0 %v946
    %952 = vmatprep.subr.mxu0 0.0
    %953 = vmatpush1.msra.mxu0 0.0
    %954 = vmatprep.subr.mxu0 0.0
    %955 = vmatpush1.msra.mxu0 0.0
    %956 = vmatprep.subr.mxu0 0.0
    %957 = vmatpush1.msra.mxu0 0.0
    %958 = vmatprep.subr.mxu0 0.0
    %959 = vmatpush1.msra.mxu0 0.0
    %960 = vmatprep.subr.mxu0 0.0
    %961 = vmatpush1.msra.mxu0 0.0
    %962 = vmatprep.subr.mxu0 0.0
    %963 = vmatpush1.msra.mxu0 0.0
    %964 = vmatprep.subr.mxu0 0.0
    %965 = vmatpush1.msra.mxu0 0.0
    %966 = vmatprep.subr.mxu0 0.0
    %967 = vmatpush1.msra.mxu0 0.0
    %968 = vmatprep.subr.mxu0 0.0
    %969 = vmatpush1.msra.mxu0 0.0
    %970 = vmatprep.subr.mxu0 0.0
    %971 = vmatpush1.msra.mxu0 0.0
    %972 = vmatprep.subr.mxu0 0.0
    %973 = vmatpush1.msra.mxu0 0.0
    %974 = vmatprep.subr.mxu0 0.0
    %975 = vmatpush1.msra.mxu0 0.0
    %976 = vmatprep.subr.mxu0 0.0
    %977 = vmatpush1.msra.mxu0 0.0
    %978 = vmatprep.subr.mxu0 0.0
    %979 = vmatpush1.msra.mxu0 0.0
    %980 = vmatprep.subr.mxu0 0.0
    %981 = vmatpush1.msra.mxu0 0.0
    %982 = vmatprep.subr.mxu0 0.0
    %983 = vmatpush1.msra.mxu0 0.0
    %984 = vmatprep.subr.mxu0 0.0
    %985 = vmatpush1.msra.mxu0 0.0
    %986 = vmatprep.subr.mxu0 0.0
    %987 = vmatpush1.msra.mxu0 0.0
    %988 = vmatprep.subr.mxu0 0.0
    %989 = vmatpush1.msra.mxu0 0.0
    %990 = vmatprep.subr.mxu0 0.0
    %991 = vmatpush1.msra.mxu0 0.0
    %992 = vmatprep.subr.mxu0 0.0
    %993 = vmatpush1.msra.mxu0 0.0
    %994 = vmatprep.subr.mxu0 0.0
    %995 = vmatpush1.msra.mxu0 0.0
    %996 = vmatprep.subr.mxu0 0.0
    %997 = vmatpush1.msra.mxu0 0.0
    %998 = vmatprep.subr.mxu0 0.0
    %999 = vmatpush1.msra.mxu0 0.0
    %1000 = vmatprep.subr.mxu0 0.0
    %1001 = vmatpush1.msra.mxu0 0.0
    %1002 = vmatprep.subr.mxu0 0.0
    %1003 = vmatpush1.msra.mxu0 0.0
    %1004 = vmatprep.subr.mxu0 0.0
    %1005 = vmatpush1.msra.mxu0 0.0
    %1006 = vmatprep.subr.mxu0 0.0
    %1007 = vmatpush1.msra.mxu0 0.0
    %1008 = vmatprep.subr.mxu0 0.0
    %1009 = vmatpush1.msra.mxu0 0.0
    %1010 = vmatprep.subr.mxu0 0.0
    %1011 = vmatpush1.msra.mxu0 0.0
    %1012 = vmatprep.mubr.f32.mxu0 0.0
    %1013 = vmatmul.mubr.f32.gmra.mrb[0].mxu0 %v938
    %v1014 = vpop.f32.mrb[0].mxu0
    %v1015 = vadd.f32 0.0, %v1014
    %v1016 = vpop.f32.mrb[0].mxu0
    %1017 = vmatprep.mubr.f32.mxu0 0.0
    %1018 = vmatmul.mubr.f32.gmra.mrb[0].mxu0 %v940
    %v1019 = vpop.f32.mrb[0].mxu0
    %v1020 = vadd.f32 0.0, %v1019
    %v1021 = vpop.f32.mrb[0].mxu0
    %1022 = vmatprep.mubr.f32.mxu0 0.0
    %1023 = vmatmul.mubr.f32.gmra.mrb[0].mxu0 %v942
    %v1024 = vpop.f32.mrb[0].mxu0
    %v1025 = vadd.f32 0.0, %v1024
    %v1026 = vpop.f32.mrb[0].mxu0
    %1027 = vmatprep.mubr.f32.mxu0 0.0
    %1028 = vmatmul.mubr.f32.gmra.mrb[0].mxu0 %v944
    %v1029 = vpop.f32.mrb[0].mxu0
    %v1030 = vadd.f32 0.0, %v1029
    %v1031 = vpop.f32.mrb[0].mxu0
    %1032 = vdwg.mxu0
    %v1033 = vadd.f32 %v920, %v1015
    %v1034 = vadd.f32 %v921, %v1020
    %v1035 = vadd.f32 %v922, %v1025
    %v1036 = vadd.f32 %v923, %v1030
    %v1037 = vsel %vm620, %v602, 0
    %v1040 = vsel %vm364, %v586, 0
    %1042 = vmatprep.subr.mxu0 0.0
    %1043 = vmatpush1.msra.mxu0 %v585
    %1044 = vmatprep.subr.mxu0 0.0
    %1045 = vmatpush1.msra.mxu0 %v1040
    %1046 = vmatprep.subr.mxu0 0.0
    %1047 = vmatpush1.msra.mxu0 0.0
    %1048 = vmatprep.subr.mxu0 0.0
    %1049 = vmatpush1.msra.mxu0 0.0
    %1050 = vmatprep.subr.mxu0 0.0
    %1051 = vmatpush1.msra.mxu0 0.0
    %1052 = vmatprep.subr.mxu0 0.0
    %1053 = vmatpush1.msra.mxu0 0.0
    %1054 = vmatprep.subr.mxu0 0.0
    %1055 = vmatpush1.msra.mxu0 0.0
    %1056 = vmatprep.subr.mxu0 0.0
    %1057 = vmatpush1.msra.mxu0 0.0
    %1058 = vmatprep.subr.mxu0 0.0
    %1059 = vmatpush1.msra.mxu0 0.0
    %1060 = vmatprep.subr.mxu0 0.0
    %1061 = vmatpush1.msra.mxu0 0.0
    %1062 = vmatprep.subr.mxu0 0.0
    %1063 = vmatpush1.msra.mxu0 0.0
    %1064 = vmatprep.subr.mxu0 0.0
    %1065 = vmatpush1.msra.mxu0 0.0
    %1066 = vmatprep.subr.mxu0 0.0
    %1067 = vmatpush1.msra.mxu0 0.0
    %1068 = vmatprep.subr.mxu0 0.0
    %1069 = vmatpush1.msra.mxu0 0.0
    %1070 = vmatprep.subr.mxu0 0.0
    %1071 = vmatpush1.msra.mxu0 0.0
    %1072 = vmatprep.subr.mxu0 0.0
    %1073 = vmatpush1.msra.mxu0 0.0
    %1074 = vmatprep.subr.mxu0 0.0
    %1075 = vmatpush1.msra.mxu0 0.0
    %1076 = vmatprep.subr.mxu0 0.0
    %1077 = vmatpush1.msra.mxu0 0.0
    %1078 = vmatprep.subr.mxu0 0.0
    %1079 = vmatpush1.msra.mxu0 0.0
    %1080 = vmatprep.subr.mxu0 0.0
    %1081 = vmatpush1.msra.mxu0 0.0
    %1082 = vmatprep.subr.mxu0 0.0
    %1083 = vmatpush1.msra.mxu0 0.0
    %1084 = vmatprep.subr.mxu0 0.0
    %1085 = vmatpush1.msra.mxu0 0.0
    %1086 = vmatprep.subr.mxu0 0.0
    %1087 = vmatpush1.msra.mxu0 0.0
    %1088 = vmatprep.subr.mxu0 0.0
    %1089 = vmatpush1.msra.mxu0 0.0
    %1090 = vmatprep.subr.mxu0 0.0
    %1091 = vmatpush1.msra.mxu0 0.0
    %1092 = vmatprep.subr.mxu0 0.0
    %1093 = vmatpush1.msra.mxu0 0.0
    %1094 = vmatprep.subr.mxu0 0.0
    %1095 = vmatpush1.msra.mxu0 0.0
    %1096 = vmatprep.subr.mxu0 0.0
    %1097 = vmatpush1.msra.mxu0 0.0
    %1098 = vmatprep.subr.mxu0 0.0
    %1099 = vmatpush1.msra.mxu0 0.0
    %1100 = vmatprep.subr.mxu0 0.0
    %1101 = vmatpush1.msra.mxu0 0.0
    %1102 = vmatprep.subr.mxu0 0.0
    %1103 = vmatpush1.msra.mxu0 0.0
    %1104 = vmatprep.subr.mxu0 0.0
    %1105 = vmatpush1.msra.mxu0 0.0
    %1106 = vmatprep.mubr.f32.mxu0 0.0
    %1107 = vmatmul.mubr.f32.gmra.mrb[0].mxu0 %v718
    %v1108 = vpop.f32.mrb[0].mxu0
    %v1109 = vadd.f32 0.0, %v1108
    %v1110 = vpop.f32.mrb[0].mxu0
    %1111 = vmatprep.mubr.f32.mxu0 0.0
    %1112 = vmatmul.mubr.f32.gmra.mrb[0].mxu0 %v720
    %v1113 = vpop.f32.mrb[0].mxu0
    %v1114 = vadd.f32 0.0, %v1113
    %v1115 = vpop.f32.mrb[0].mxu0
    %1116 = vmatprep.mubr.f32.mxu0 0.0
    %1117 = vmatmul.mubr.f32.gmra.mrb[0].mxu0 %v722
    %v1118 = vpop.f32.mrb[0].mxu0
    %v1119 = vadd.f32 0.0, %v1118
    %v1120 = vpop.f32.mrb[0].mxu0
    %1121 = vmatprep.mubr.f32.mxu0 0.0
    %1122 = vmatmul.mubr.f32.gmra.mrb[0].mxu0 %v1037
    %v1123 = vpop.f32.mrb[0].mxu0
    %v1124 = vadd.f32 0.0, %v1123
    %v1125 = vpop.f32.mrb[0].mxu0
    %1126 = vdwg.mxu0
    %v1127 = vadd.f32 %v1033, %v1109
    %v1128 = vadd.f32 %v1034, %v1114
    %v1129 = vadd.f32 %v1035, %v1119
    %v1130 = vadd.f32 %v1036, %v1124
    %v1131 = vlaneseq
    %v1132 = vshrl.u32 %v1131, 7
    %v1133 = vsub.s32 0, %v1132
    %v1134 = vrot.slane %v587, %v1133
    %v1135 = vadd.f32 %v1127, %v1134
    %v1136 = vadd.f32 %v1128, %v1134
    %v1137 = vadd.f32 %v1129, %v1134
    %v1138 = vadd.f32 %v1130, %v1134
    %v1139 = vmax.f32 %v1135, 0.0
    %v1140 = vmax.f32 %v1136, 0.0
    %v1141 = vmax.f32 %v1137, 0.0
    %v1142 = vmax.f32 %v1138, 0.0
    %v1143 = vld [vmem:[#allocation2 + $0x50] sm:$0xff]
    %v1144 = vld [vmem:[#allocation2 + $0x58] sm:$0xff]
    %v1145 = vld [vmem:[#allocation2 + $0x60] sm:$0xff]
    %v1146 = vld [vmem:[#allocation2 + $0x68] sm:$0xff]
    %v1147 = vld [vmem:[#allocation2 + $0x70] sm:$0xff]
    %v1148 = vld [vmem:[#allocation2 + $0x78] sm:$0xff]
    %v1149 = vld [vmem:[#allocation2 + $0x80] sm:$0x3]
    %v1150 = vld [vmem:[#allocation2 + $0x98] sm:$0x1]
    %v1155 = vrot.slane %v1139, 4
    %v1156 = vrot.slane %v1140, 4
    %v1157 = vsel %vm38, %v1155, %v1156
    %v1158 = vrot.slane %v1141, 4
    %v1159 = vsel %vm38, %v1156, %v1158
    %v1160 = vrot.slane %v1142, 4
    %v1161 = vsel %vm38, %v1158, %v1160
    %v1164 = vsel %vm38, 0.0, %v1155
    %v1165 = vsel %vm38, %v1160, 0.0
    %v1168 = vrot.slane %v1164, 2
    %v1169 = vrot.slane %v1157, 2
    %v1170 = vsel %vm52, %v1168, %v1169
    %v1171 = vrot.slane %v1159, 2
    %v1172 = vsel %vm52, %v1169, %v1171
    %v1173 = vrot.slane %v1161, 2
    %v1174 = vsel %vm52, %v1171, %v1173
    %v1175 = vrot.slane %v1165, 2
    %v1176 = vsel %vm52, %v1173, %v1175
    %v1179 = vrot.slane %v1144, 2
    %v1180 = vrot.slane %v1145, 2
    %v1181 = vsel %vm52, %v1179, %v1180
    %v1183 = vsel %vm620, %v1170, 0
    %v1185 = vsel %vm620, %v1172, 0
    %v1187 = vsel %vm620, %v1174, 0
    %v1189 = vsel %vm620, %v1176, 0
    %v1191 = vsel %vm364, %v1180, 0
    %1193 = vmatprep.subr.mxu0 0.0
    %1194 = vmatpush1.msra.mxu0 %v1181
    %1195 = vmatprep.subr.mxu0 0.0
    %1196 = vmatpush1.msra.mxu0 %v1191
    %1197 = vmatprep.subr.mxu0 0.0
    %1198 = vmatpush1.msra.mxu0 0.0
    %1199 = vmatprep.subr.mxu0 0.0
    %1200 = vmatpush1.msra.mxu0 0.0
    %1201 = vmatprep.subr.mxu0 0.0
    %1202 = vmatpush1.msra.mxu0 0.0
    %1203 = vmatprep.subr.mxu0 0.0
    %1204 = vmatpush1.msra.mxu0 0.0
    %1205 = vmatprep.subr.mxu0 0.0
    %1206 = vmatpush1.msra.mxu0 0.0
    %1207 = vmatprep.subr.mxu0 0.0
    %1208 = vmatpush1.msra.mxu0 0.0
    %1209 = vmatprep.subr.mxu0 0.0
    %1210 = vmatpush1.msra.mxu0 0.0
    %1211 = vmatprep.subr.mxu0 0.0
    %1212 = vmatpush1.msra.mxu0 0.0
    %1213 = vmatprep.subr.mxu0 0.0
    %1214 = vmatpush1.msra.mxu0 0.0
    %1215 = vmatprep.subr.mxu0 0.0
    %1216 = vmatpush1.msra.mxu0 0.0
    %1217 = vmatprep.subr.mxu0 0.0
    %1218 = vmatpush1.msra.mxu0 0.0
    %1219 = vmatprep.subr.mxu0 0.0
    %1220 = vmatpush1.msra.mxu0 0.0
    %1221 = vmatprep.subr.mxu0 0.0
    %1222 = vmatpush1.msra.mxu0 0.0
    %1223 = vmatprep.subr.mxu0 0.0
    %1224 = vmatpush1.msra.mxu0 0.0
    %1225 = vmatprep.subr.mxu0 0.0
    %1226 = vmatpush1.msra.mxu0 0.0
    %1227 = vmatprep.subr.mxu0 0.0
    %1228 = vmatpush1.msra.mxu0 0.0
    %1229 = vmatprep.subr.mxu0 0.0
    %1230 = vmatpush1.msra.mxu0 0.0
    %1231 = vmatprep.subr.mxu0 0.0
    %1232 = vmatpush1.msra.mxu0 0.0
    %1233 = vmatprep.subr.mxu0 0.0
    %1234 = vmatpush1.msra.mxu0 0.0
    %1235 = vmatprep.subr.mxu0 0.0
    %1236 = vmatpush1.msra.mxu0 0.0
    %1237 = vmatprep.subr.mxu0 0.0
    %1238 = vmatpush1.msra.mxu0 0.0
    %1239 = vmatprep.subr.mxu0 0.0
    %1240 = vmatpush1.msra.mxu0 0.0
    %1241 = vmatprep.subr.mxu0 0.0
    %1242 = vmatpush1.msra.mxu0 0.0
    %1243 = vmatprep.subr.mxu0 0.0
    %1244 = vmatpush1.msra.mxu0 0.0
    %1245 = vmatprep.subr.mxu0 0.0
    %1246 = vmatpush1.msra.mxu0 0.0
    %1247 = vmatprep.subr.mxu0 0.0
    %1248 = vmatpush1.msra.mxu0 0.0
    %1249 = vmatprep.subr.mxu0 0.0
    %1250 = vmatpush1.msra.mxu0 0.0
    %1251 = vmatprep.subr.mxu0 0.0
    %1252 = vmatpush1.msra.mxu0 0.0
    %1253 = vmatprep.subr.mxu0 0.0
    %1254 = vmatpush1.msra.mxu0 0.0
    %1255 = vmatprep.subr.mxu0 0.0
    %1256 = vmatpush1.msra.mxu0 0.0
    %1257 = vmatprep.mubr.f32.mxu0 0.0
    %1258 = vmatmul.mubr.f32.gmra.mrb[0].mxu0 %v1183
    %v1259 = vpop.f32.mrb[0].mxu0
    %v1260 = vadd.f32 0.0, %v1259
    %v1261 = vpop.f32.mrb[0].mxu0
    %1262 = vmatprep.mubr.f32.mxu0 0.0
    %1263 = vmatmul.mubr.f32.gmra.mrb[0].mxu0 %v1185
    %v1264 = vpop.f32.mrb[0].mxu0
    %v1265 = vadd.f32 0.0, %v1264
    %v1266 = vpop.f32.mrb[0].mxu0
    %1267 = vmatprep.mubr.f32.mxu0 0.0
    %1268 = vmatmul.mubr.f32.gmra.mrb[0].mxu0 %v1187
    %v1269 = vpop.f32.mrb[0].mxu0
    %v1270 = vadd.f32 0.0, %v1269
    %v1271 = vpop.f32.mrb[0].mxu0
    %1272 = vmatprep.mubr.f32.mxu0 0.0
    %1273 = vmatmul.mubr.f32.gmra.mrb[0].mxu0 %v1189
    %v1274 = vpop.f32.mrb[0].mxu0
    %v1275 = vadd.f32 0.0, %v1274
    %v1276 = vpop.f32.mrb[0].mxu0
    %1277 = vdwg.mxu0
    %v1278 = vsel %vm620, %v1164, 0
    %v1280 = vsel %vm620, %v1157, 0
    %v1282 = vsel %vm620, %v1159, 0
    %v1284 = vsel %vm620, %v1161, 0
    %v1286 = vsel %vm364, %v1144, 0
    %1288 = vmatprep.subr.mxu0 0.0
    %1289 = vmatpush1.msra.mxu0 %v1143
    %1290 = vmatprep.subr.mxu0 0.0
    %1291 = vmatpush1.msra.mxu0 %v1286
    %1292 = vmatprep.subr.mxu0 0.0
    %1293 = vmatpush1.msra.mxu0 0.0
    %1294 = vmatprep.subr.mxu0 0.0
    %1295 = vmatpush1.msra.mxu0 0.0
    %1296 = vmatprep.subr.mxu0 0.0
    %1297 = vmatpush1.msra.mxu0 0.0
    %1298 = vmatprep.subr.mxu0 0.0
    %1299 = vmatpush1.msra.mxu0 0.0
    %1300 = vmatprep.subr.mxu0 0.0
    %1301 = vmatpush1.msra.mxu0 0.0
    %1302 = vmatprep.subr.mxu0 0.0
    %1303 = vmatpush1.msra.mxu0 0.0
    %1304 = vmatprep.subr.mxu0 0.0
    %1305 = vmatpush1.msra.mxu0 0.0
    %1306 = vmatprep.subr.mxu0 0.0
    %1307 = vmatpush1.msra.mxu0 0.0
    %1308 = vmatprep.subr.mxu0 0.0
    %1309 = vmatpush1.msra.mxu0 0.0
    %1310 = vmatprep.subr.mxu0 0.0
    %1311 = vmatpush1.msra.mxu0 0.0
    %1312 = vmatprep.subr.mxu0 0.0
    %1313 = vmatpush1.msra.mxu0 0.0
    %1314 = vmatprep.subr.mxu0 0.0
    %1315 = vmatpush1.msra.mxu0 0.0
    %1316 = vmatprep.subr.mxu0 0.0
    %1317 = vmatpush1.msra.mxu0 0.0
    %1318 = vmatprep.subr.mxu0 0.0
    %1319 = vmatpush1.msra.mxu0 0.0
    %1320 = vmatprep.subr.mxu0 0.0
    %1321 = vmatpush1.msra.mxu0 0.0
    %1322 = vmatprep.subr.mxu0 0.0
    %1323 = vmatpush1.msra.mxu0 0.0
    %1324 = vmatprep.subr.mxu0 0.0
    %1325 = vmatpush1.msra.mxu0 0.0
    %1326 = vmatprep.subr.mxu0 0.0
    %1327 = vmatpush1.msra.mxu0 0.0
    %1328 = vmatprep.subr.mxu0 0.0
    %1329 = vmatpush1.msra.mxu0 0.0
    %1330 = vmatprep.subr.mxu0 0.0
    %1331 = vmatpush1.msra.mxu0 0.0
    %1332 = vmatprep.subr.mxu0 0.0
    %1333 = vmatpush1.msra.mxu0 0.0
    %1334 = vmatprep.subr.mxu0 0.0
    %1335 = vmatpush1.msra.mxu0 0.0
    %1336 = vmatprep.subr.mxu0 0.0
    %1337 = vmatpush1.msra.mxu0 0.0
    %1338 = vmatprep.subr.mxu0 0.0
    %1339 = vmatpush1.msra.mxu0 0.0
    %1340 = vmatprep.subr.mxu0 0.0
    %1341 = vmatpush1.msra.mxu0 0.0
    %1342 = vmatprep.subr.mxu0 0.0
    %1343 = vmatpush1.msra.mxu0 0.0
    %1344 = vmatprep.subr.mxu0 0.0
    %1345 = vmatpush1.msra.mxu0 0.0
    %1346 = vmatprep.subr.mxu0 0.0
    %1347 = vmatpush1.msra.mxu0 0.0
    %1348 = vmatprep.subr.mxu0 0.0
    %1349 = vmatpush1.msra.mxu0 0.0
    %1350 = vmatprep.subr.mxu0 0.0
    %1351 = vmatpush1.msra.mxu0 0.0
    %1352 = vmatprep.mubr.f32.mxu0 0.0
    %1353 = vmatmul.mubr.f32.gmra.mrb[0].mxu0 %v1278
    %v1354 = vpop.f32.mrb[0].mxu0
    %v1355 = vadd.f32 %v1260, %v1354
    %v1356 = vpop.f32.mrb[0].mxu0
    %1357 = vmatprep.mubr.f32.mxu0 0.0
    %1358 = vmatmul.mubr.f32.gmra.mrb[0].mxu0 %v1280
    %v1359 = vpop.f32.mrb[0].mxu0
    %v1360 = vadd.f32 %v1265, %v1359
    %v1361 = vpop.f32.mrb[0].mxu0
    %1362 = vmatprep.mubr.f32.mxu0 0.0
    %1363 = vmatmul.mubr.f32.gmra.mrb[0].mxu0 %v1282
    %v1364 = vpop.f32.mrb[0].mxu0
    %v1365 = vadd.f32 %v1270, %v1364
    %v1366 = vpop.f32.mrb[0].mxu0
    %1367 = vmatprep.mubr.f32.mxu0 0.0
    %1368 = vmatmul.mubr.f32.gmra.mrb[0].mxu0 %v1284
    %v1369 = vpop.f32.mrb[0].mxu0
    %v1370 = vadd.f32 %v1275, %v1369
    %v1371 = vpop.f32.mrb[0].mxu0
    %1372 = vdwg.mxu0
    %v1373 = vrot.slane %v1164, 4
    %v1374 = vrot.slane %v1157, 4
    %v1375 = vsel %vm38, %v1373, %v1374
    %v1376 = vrot.slane %v1159, 4
    %v1377 = vsel %vm38, %v1374, %v1376
    %v1378 = vrot.slane %v1161, 4
    %v1379 = vsel %vm38, %v1376, %v1378
    %v1380 = vrot.slane %v1165, 4
    %v1381 = vsel %vm38, %v1378, %v1380
    %v1383 = vrot.slane %v1145, 4
    %v1384 = vrot.slane %v1146, 4
    %v1385 = vsel %vm38, %v1383, %v1384
    %v1387 = vsel %vm620, %v1375, 0
    %v1389 = vsel %vm620, %v1377, 0
    %v1391 = vsel %vm620, %v1379, 0
    %v1393 = vsel %vm620, %v1381, 0
    %v1395 = vsel %vm364, %v1384, 0
    %1397 = vmatprep.subr.mxu0 0.0
    %1398 = vmatpush1.msra.mxu0 %v1385
    %1399 = vmatprep.subr.mxu0 0.0
    %1400 = vmatpush1.msra.mxu0 %v1395
    %1401 = vmatprep.subr.mxu0 0.0
    %1402 = vmatpush1.msra.mxu0 0.0
    %1403 = vmatprep.subr.mxu0 0.0
    %1404 = vmatpush1.msra.mxu0 0.0
    %1405 = vmatprep.subr.mxu0 0.0
    %1406 = vmatpush1.msra.mxu0 0.0
    %1407 = vmatprep.subr.mxu0 0.0
    %1408 = vmatpush1.msra.mxu0 0.0
    %1409 = vmatprep.subr.mxu0 0.0
    %1410 = vmatpush1.msra.mxu0 0.0
    %1411 = vmatprep.subr.mxu0 0.0
    %1412 = vmatpush1.msra.mxu0 0.0
    %1413 = vmatprep.subr.mxu0 0.0
    %1414 = vmatpush1.msra.mxu0 0.0
    %1415 = vmatprep.subr.mxu0 0.0
    %1416 = vmatpush1.msra.mxu0 0.0
    %1417 = vmatprep.subr.mxu0 0.0
    %1418 = vmatpush1.msra.mxu0 0.0
    %1419 = vmatprep.subr.mxu0 0.0
    %1420 = vmatpush1.msra.mxu0 0.0
    %1421 = vmatprep.subr.mxu0 0.0
    %1422 = vmatpush1.msra.mxu0 0.0
    %1423 = vmatprep.subr.mxu0 0.0
    %1424 = vmatpush1.msra.mxu0 0.0
    %1425 = vmatprep.subr.mxu0 0.0
    %1426 = vmatpush1.msra.mxu0 0.0
    %1427 = vmatprep.subr.mxu0 0.0
    %1428 = vmatpush1.msra.mxu0 0.0
    %1429 = vmatprep.subr.mxu0 0.0
    %1430 = vmatpush1.msra.mxu0 0.0
    %1431 = vmatprep.subr.mxu0 0.0
    %1432 = vmatpush1.msra.mxu0 0.0
    %1433 = vmatprep.subr.mxu0 0.0
    %1434 = vmatpush1.msra.mxu0 0.0
    %1435 = vmatprep.subr.mxu0 0.0
    %1436 = vmatpush1.msra.mxu0 0.0
    %1437 = vmatprep.subr.mxu0 0.0
    %1438 = vmatpush1.msra.mxu0 0.0
    %1439 = vmatprep.subr.mxu0 0.0
    %1440 = vmatpush1.msra.mxu0 0.0
    %1441 = vmatprep.subr.mxu0 0.0
    %1442 = vmatpush1.msra.mxu0 0.0
    %1443 = vmatprep.subr.mxu0 0.0
    %1444 = vmatpush1.msra.mxu0 0.0
    %1445 = vmatprep.subr.mxu0 0.0
    %1446 = vmatpush1.msra.mxu0 0.0
    %1447 = vmatprep.subr.mxu0 0.0
    %1448 = vmatpush1.msra.mxu0 0.0
    %1449 = vmatprep.subr.mxu0 0.0
    %1450 = vmatpush1.msra.mxu0 0.0
    %1451 = vmatprep.subr.mxu0 0.0
    %1452 = vmatpush1.msra.mxu0 0.0
    %1453 = vmatprep.subr.mxu0 0.0
    %1454 = vmatpush1.msra.mxu0 0.0
    %1455 = vmatprep.subr.mxu0 0.0
    %1456 = vmatpush1.msra.mxu0 0.0
    %1457 = vmatprep.subr.mxu0 0.0
    %1458 = vmatpush1.msra.mxu0 0.0
    %1459 = vmatprep.subr.mxu0 0.0
    %1460 = vmatpush1.msra.mxu0 0.0
    %1461 = vmatprep.mubr.f32.mxu0 0.0
    %1462 = vmatmul.mubr.f32.gmra.mrb[0].mxu0 %v1387
    %v1463 = vpop.f32.mrb[0].mxu0
    %v1464 = vadd.f32 0.0, %v1463
    %v1465 = vpop.f32.mrb[0].mxu0
    %1466 = vmatprep.mubr.f32.mxu0 0.0
    %1467 = vmatmul.mubr.f32.gmra.mrb[0].mxu0 %v1389
    %v1468 = vpop.f32.mrb[0].mxu0
    %v1469 = vadd.f32 0.0, %v1468
    %v1470 = vpop.f32.mrb[0].mxu0
    %1471 = vmatprep.mubr.f32.mxu0 0.0
    %1472 = vmatmul.mubr.f32.gmra.mrb[0].mxu0 %v1391
    %v1473 = vpop.f32.mrb[0].mxu0
    %v1474 = vadd.f32 0.0, %v1473
    %v1475 = vpop.f32.mrb[0].mxu0
    %1476 = vmatprep.mubr.f32.mxu0 0.0
    %1477 = vmatmul.mubr.f32.gmra.mrb[0].mxu0 %v1393
    %v1478 = vpop.f32.mrb[0].mxu0
    %v1479 = vadd.f32 0.0, %v1478
    %v1480 = vpop.f32.mrb[0].mxu0
    %1481 = vdwg.mxu0
    %v1482 = vadd.f32 %v1355, %v1464
    %v1483 = vadd.f32 %v1360, %v1469
    %v1484 = vadd.f32 %v1365, %v1474
    %v1485 = vadd.f32 %v1370, %v1479
    %v1486 = vrot.slane %v1164, 6
    %v1487 = vrot.slane %v1157, 6
    %v1488 = vsel %vm364, %v1486, %v1487
    %v1489 = vrot.slane %v1159, 6
    %v1490 = vsel %vm364, %v1487, %v1489
    %v1491 = vrot.slane %v1161, 6
    %v1492 = vsel %vm364, %v1489, %v1491
    %v1493 = vrot.slane %v1165, 6
    %v1494 = vsel %vm364, %v1491, %v1493
    %v1496 = vrot.slane %v1146, 6
    %v1497 = vrot.slane %v1147, 6
    %v1498 = vsel %vm364, %v1496, %v1497
    %v1500 = vsel %vm620, %v1488, 0
    %v1502 = vsel %vm620, %v1490, 0
    %v1504 = vsel %vm620, %v1492, 0
    %v1506 = vsel %vm620, %v1494, 0
    %v1508 = vsel %vm364, %v1497, 0
    %1510 = vmatprep.subr.mxu0 0.0
    %1511 = vmatpush1.msra.mxu0 %v1498
    %1512 = vmatprep.subr.mxu0 0.0
    %1513 = vmatpush1.msra.mxu0 %v1508
    %1514 = vmatprep.subr.mxu0 0.0
    %1515 = vmatpush1.msra.mxu0 0.0
    %1516 = vmatprep.subr.mxu0 0.0
    %1517 = vmatpush1.msra.mxu0 0.0
    %1518 = vmatprep.subr.mxu0 0.0
    %1519 = vmatpush1.msra.mxu0 0.0
    %1520 = vmatprep.subr.mxu0 0.0
    %1521 = vmatpush1.msra.mxu0 0.0
    %1522 = vmatprep.subr.mxu0 0.0
    %1523 = vmatpush1.msra.mxu0 0.0
    %1524 = vmatprep.subr.mxu0 0.0
    %1525 = vmatpush1.msra.mxu0 0.0
    %1526 = vmatprep.subr.mxu0 0.0
    %1527 = vmatpush1.msra.mxu0 0.0
    %1528 = vmatprep.subr.mxu0 0.0
    %1529 = vmatpush1.msra.mxu0 0.0
    %1530 = vmatprep.subr.mxu0 0.0
    %1531 = vmatpush1.msra.mxu0 0.0
    %1532 = vmatprep.subr.mxu0 0.0
    %1533 = vmatpush1.msra.mxu0 0.0
    %1534 = vmatprep.subr.mxu0 0.0
    %1535 = vmatpush1.msra.mxu0 0.0
    %1536 = vmatprep.subr.mxu0 0.0
    %1537 = vmatpush1.msra.mxu0 0.0
    %1538 = vmatprep.subr.mxu0 0.0
    %1539 = vmatpush1.msra.mxu0 0.0
    %1540 = vmatprep.subr.mxu0 0.0
    %1541 = vmatpush1.msra.mxu0 0.0
    %1542 = vmatprep.subr.mxu0 0.0
    %1543 = vmatpush1.msra.mxu0 0.0
    %1544 = vmatprep.subr.mxu0 0.0
    %1545 = vmatpush1.msra.mxu0 0.0
    %1546 = vmatprep.subr.mxu0 0.0
    %1547 = vmatpush1.msra.mxu0 0.0
    %1548 = vmatprep.subr.mxu0 0.0
    %1549 = vmatpush1.msra.mxu0 0.0
    %1550 = vmatprep.subr.mxu0 0.0
    %1551 = vmatpush1.msra.mxu0 0.0
    %1552 = vmatprep.subr.mxu0 0.0
    %1553 = vmatpush1.msra.mxu0 0.0
    %1554 = vmatprep.subr.mxu0 0.0
    %1555 = vmatpush1.msra.mxu0 0.0
    %1556 = vmatprep.subr.mxu0 0.0
    %1557 = vmatpush1.msra.mxu0 0.0
    %1558 = vmatprep.subr.mxu0 0.0
    %1559 = vmatpush1.msra.mxu0 0.0
    %1560 = vmatprep.subr.mxu0 0.0
    %1561 = vmatpush1.msra.mxu0 0.0
    %1562 = vmatprep.subr.mxu0 0.0
    %1563 = vmatpush1.msra.mxu0 0.0
    %1564 = vmatprep.subr.mxu0 0.0
    %1565 = vmatpush1.msra.mxu0 0.0
    %1566 = vmatprep.subr.mxu0 0.0
    %1567 = vmatpush1.msra.mxu0 0.0
    %1568 = vmatprep.subr.mxu0 0.0
    %1569 = vmatpush1.msra.mxu0 0.0
    %1570 = vmatprep.subr.mxu0 0.0
    %1571 = vmatpush1.msra.mxu0 0.0
    %1572 = vmatprep.subr.mxu0 0.0
    %1573 = vmatpush1.msra.mxu0 0.0
    %1574 = vmatprep.mubr.f32.mxu0 0.0
    %1575 = vmatmul.mubr.f32.gmra.mrb[0].mxu0 %v1500
    %v1576 = vpop.f32.mrb[0].mxu0
    %v1577 = vadd.f32 0.0, %v1576
    %v1578 = vpop.f32.mrb[0].mxu0
    %1579 = vmatprep.mubr.f32.mxu0 0.0
    %1580 = vmatmul.mubr.f32.gmra.mrb[0].mxu0 %v1502
    %v1581 = vpop.f32.mrb[0].mxu0
    %v1582 = vadd.f32 0.0, %v1581
    %v1583 = vpop.f32.mrb[0].mxu0
    %1584 = vmatprep.mubr.f32.mxu0 0.0
    %1585 = vmatmul.mubr.f32.gmra.mrb[0].mxu0 %v1504
    %v1586 = vpop.f32.mrb[0].mxu0
    %v1587 = vadd.f32 0.0, %v1586
    %v1588 = vpop.f32.mrb[0].mxu0
    %1589 = vmatprep.mubr.f32.mxu0 0.0
    %1590 = vmatmul.mubr.f32.gmra.mrb[0].mxu0 %v1506
    %v1591 = vpop.f32.mrb[0].mxu0
    %v1592 = vadd.f32 0.0, %v1591
    %v1593 = vpop.f32.mrb[0].mxu0
    %1594 = vdwg.mxu0
    %v1595 = vadd.f32 %v1482, %v1577
    %v1596 = vadd.f32 %v1483, %v1582
    %v1597 = vadd.f32 %v1484, %v1587
    %v1598 = vadd.f32 %v1485, %v1592
    %v1599 = vsel %vm620, %v1165, 0
    %v1602 = vsel %vm364, %v1149, 0
    %1604 = vmatprep.subr.mxu0 0.0
    %1605 = vmatpush1.msra.mxu0 %v1148
    %1606 = vmatprep.subr.mxu0 0.0
    %1607 = vmatpush1.msra.mxu0 %v1602
    %1608 = vmatprep.subr.mxu0 0.0
    %1609 = vmatpush1.msra.mxu0 0.0
    %1610 = vmatprep.subr.mxu0 0.0
    %1611 = vmatpush1.msra.mxu0 0.0
    %1612 = vmatprep.subr.mxu0 0.0
    %1613 = vmatpush1.msra.mxu0 0.0
    %1614 = vmatprep.subr.mxu0 0.0
    %1615 = vmatpush1.msra.mxu0 0.0
    %1616 = vmatprep.subr.mxu0 0.0
    %1617 = vmatpush1.msra.mxu0 0.0
    %1618 = vmatprep.subr.mxu0 0.0
    %1619 = vmatpush1.msra.mxu0 0.0
    %1620 = vmatprep.subr.mxu0 0.0
    %1621 = vmatpush1.msra.mxu0 0.0
    %1622 = vmatprep.subr.mxu0 0.0
    %1623 = vmatpush1.msra.mxu0 0.0
    %1624 = vmatprep.subr.mxu0 0.0
    %1625 = vmatpush1.msra.mxu0 0.0
    %1626 = vmatprep.subr.mxu0 0.0
    %1627 = vmatpush1.msra.mxu0 0.0
    %1628 = vmatprep.subr.mxu0 0.0
    %1629 = vmatpush1.msra.mxu0 0.0
    %1630 = vmatprep.subr.mxu0 0.0
    %1631 = vmatpush1.msra.mxu0 0.0
    %1632 = vmatprep.subr.mxu0 0.0
    %1633 = vmatpush1.msra.mxu0 0.0
    %1634 = vmatprep.subr.mxu0 0.0
    %1635 = vmatpush1.msra.mxu0 0.0
    %1636 = vmatprep.subr.mxu0 0.0
    %1637 = vmatpush1.msra.mxu0 0.0
    %1638 = vmatprep.subr.mxu0 0.0
    %1639 = vmatpush1.msra.mxu0 0.0
    %1640 = vmatprep.subr.mxu0 0.0
    %1641 = vmatpush1.msra.mxu0 0.0
    %1642 = vmatprep.subr.mxu0 0.0
    %1643 = vmatpush1.msra.mxu0 0.0
    %1644 = vmatprep.subr.mxu0 0.0
    %1645 = vmatpush1.msra.mxu0 0.0
    %1646 = vmatprep.subr.mxu0 0.0
    %1647 = vmatpush1.msra.mxu0 0.0
    %1648 = vmatprep.subr.mxu0 0.0
    %1649 = vmatpush1.msra.mxu0 0.0
    %1650 = vmatprep.subr.mxu0 0.0
    %1651 = vmatpush1.msra.mxu0 0.0
    %1652 = vmatprep.subr.mxu0 0.0
    %1653 = vmatpush1.msra.mxu0 0.0
    %1654 = vmatprep.subr.mxu0 0.0
    %1655 = vmatpush1.msra.mxu0 0.0
    %1656 = vmatprep.subr.mxu0 0.0
    %1657 = vmatpush1.msra.mxu0 0.0
    %1658 = vmatprep.subr.mxu0 0.0
    %1659 = vmatpush1.msra.mxu0 0.0
    %1660 = vmatprep.subr.mxu0 0.0
    %1661 = vmatpush1.msra.mxu0 0.0
    %1662 = vmatprep.subr.mxu0 0.0
    %1663 = vmatpush1.msra.mxu0 0.0
    %1664 = vmatprep.subr.mxu0 0.0
    %1665 = vmatpush1.msra.mxu0 0.0
    %1666 = vmatprep.subr.mxu0 0.0
    %1667 = vmatpush1.msra.mxu0 0.0
    %1668 = vmatprep.mubr.f32.mxu0 0.0
    %1669 = vmatmul.mubr.f32.gmra.mrb[0].mxu0 %v1280
    %v1670 = vpop.f32.mrb[0].mxu0
    %v1671 = vadd.f32 0.0, %v1670
    %v1672 = vpop.f32.mrb[0].mxu0
    %1673 = vmatprep.mubr.f32.mxu0 0.0
    %1674 = vmatmul.mubr.f32.gmra.mrb[0].mxu0 %v1282
    %v1675 = vpop.f32.mrb[0].mxu0
    %v1676 = vadd.f32 0.0, %v1675
    %v1677 = vpop.f32.mrb[0].mxu0
    %1678 = vmatprep.mubr.f32.mxu0 0.0
    %1679 = vmatmul.mubr.f32.gmra.mrb[0].mxu0 %v1284
    %v1680 = vpop.f32.mrb[0].mxu0
    %v1681 = vadd.f32 0.0, %v1680
    %v1682 = vpop.f32.mrb[0].mxu0
    %1683 = vmatprep.mubr.f32.mxu0 0.0
    %1684 = vmatmul.mubr.f32.gmra.mrb[0].mxu0 %v1599
    %v1685 = vpop.f32.mrb[0].mxu0
    %v1686 = vadd.f32 0.0, %v1685
    %v1687 = vpop.f32.mrb[0].mxu0
    %1688 = vdwg.mxu0
    %v1689 = vadd.f32 %v1595, %v1671
    %v1690 = vadd.f32 %v1596, %v1676
    %v1691 = vadd.f32 %v1597, %v1681
    %v1692 = vadd.f32 %v1598, %v1686
    %v1693 = vlaneseq
    %v1694 = vshrl.u32 %v1693, 7
    %v1695 = vsub.s32 0, %v1694
    %v1696 = vrot.slane %v1150, %v1695
    %v1697 = vadd.f32 %v1689, %v1696
    %v1698 = vadd.f32 %v1690, %v1696
    %v1699 = vadd.f32 %v1691, %v1696
    %v1700 = vadd.f32 %v1692, %v1696
    %v1701 = vmax.f32 %v1697, 0.0
    %v1702 = vmax.f32 %v1698, 0.0
    %v1703 = vmax.f32 %v1699, 0.0
    %v1704 = vmax.f32 %v1700, 0.0
    %v1705 = vld [vmem:[#allocation2 + $0xa0] sm:$0xff]
    %v1706 = vld [vmem:[#allocation2 + $0xa8] sm:$0xff]
    %v1707 = vld [vmem:[#allocation2 + $0xb0] sm:$0xf]
    %v1708 = vld [vmem:[#allocation2 + $0xb4] sm:$0xff]
    %v1709 = vld [vmem:[#allocation2 + $0xbc] sm:$0xff]
    %v1710 = vld [vmem:[#allocation2 + $0xc4] sm:$0xf]
    %v1712 = vrot.slane %v1701, 2
    %vm1713 = vcmask 162816
    %v1714 = vsel %vm1713, %v1712, 0
    %v1717 = vsel %vm38, %v1710, 0
    %1719 = vmatprep.subr.mxu0 0.0
    %1720 = vmatpush1.msra.mxu0 %v1708
    %1721 = vmatprep.subr.mxu0 0.0
    %1722 = vmatpush1.msra.mxu0 %v1709
    %1723 = vmatprep.subr.mxu0 0.0
    %1724 = vmatpush1.msra.mxu0 %v1717
    %1725 = vmatprep.subr.mxu0 0.0
    %1726 = vmatpush1.msra.mxu0 0.0
    %1727 = vmatprep.subr.mxu0 0.0
    %1728 = vmatpush1.msra.mxu0 0.0
    %1729 = vmatprep.subr.mxu0 0.0
    %1730 = vmatpush1.msra.mxu0 0.0
    %1731 = vmatprep.subr.mxu0 0.0
    %1732 = vmatpush1.msra.mxu0 0.0
    %1733 = vmatprep.subr.mxu0 0.0
    %1734 = vmatpush1.msra.mxu0 0.0
    %1735 = vmatprep.subr.mxu0 0.0
    %1736 = vmatpush1.msra.mxu0 0.0
    %1737 = vmatprep.subr.mxu0 0.0
    %1738 = vmatpush1.msra.mxu0 0.0
    %1739 = vmatprep.subr.mxu0 0.0
    %1740 = vmatpush1.msra.mxu0 0.0
    %1741 = vmatprep.subr.mxu0 0.0
    %1742 = vmatpush1.msra.mxu0 0.0
    %1743 = vmatprep.subr.mxu0 0.0
    %1744 = vmatpush1.msra.mxu0 0.0
    %1745 = vmatprep.subr.mxu0 0.0
    %1746 = vmatpush1.msra.mxu0 0.0
    %1747 = vmatprep.subr.mxu0 0.0
    %1748 = vmatpush1.msra.mxu0 0.0
    %1749 = vmatprep.subr.mxu0 0.0
    %1750 = vmatpush1.msra.mxu0 0.0
    %1751 = vmatprep.subr.mxu0 0.0
    %1752 = vmatpush1.msra.mxu0 0.0
    %1753 = vmatprep.subr.mxu0 0.0
    %1754 = vmatpush1.msra.mxu0 0.0
    %1755 = vmatprep.subr.mxu0 0.0
    %1756 = vmatpush1.msra.mxu0 0.0
    %1757 = vmatprep.subr.mxu0 0.0
    %1758 = vmatpush1.msra.mxu0 0.0
    %1759 = vmatprep.subr.mxu0 0.0
    %1760 = vmatpush1.msra.mxu0 0.0
    %1761 = vmatprep.subr.mxu0 0.0
    %1762 = vmatpush1.msra.mxu0 0.0
    %1763 = vmatprep.subr.mxu0 0.0
    %1764 = vmatpush1.msra.mxu0 0.0
    %1765 = vmatprep.subr.mxu0 0.0
    %1766 = vmatpush1.msra.mxu0 0.0
    %1767 = vmatprep.subr.mxu0 0.0
    %1768 = vmatpush1.msra.mxu0 0.0
    %1769 = vmatprep.subr.mxu0 0.0
    %1770 = vmatpush1.msra.mxu0 0.0
    %1771 = vmatprep.subr.mxu0 0.0
    %1772 = vmatpush1.msra.mxu0 0.0
    %1773 = vmatprep.subr.mxu0 0.0
    %1774 = vmatpush1.msra.mxu0 0.0
    %1775 = vmatprep.subr.mxu0 0.0
    %1776 = vmatpush1.msra.mxu0 0.0
    %1777 = vmatprep.subr.mxu0 0.0
    %1778 = vmatpush1.msra.mxu0 0.0
    %1779 = vmatprep.subr.mxu0 0.0
    %1780 = vmatpush1.msra.mxu0 0.0
    %1781 = vmatprep.subr.mxu0 0.0
    %1782 = vmatpush1.msra.mxu0 0.0
    %1783 = vmatprep.mubr.f32.mxu0 0.0
    %1784 = vmatmul.mubr.f32.gmra.mrb[0].mxu0 %v1714
    %v1785 = vpop.f32.mrb[0].mxu0
    %v1786 = vadd.f32 0.0, %v1785
    %v1787 = vpop.f32.mrb[0].mxu0
    %1788 = vdwg.mxu0
    %v1789 = vsel %vm1713, %v1701, 0
    %v1792 = vsel %vm38, %v1707, 0
    %1794 = vmatprep.subr.mxu0 0.0
    %1795 = vmatpush1.msra.mxu0 %v1705
    %1796 = vmatprep.subr.mxu0 0.0
    %1797 = vmatpush1.msra.mxu0 %v1706
    %1798 = vmatprep.subr.mxu0 0.0
    %1799 = vmatpush1.msra.mxu0 %v1792
    %1800 = vmatprep.subr.mxu0 0.0
    %1801 = vmatpush1.msra.mxu0 0.0
    %1802 = vmatprep.subr.mxu0 0.0
    %1803 = vmatpush1.msra.mxu0 0.0
    %1804 = vmatprep.subr.mxu0 0.0
    %1805 = vmatpush1.msra.mxu0 0.0
    %1806 = vmatprep.subr.mxu0 0.0
    %1807 = vmatpush1.msra.mxu0 0.0
    %1808 = vmatprep.subr.mxu0 0.0
    %1809 = vmatpush1.msra.mxu0 0.0
    %1810 = vmatprep.subr.mxu0 0.0
    %1811 = vmatpush1.msra.mxu0 0.0
    %1812 = vmatprep.subr.mxu0 0.0
    %1813 = vmatpush1.msra.mxu0 0.0
    %1814 = vmatprep.subr.mxu0 0.0
    %1815 = vmatpush1.msra.mxu0 0.0
    %1816 = vmatprep.subr.mxu0 0.0
    %1817 = vmatpush1.msra.mxu0 0.0
    %1818 = vmatprep.subr.mxu0 0.0
    %1819 = vmatpush1.msra.mxu0 0.0
    %1820 = vmatprep.subr.mxu0 0.0
    %1821 = vmatpush1.msra.mxu0 0.0
    %1822 = vmatprep.subr.mxu0 0.0
    %1823 = vmatpush1.msra.mxu0 0.0
    %1824 = vmatprep.subr.mxu0 0.0
    %1825 = vmatpush1.msra.mxu0 0.0
    %1826 = vmatprep.subr.mxu0 0.0
    %1827 = vmatpush1.msra.mxu0 0.0
    %1828 = vmatprep.subr.mxu0 0.0
    %1829 = vmatpush1.msra.mxu0 0.0
    %1830 = vmatprep.subr.mxu0 0.0
    %1831 = vmatpush1.msra.mxu0 0.0
    %1832 = vmatprep.subr.mxu0 0.0
    %1833 = vmatpush1.msra.mxu0 0.0
    %1834 = vmatprep.subr.mxu0 0.0
    %1835 = vmatpush1.msra.mxu0 0.0
    %1836 = vmatprep.subr.mxu0 0.0
    %1837 = vmatpush1.msra.mxu0 0.0
    %1838 = vmatprep.subr.mxu0 0.0
    %1839 = vmatpush1.msra.mxu0 0.0
    %1840 = vmatprep.subr.mxu0 0.0
    %1841 = vmatpush1.msra.mxu0 0.0
    %1842 = vmatprep.subr.mxu0 0.0
    %1843 = vmatpush1.msra.mxu0 0.0
    %1844 = vmatprep.subr.mxu0 0.0
    %1845 = vmatpush1.msra.mxu0 0.0
    %1846 = vmatprep.subr.mxu0 0.0
    %1847 = vmatpush1.msra.mxu0 0.0
    %1848 = vmatprep.subr.mxu0 0.0
    %1849 = vmatpush1.msra.mxu0 0.0
    %1850 = vmatprep.subr.mxu0 0.0
    %1851 = vmatpush1.msra.mxu0 0.0
    %1852 = vmatprep.subr.mxu0 0.0
    %1853 = vmatpush1.msra.mxu0 0.0
    %1854 = vmatprep.subr.mxu0 0.0
    %1855 = vmatpush1.msra.mxu0 0.0
    %1856 = vmatprep.subr.mxu0 0.0
    %1857 = vmatpush1.msra.mxu0 0.0
    %1858 = vmatprep.mubr.f32.mxu0 0.0
    %1859 = vmatmul.mubr.f32.gmra.mrb[0].mxu0 %v1789
    %v1860 = vpop.f32.mrb[0].mxu0
    %v1861 = vadd.f32 %v1786, %v1860
    %v1862 = vpop.f32.mrb[0].mxu0
    %1863 = vdwg.mxu0
    %v1864 = vld [vmem:[#allocation2 + $0xc8] sm:$0xff]
    %v1865 = vld [vmem:[#allocation2 + $0xd0] sm:$0xff]
    %v1866 = vld [vmem:[#allocation2 + $0xd8] sm:$0xf]
    %v1867 = vrot.slane %v1701, 4
    %v1868 = vsel %vm1713, %v1867, 0
    %v1871 = vsel %vm38, %v1866, 0
    %1873 = vmatprep.subr.mxu0 0.0
    %1874 = vmatpush1.msra.mxu0 %v1864
    %1875 = vmatprep.subr.mxu0 0.0
    %1876 = vmatpush1.msra.mxu0 %v1865
    %1877 = vmatprep.subr.mxu0 0.0
    %1878 = vmatpush1.msra.mxu0 %v1871
    %1879 = vmatprep.subr.mxu0 0.0
    %1880 = vmatpush1.msra.mxu0 0.0
    %1881 = vmatprep.subr.mxu0 0.0
    %1882 = vmatpush1.msra.mxu0 0.0
    %1883 = vmatprep.subr.mxu0 0.0
    %1884 = vmatpush1.msra.mxu0 0.0
    %1885 = vmatprep.subr.mxu0 0.0
    %1886 = vmatpush1.msra.mxu0 0.0
    %1887 = vmatprep.subr.mxu0 0.0
    %1888 = vmatpush1.msra.mxu0 0.0
    %1889 = vmatprep.subr.mxu0 0.0
    %1890 = vmatpush1.msra.mxu0 0.0
    %1891 = vmatprep.subr.mxu0 0.0
    %1892 = vmatpush1.msra.mxu0 0.0
    %1893 = vmatprep.subr.mxu0 0.0
    %1894 = vmatpush1.msra.mxu0 0.0
    %1895 = vmatprep.subr.mxu0 0.0
    %1896 = vmatpush1.msra.mxu0 0.0
    %1897 = vmatprep.subr.mxu0 0.0
    %1898 = vmatpush1.msra.mxu0 0.0
    %1899 = vmatprep.subr.mxu0 0.0
    %1900 = vmatpush1.msra.mxu0 0.0
    %1901 = vmatprep.subr.mxu0 0.0
    %1902 = vmatpush1.msra.mxu0 0.0
    %1903 = vmatprep.subr.mxu0 0.0
    %1904 = vmatpush1.msra.mxu0 0.0
    %1905 = vmatprep.subr.mxu0 0.0
    %1906 = vmatpush1.msra.mxu0 0.0
    %1907 = vmatprep.subr.mxu0 0.0
    %1908 = vmatpush1.msra.mxu0 0.0
    %1909 = vmatprep.subr.mxu0 0.0
    %1910 = vmatpush1.msra.mxu0 0.0
    %1911 = vmatprep.subr.mxu0 0.0
    %1912 = vmatpush1.msra.mxu0 0.0
    %1913 = vmatprep.subr.mxu0 0.0
    %1914 = vmatpush1.msra.mxu0 0.0
    %1915 = vmatprep.subr.mxu0 0.0
    %1916 = vmatpush1.msra.mxu0 0.0
    %1917 = vmatprep.subr.mxu0 0.0
    %1918 = vmatpush1.msra.mxu0 0.0
    %1919 = vmatprep.subr.mxu0 0.0
    %1920 = vmatpush1.msra.mxu0 0.0
    %1921 = vmatprep.subr.mxu0 0.0
    %1922 = vmatpush1.msra.mxu0 0.0
    %1923 = vmatprep.subr.mxu0 0.0
    %1924 = vmatpush1.msra.mxu0 0.0
    %1925 = vmatprep.subr.mxu0 0.0
    %1926 = vmatpush1.msra.mxu0 0.0
    %1927 = vmatprep.subr.mxu0 0.0
    %1928 = vmatpush1.msra.mxu0 0.0
    %1929 = vmatprep.subr.mxu0 0.0
    %1930 = vmatpush1.msra.mxu0 0.0
    %1931 = vmatprep.subr.mxu0 0.0
    %1932 = vmatpush1.msra.mxu0 0.0
    %1933 = vmatprep.subr.mxu0 0.0
    %1934 = vmatpush1.msra.mxu0 0.0
    %1935 = vmatprep.subr.mxu0 0.0
    %1936 = vmatpush1.msra.mxu0 0.0
    %1937 = vmatprep.mubr.f32.mxu0 0.0
    %1938 = vmatmul.mubr.f32.gmra.mrb[0].mxu0 %v1868
    %v1939 = vpop.f32.mrb[0].mxu0
    %v1940 = vadd.f32 0.0, %v1939
    %v1941 = vpop.f32.mrb[0].mxu0
    %1942 = vdwg.mxu0
    %v1943 = vadd.f32 %v1861, %v1940
    %v1944 = vld [vmem:[#allocation2 + $0xdc] sm:$0xff]
    %v1945 = vld [vmem:[#allocation2 + $0xe4] sm:$0xff]
    %v1946 = vld [vmem:[#allocation2 + $0xec] sm:$0xf]
    %v1947 = vrot.slane %v1701, 6
    %v1948 = vsel %vm1713, %v1947, 0
    %v1951 = vsel %vm38, %v1946, 0
    %1953 = vmatprep.subr.mxu0 0.0
    %1954 = vmatpush1.msra.mxu0 %v1944
    %1955 = vmatprep.subr.mxu0 0.0
    %1956 = vmatpush1.msra.mxu0 %v1945
    %1957 = vmatprep.subr.mxu0 0.0
    %1958 = vmatpush1.msra.mxu0 %v1951
    %1959 = vmatprep.subr.mxu0 0.0
    %1960 = vmatpush1.msra.mxu0 0.0
    %1961 = vmatprep.subr.mxu0 0.0
    %1962 = vmatpush1.msra.mxu0 0.0
    %1963 = vmatprep.subr.mxu0 0.0
    %1964 = vmatpush1.msra.mxu0 0.0
    %1965 = vmatprep.subr.mxu0 0.0
    %1966 = vmatpush1.msra.mxu0 0.0
    %1967 = vmatprep.subr.mxu0 0.0
    %1968 = vmatpush1.msra.mxu0 0.0
    %1969 = vmatprep.subr.mxu0 0.0
    %1970 = vmatpush1.msra.mxu0 0.0
    %1971 = vmatprep.subr.mxu0 0.0
    %1972 = vmatpush1.msra.mxu0 0.0
    %1973 = vmatprep.subr.mxu0 0.0
    %1974 = vmatpush1.msra.mxu0 0.0
    %1975 = vmatprep.subr.mxu0 0.0
    %1976 = vmatpush1.msra.mxu0 0.0
    %1977 = vmatprep.subr.mxu0 0.0
    %1978 = vmatpush1.msra.mxu0 0.0
    %1979 = vmatprep.subr.mxu0 0.0
    %1980 = vmatpush1.msra.mxu0 0.0
    %1981 = vmatprep.subr.mxu0 0.0
    %1982 = vmatpush1.msra.mxu0 0.0
    %1983 = vmatprep.subr.mxu0 0.0
    %1984 = vmatpush1.msra.mxu0 0.0
    %1985 = vmatprep.subr.mxu0 0.0
    %1986 = vmatpush1.msra.mxu0 0.0
    %1987 = vmatprep.subr.mxu0 0.0
    %1988 = vmatpush1.msra.mxu0 0.0
    %1989 = vmatprep.subr.mxu0 0.0
    %1990 = vmatpush1.msra.mxu0 0.0
    %1991 = vmatprep.subr.mxu0 0.0
    %1992 = vmatpush1.msra.mxu0 0.0
    %1993 = vmatprep.subr.mxu0 0.0
    %1994 = vmatpush1.msra.mxu0 0.0
    %1995 = vmatprep.subr.mxu0 0.0
    %1996 = vmatpush1.msra.mxu0 0.0
    %1997 = vmatprep.subr.mxu0 0.0
    %1998 = vmatpush1.msra.mxu0 0.0
    %1999 = vmatprep.subr.mxu0 0.0
    %2000 = vmatpush1.msra.mxu0 0.0
    %2001 = vmatprep.subr.mxu0 0.0
    %2002 = vmatpush1.msra.mxu0 0.0
    %2003 = vmatprep.subr.mxu0 0.0
    %2004 = vmatpush1.msra.mxu0 0.0
    %2005 = vmatprep.subr.mxu0 0.0
    %2006 = vmatpush1.msra.mxu0 0.0
    %2007 = vmatprep.subr.mxu0 0.0
    %2008 = vmatpush1.msra.mxu0 0.0
    %2009 = vmatprep.subr.mxu0 0.0
    %2010 = vmatpush1.msra.mxu0 0.0
    %2011 = vmatprep.subr.mxu0 0.0
    %2012 = vmatpush1.msra.mxu0 0.0
    %2013 = vmatprep.subr.mxu0 0.0
    %2014 = vmatpush1.msra.mxu0 0.0
    %2015 = vmatprep.subr.mxu0 0.0
    %2016 = vmatpush1.msra.mxu0 0.0
    %2017 = vmatprep.mubr.f32.mxu0 0.0
    %2018 = vmatmul.mubr.f32.gmra.mrb[0].mxu0 %v1948
    %v2019 = vpop.f32.mrb[0].mxu0
    %v2020 = vadd.f32 0.0, %v2019
    %v2021 = vpop.f32.mrb[0].mxu0
    %2022 = vdwg.mxu0
    %v2023 = vadd.f32 %v1943, %v2020
    %v2024 = vld [vmem:[#allocation2 + $0xf0] sm:$0xff]
    %v2025 = vld [vmem:[#allocation2 + $0xf8] sm:$0xff]
    %v2026 = vld [vmem:[#allocation2 + $0x100] sm:$0xf]
    %v2028 = vsel %vm1713, %v1702, 0
    %v2031 = vsel %vm38, %v2026, 0
    %2033 = vmatprep.subr.mxu0 0.0
    %2034 = vmatpush1.msra.mxu0 %v2024
    %2035 = vmatprep.subr.mxu0 0.0
    %2036 = vmatpush1.msra.mxu0 %v2025
    %2037 = vmatprep.subr.mxu0 0.0
    %2038 = vmatpush1.msra.mxu0 %v2031
    %2039 = vmatprep.subr.mxu0 0.0
    %2040 = vmatpush1.msra.mxu0 0.0
    %2041 = vmatprep.subr.mxu0 0.0
    %2042 = vmatpush1.msra.mxu0 0.0
    %2043 = vmatprep.subr.mxu0 0.0
    %2044 = vmatpush1.msra.mxu0 0.0
    %2045 = vmatprep.subr.mxu0 0.0
    %2046 = vmatpush1.msra.mxu0 0.0
    %2047 = vmatprep.subr.mxu0 0.0
    %2048 = vmatpush1.msra.mxu0 0.0
    %2049 = vmatprep.subr.mxu0 0.0
    %2050 = vmatpush1.msra.mxu0 0.0
    %2051 = vmatprep.subr.mxu0 0.0
    %2052 = vmatpush1.msra.mxu0 0.0
    %2053 = vmatprep.subr.mxu0 0.0
    %2054 = vmatpush1.msra.mxu0 0.0
    %2055 = vmatprep.subr.mxu0 0.0
    %2056 = vmatpush1.msra.mxu0 0.0
    %2057 = vmatprep.subr.mxu0 0.0
    %2058 = vmatpush1.msra.mxu0 0.0
    %2059 = vmatprep.subr.mxu0 0.0
    %2060 = vmatpush1.msra.mxu0 0.0
    %2061 = vmatprep.subr.mxu0 0.0
    %2062 = vmatpush1.msra.mxu0 0.0
    %2063 = vmatprep.subr.mxu0 0.0
    %2064 = vmatpush1.msra.mxu0 0.0
    %2065 = vmatprep.subr.mxu0 0.0
    %2066 = vmatpush1.msra.mxu0 0.0
    %2067 = vmatprep.subr.mxu0 0.0
    %2068 = vmatpush1.msra.mxu0 0.0
    %2069 = vmatprep.subr.mxu0 0.0
    %2070 = vmatpush1.msra.mxu0 0.0
    %2071 = vmatprep.subr.mxu0 0.0
    %2072 = vmatpush1.msra.mxu0 0.0
    %2073 = vmatprep.subr.mxu0 0.0
    %2074 = vmatpush1.msra.mxu0 0.0
    %2075 = vmatprep.subr.mxu0 0.0
    %2076 = vmatpush1.msra.mxu0 0.0
    %2077 = vmatprep.subr.mxu0 0.0
    %2078 = vmatpush1.msra.mxu0 0.0
    %2079 = vmatprep.subr.mxu0 0.0
    %2080 = vmatpush1.msra.mxu0 0.0
    %2081 = vmatprep.subr.mxu0 0.0
    %2082 = vmatpush1.msra.mxu0 0.0
    %2083 = vmatprep.subr.mxu0 0.0
    %2084 = vmatpush1.msra.mxu0 0.0
    %2085 = vmatprep.subr.mxu0 0.0
    %2086 = vmatpush1.msra.mxu0 0.0
    %2087 = vmatprep.subr.mxu0 0.0
    %2088 = vmatpush1.msra.mxu0 0.0
    %2089 = vmatprep.subr.mxu0 0.0
    %2090 = vmatpush1.msra.mxu0 0.0
    %2091 = vmatprep.subr.mxu0 0.0
    %2092 = vmatpush1.msra.mxu0 0.0
    %2093 = vmatprep.subr.mxu0 0.0
    %2094 = vmatpush1.msra.mxu0 0.0
    %2095 = vmatprep.subr.mxu0 0.0
    %2096 = vmatpush1.msra.mxu0 0.0
    %2097 = vmatprep.mubr.f32.mxu0 0.0
    %2098 = vmatmul.mubr.f32.gmra.mrb[0].mxu0 %v2028
    %v2099 = vpop.f32.mrb[0].mxu0
    %v2100 = vadd.f32 0.0, %v2099
    %v2101 = vpop.f32.mrb[0].mxu0
    %2102 = vdwg.mxu0
    %v2103 = vadd.f32 %v2023, %v2100
    %v2104 = vld [vmem:[#allocation2 + $0x104] sm:$0xff]
    %v2105 = vld [vmem:[#allocation2 + $0x10c] sm:$0xff]
    %v2106 = vld [vmem:[#allocation2 + $0x114] sm:$0xf]
    %v2107 = vrot.slane %v1702, 2
    %v2108 = vsel %vm1713, %v2107, 0
    %v2111 = vsel %vm38, %v2106, 0
    %2113 = vmatprep.subr.mxu0 0.0
    %2114 = vmatpush1.msra.mxu0 %v2104
    %2115 = vmatprep.subr.mxu0 0.0
    %2116 = vmatpush1.msra.mxu0 %v2105
    %2117 = vmatprep.subr.mxu0 0.0
    %2118 = vmatpush1.msra.mxu0 %v2111
    %2119 = vmatprep.subr.mxu0 0.0
    %2120 = vmatpush1.msra.mxu0 0.0
    %2121 = vmatprep.subr.mxu0 0.0
    %2122 = vmatpush1.msra.mxu0 0.0
    %2123 = vmatprep.subr.mxu0 0.0
    %2124 = vmatpush1.msra.mxu0 0.0
    %2125 = vmatprep.subr.mxu0 0.0
    %2126 = vmatpush1.msra.mxu0 0.0
    %2127 = vmatprep.subr.mxu0 0.0
    %2128 = vmatpush1.msra.mxu0 0.0
    %2129 = vmatprep.subr.mxu0 0.0
    %2130 = vmatpush1.msra.mxu0 0.0
    %2131 = vmatprep.subr.mxu0 0.0
    %2132 = vmatpush1.msra.mxu0 0.0
    %2133 = vmatprep.subr.mxu0 0.0
    %2134 = vmatpush1.msra.mxu0 0.0
    %2135 = vmatprep.subr.mxu0 0.0
    %2136 = vmatpush1.msra.mxu0 0.0
    %2137 = vmatprep.subr.mxu0 0.0
    %2138 = vmatpush1.msra.mxu0 0.0
    %2139 = vmatprep.subr.mxu0 0.0
    %2140 = vmatpush1.msra.mxu0 0.0
    %2141 = vmatprep.subr.mxu0 0.0
    %2142 = vmatpush1.msra.mxu0 0.0
    %2143 = vmatprep.subr.mxu0 0.0
    %2144 = vmatpush1.msra.mxu0 0.0
    %2145 = vmatprep.subr.mxu0 0.0
    %2146 = vmatpush1.msra.mxu0 0.0
    %2147 = vmatprep.subr.mxu0 0.0
    %2148 = vmatpush1.msra.mxu0 0.0
    %2149 = vmatprep.subr.mxu0 0.0
    %2150 = vmatpush1.msra.mxu0 0.0
    %2151 = vmatprep.subr.mxu0 0.0
    %2152 = vmatpush1.msra.mxu0 0.0
    %2153 = vmatprep.subr.mxu0 0.0
    %2154 = vmatpush1.msra.mxu0 0.0
    %2155 = vmatprep.subr.mxu0 0.0
    %2156 = vmatpush1.msra.mxu0 0.0
    %2157 = vmatprep.subr.mxu0 0.0
    %2158 = vmatpush1.msra.mxu0 0.0
    %2159 = vmatprep.subr.mxu0 0.0
    %2160 = vmatpush1.msra.mxu0 0.0
    %2161 = vmatprep.subr.mxu0 0.0
    %2162 = vmatpush1.msra.mxu0 0.0
    %2163 = vmatprep.subr.mxu0 0.0
    %2164 = vmatpush1.msra.mxu0 0.0
    %2165 = vmatprep.subr.mxu0 0.0
    %2166 = vmatpush1.msra.mxu0 0.0
    %2167 = vmatprep.subr.mxu0 0.0
    %2168 = vmatpush1.msra.mxu0 0.0
    %2169 = vmatprep.subr.mxu0 0.0
    %2170 = vmatpush1.msra.mxu0 0.0
    %2171 = vmatprep.subr.mxu0 0.0
    %2172 = vmatpush1.msra.mxu0 0.0
    %2173 = vmatprep.subr.mxu0 0.0
    %2174 = vmatpush1.msra.mxu0 0.0
    %2175 = vmatprep.subr.mxu0 0.0
    %2176 = vmatpush1.msra.mxu0 0.0
    %2177 = vmatprep.mubr.f32.mxu0 0.0
    %2178 = vmatmul.mubr.f32.gmra.mrb[0].mxu0 %v2108
    %v2179 = vpop.f32.mrb[0].mxu0
    %v2180 = vadd.f32 0.0, %v2179
    %v2181 = vpop.f32.mrb[0].mxu0
    %2182 = vdwg.mxu0
    %v2183 = vadd.f32 %v2103, %v2180
    %v2184 = vld [vmem:[#allocation2 + $0x118] sm:$0xff]
    %v2185 = vld [vmem:[#allocation2 + $0x120] sm:$0xff]
    %v2186 = vld [vmem:[#allocation2 + $0x128] sm:$0xf]
    %v2187 = vrot.slane %v1702, 4
    %v2188 = vsel %vm1713, %v2187, 0
    %v2191 = vsel %vm38, %v2186, 0
    %2193 = vmatprep.subr.mxu0 0.0
    %2194 = vmatpush1.msra.mxu0 %v2184
    %2195 = vmatprep.subr.mxu0 0.0
    %2196 = vmatpush1.msra.mxu0 %v2185
    %2197 = vmatprep.subr.mxu0 0.0
    %2198 = vmatpush1.msra.mxu0 %v2191
    %2199 = vmatprep.subr.mxu0 0.0
    %2200 = vmatpush1.msra.mxu0 0.0
    %2201 = vmatprep.subr.mxu0 0.0
    %2202 = vmatpush1.msra.mxu0 0.0
    %2203 = vmatprep.subr.mxu0 0.0
    %2204 = vmatpush1.msra.mxu0 0.0
    %2205 = vmatprep.subr.mxu0 0.0
    %2206 = vmatpush1.msra.mxu0 0.0
    %2207 = vmatprep.subr.mxu0 0.0
    %2208 = vmatpush1.msra.mxu0 0.0
    %2209 = vmatprep.subr.mxu0 0.0
    %2210 = vmatpush1.msra.mxu0 0.0
    %2211 = vmatprep.subr.mxu0 0.0
    %2212 = vmatpush1.msra.mxu0 0.0
    %2213 = vmatprep.subr.mxu0 0.0
    %2214 = vmatpush1.msra.mxu0 0.0
    %2215 = vmatprep.subr.mxu0 0.0
    %2216 = vmatpush1.msra.mxu0 0.0
    %2217 = vmatprep.subr.mxu0 0.0
    %2218 = vmatpush1.msra.mxu0 0.0
    %2219 = vmatprep.subr.mxu0 0.0
    %2220 = vmatpush1.msra.mxu0 0.0
    %2221 = vmatprep.subr.mxu0 0.0
    %2222 = vmatpush1.msra.mxu0 0.0
    %2223 = vmatprep.subr.mxu0 0.0
    %2224 = vmatpush1.msra.mxu0 0.0
    %2225 = vmatprep.subr.mxu0 0.0
    %2226 = vmatpush1.msra.mxu0 0.0
    %2227 = vmatprep.subr.mxu0 0.0
    %2228 = vmatpush1.msra.mxu0 0.0
    %2229 = vmatprep.subr.mxu0 0.0
    %2230 = vmatpush1.msra.mxu0 0.0
    %2231 = vmatprep.subr.mxu0 0.0
    %2232 = vmatpush1.msra.mxu0 0.0
    %2233 = vmatprep.subr.mxu0 0.0
    %2234 = vmatpush1.msra.mxu0 0.0
    %2235 = vmatprep.subr.mxu0 0.0
    %2236 = vmatpush1.msra.mxu0 0.0
    %2237 = vmatprep.subr.mxu0 0.0
    %2238 = vmatpush1.msra.mxu0 0.0
    %2239 = vmatprep.subr.mxu0 0.0
    %2240 = vmatpush1.msra.mxu0 0.0
    %2241 = vmatprep.subr.mxu0 0.0
    %2242 = vmatpush1.msra.mxu0 0.0
    %2243 = vmatprep.subr.mxu0 0.0
    %2244 = vmatpush1.msra.mxu0 0.0
    %2245 = vmatprep.subr.mxu0 0.0
    %2246 = vmatpush1.msra.mxu0 0.0
    %2247 = vmatprep.subr.mxu0 0.0
    %2248 = vmatpush1.msra.mxu0 0.0
    %2249 = vmatprep.subr.mxu0 0.0
    %2250 = vmatpush1.msra.mxu0 0.0
    %2251 = vmatprep.subr.mxu0 0.0
    %2252 = vmatpush1.msra.mxu0 0.0
    %2253 = vmatprep.subr.mxu0 0.0
    %2254 = vmatpush1.msra.mxu0 0.0
    %2255 = vmatprep.subr.mxu0 0.0
    %2256 = vmatpush1.msra.mxu0 0.0
    %2257 = vmatprep.mubr.f32.mxu0 0.0
    %2258 = vmatmul.mubr.f32.gmra.mrb[0].mxu0 %v2188
    %v2259 = vpop.f32.mrb[0].mxu0
    %v2260 = vadd.f32 0.0, %v2259
    %v2261 = vpop.f32.mrb[0].mxu0
    %2262 = vdwg.mxu0
    %v2263 = vadd.f32 %v2183, %v2260
    %v2264 = vld [vmem:[#allocation2 + $0x12c] sm:$0xff]
    %v2265 = vld [vmem:[#allocation2 + $0x134] sm:$0xff]
    %v2266 = vld [vmem:[#allocation2 + $0x13c] sm:$0xf]
    %v2267 = vrot.slane %v1702, 6
    %v2268 = vsel %vm1713, %v2267, 0
    %v2271 = vsel %vm38, %v2266, 0
    %2273 = vmatprep.subr.mxu0 0.0
    %2274 = vmatpush1.msra.mxu0 %v2264
    %2275 = vmatprep.subr.mxu0 0.0
    %2276 = vmatpush1.msra.mxu0 %v2265
    %2277 = vmatprep.subr.mxu0 0.0
    %2278 = vmatpush1.msra.mxu0 %v2271
    %2279 = vmatprep.subr.mxu0 0.0
    %2280 = vmatpush1.msra.mxu0 0.0
    %2281 = vmatprep.subr.mxu0 0.0
    %2282 = vmatpush1.msra.mxu0 0.0
    %2283 = vmatprep.subr.mxu0 0.0
    %2284 = vmatpush1.msra.mxu0 0.0
    %2285 = vmatprep.subr.mxu0 0.0
    %2286 = vmatpush1.msra.mxu0 0.0
    %2287 = vmatprep.subr.mxu0 0.0
    %2288 = vmatpush1.msra.mxu0 0.0
    %2289 = vmatprep.subr.mxu0 0.0
    %2290 = vmatpush1.msra.mxu0 0.0
    %2291 = vmatprep.subr.mxu0 0.0
    %2292 = vmatpush1.msra.mxu0 0.0
    %2293 = vmatprep.subr.mxu0 0.0
    %2294 = vmatpush1.msra.mxu0 0.0
    %2295 = vmatprep.subr.mxu0 0.0
    %2296 = vmatpush1.msra.mxu0 0.0
    %2297 = vmatprep.subr.mxu0 0.0
    %2298 = vmatpush1.msra.mxu0 0.0
    %2299 = vmatprep.subr.mxu0 0.0
    %2300 = vmatpush1.msra.mxu0 0.0
    %2301 = vmatprep.subr.mxu0 0.0
    %2302 = vmatpush1.msra.mxu0 0.0
    %2303 = vmatprep.subr.mxu0 0.0
    %2304 = vmatpush1.msra.mxu0 0.0
    %2305 = vmatprep.subr.mxu0 0.0
    %2306 = vmatpush1.msra.mxu0 0.0
    %2307 = vmatprep.subr.mxu0 0.0
    %2308 = vmatpush1.msra.mxu0 0.0
    %2309 = vmatprep.subr.mxu0 0.0
    %2310 = vmatpush1.msra.mxu0 0.0
    %2311 = vmatprep.subr.mxu0 0.0
    %2312 = vmatpush1.msra.mxu0 0.0
    %2313 = vmatprep.subr.mxu0 0.0
    %2314 = vmatpush1.msra.mxu0 0.0
    %2315 = vmatprep.subr.mxu0 0.0
    %2316 = vmatpush1.msra.mxu0 0.0
    %2317 = vmatprep.subr.mxu0 0.0
    %2318 = vmatpush1.msra.mxu0 0.0
    %2319 = vmatprep.subr.mxu0 0.0
    %2320 = vmatpush1.msra.mxu0 0.0
    %2321 = vmatprep.subr.mxu0 0.0
    %2322 = vmatpush1.msra.mxu0 0.0
    %2323 = vmatprep.subr.mxu0 0.0
    %2324 = vmatpush1.msra.mxu0 0.0
    %2325 = vmatprep.subr.mxu0 0.0
    %2326 = vmatpush1.msra.mxu0 0.0
    %2327 = vmatprep.subr.mxu0 0.0
    %2328 = vmatpush1.msra.mxu0 0.0
    %2329 = vmatprep.subr.mxu0 0.0
    %2330 = vmatpush1.msra.mxu0 0.0
    %2331 = vmatprep.subr.mxu0 0.0
    %2332 = vmatpush1.msra.mxu0 0.0
    %2333 = vmatprep.subr.mxu0 0.0
    %2334 = vmatpush1.msra.mxu0 0.0
    %2335 = vmatprep.subr.mxu0 0.0
    %2336 = vmatpush1.msra.mxu0 0.0
    %2337 = vmatprep.mubr.f32.mxu0 0.0
    %2338 = vmatmul.mubr.f32.gmra.mrb[0].mxu0 %v2268
    %v2339 = vpop.f32.mrb[0].mxu0
    %v2340 = vadd.f32 0.0, %v2339
    %v2341 = vpop.f32.mrb[0].mxu0
    %2342 = vdwg.mxu0
    %v2343 = vadd.f32 %v2263, %v2340
    %v2344 = vld [vmem:[#allocation2 + $0x140] sm:$0xff]
    %v2345 = vld [vmem:[#allocation2 + $0x148] sm:$0xff]
    %v2346 = vld [vmem:[#allocation2 + $0x150] sm:$0xf]
    %v2348 = vsel %vm1713, %v1703, 0
    %v2351 = vsel %vm38, %v2346, 0
    %2353 = vmatprep.subr.mxu0 0.0
    %2354 = vmatpush1.msra.mxu0 %v2344
    %2355 = vmatprep.subr.mxu0 0.0
    %2356 = vmatpush1.msra.mxu0 %v2345
    %2357 = vmatprep.subr.mxu0 0.0
    %2358 = vmatpush1.msra.mxu0 %v2351
    %2359 = vmatprep.subr.mxu0 0.0
    %2360 = vmatpush1.msra.mxu0 0.0
    %2361 = vmatprep.subr.mxu0 0.0
    %2362 = vmatpush1.msra.mxu0 0.0
    %2363 = vmatprep.subr.mxu0 0.0
    %2364 = vmatpush1.msra.mxu0 0.0
    %2365 = vmatprep.subr.mxu0 0.0
    %2366 = vmatpush1.msra.mxu0 0.0
    %2367 = vmatprep.subr.mxu0 0.0
    %2368 = vmatpush1.msra.mxu0 0.0
    %2369 = vmatprep.subr.mxu0 0.0
    %2370 = vmatpush1.msra.mxu0 0.0
    %2371 = vmatprep.subr.mxu0 0.0
    %2372 = vmatpush1.msra.mxu0 0.0
    %2373 = vmatprep.subr.mxu0 0.0
    %2374 = vmatpush1.msra.mxu0 0.0
    %2375 = vmatprep.subr.mxu0 0.0
    %2376 = vmatpush1.msra.mxu0 0.0
    %2377 = vmatprep.subr.mxu0 0.0
    %2378 = vmatpush1.msra.mxu0 0.0
    %2379 = vmatprep.subr.mxu0 0.0
    %2380 = vmatpush1.msra.mxu0 0.0
    %2381 = vmatprep.subr.mxu0 0.0
    %2382 = vmatpush1.msra.mxu0 0.0
    %2383 = vmatprep.subr.mxu0 0.0
    %2384 = vmatpush1.msra.mxu0 0.0
    %2385 = vmatprep.subr.mxu0 0.0
    %2386 = vmatpush1.msra.mxu0 0.0
    %2387 = vmatprep.subr.mxu0 0.0
    %2388 = vmatpush1.msra.mxu0 0.0
    %2389 = vmatprep.subr.mxu0 0.0
    %2390 = vmatpush1.msra.mxu0 0.0
    %2391 = vmatprep.subr.mxu0 0.0
    %2392 = vmatpush1.msra.mxu0 0.0
    %2393 = vmatprep.subr.mxu0 0.0
    %2394 = vmatpush1.msra.mxu0 0.0
    %2395 = vmatprep.subr.mxu0 0.0
    %2396 = vmatpush1.msra.mxu0 0.0
    %2397 = vmatprep.subr.mxu0 0.0
    %2398 = vmatpush1.msra.mxu0 0.0
    %2399 = vmatprep.subr.mxu0 0.0
    %2400 = vmatpush1.msra.mxu0 0.0
    %2401 = vmatprep.subr.mxu0 0.0
    %2402 = vmatpush1.msra.mxu0 0.0
    %2403 = vmatprep.subr.mxu0 0.0
    %2404 = vmatpush1.msra.mxu0 0.0
    %2405 = vmatprep.subr.mxu0 0.0
    %2406 = vmatpush1.msra.mxu0 0.0
    %2407 = vmatprep.subr.mxu0 0.0
    %2408 = vmatpush1.msra.mxu0 0.0
    %2409 = vmatprep.subr.mxu0 0.0
    %2410 = vmatpush1.msra.mxu0 0.0
    %2411 = vmatprep.subr.mxu0 0.0
    %2412 = vmatpush1.msra.mxu0 0.0
    %2413 = vmatprep.subr.mxu0 0.0
    %2414 = vmatpush1.msra.mxu0 0.0
    %2415 = vmatprep.subr.mxu0 0.0
    %2416 = vmatpush1.msra.mxu0 0.0
    %2417 = vmatprep.mubr.f32.mxu0 0.0
    %2418 = vmatmul.mubr.f32.gmra.mrb[0].mxu0 %v2348
    %v2419 = vpop.f32.mrb[0].mxu0
    %v2420 = vadd.f32 0.0, %v2419
    %v2421 = vpop.f32.mrb[0].mxu0
    %2422 = vdwg.mxu0
    %v2423 = vadd.f32 %v2343, %v2420
    %v2424 = vld [vmem:[#allocation2 + $0x154] sm:$0xff]
    %v2425 = vld [vmem:[#allocation2 + $0x15c] sm:$0xff]
    %v2426 = vld [vmem:[#allocation2 + $0x164] sm:$0xf]
    %v2427 = vrot.slane %v1703, 2
    %v2428 = vsel %vm1713, %v2427, 0
    %v2431 = vsel %vm38, %v2426, 0
    %2433 = vmatprep.subr.mxu0 0.0
    %2434 = vmatpush1.msra.mxu0 %v2424
    %2435 = vmatprep.subr.mxu0 0.0
    %2436 = vmatpush1.msra.mxu0 %v2425
    %2437 = vmatprep.subr.mxu0 0.0
    %2438 = vmatpush1.msra.mxu0 %v2431
    %2439 = vmatprep.subr.mxu0 0.0
    %2440 = vmatpush1.msra.mxu0 0.0
    %2441 = vmatprep.subr.mxu0 0.0
    %2442 = vmatpush1.msra.mxu0 0.0
    %2443 = vmatprep.subr.mxu0 0.0
    %2444 = vmatpush1.msra.mxu0 0.0
    %2445 = vmatprep.subr.mxu0 0.0
    %2446 = vmatpush1.msra.mxu0 0.0
    %2447 = vmatprep.subr.mxu0 0.0
    %2448 = vmatpush1.msra.mxu0 0.0
    %2449 = vmatprep.subr.mxu0 0.0
    %2450 = vmatpush1.msra.mxu0 0.0
    %2451 = vmatprep.subr.mxu0 0.0
    %2452 = vmatpush1.msra.mxu0 0.0
    %2453 = vmatprep.subr.mxu0 0.0
    %2454 = vmatpush1.msra.mxu0 0.0
    %2455 = vmatprep.subr.mxu0 0.0
    %2456 = vmatpush1.msra.mxu0 0.0
    %2457 = vmatprep.subr.mxu0 0.0
    %2458 = vmatpush1.msra.mxu0 0.0
    %2459 = vmatprep.subr.mxu0 0.0
    %2460 = vmatpush1.msra.mxu0 0.0
    %2461 = vmatprep.subr.mxu0 0.0
    %2462 = vmatpush1.msra.mxu0 0.0
    %2463 = vmatprep.subr.mxu0 0.0
    %2464 = vmatpush1.msra.mxu0 0.0
    %2465 = vmatprep.subr.mxu0 0.0
    %2466 = vmatpush1.msra.mxu0 0.0
    %2467 = vmatprep.subr.mxu0 0.0
    %2468 = vmatpush1.msra.mxu0 0.0
    %2469 = vmatprep.subr.mxu0 0.0
    %2470 = vmatpush1.msra.mxu0 0.0
    %2471 = vmatprep.subr.mxu0 0.0
    %2472 = vmatpush1.msra.mxu0 0.0
    %2473 = vmatprep.subr.mxu0 0.0
    %2474 = vmatpush1.msra.mxu0 0.0
    %2475 = vmatprep.subr.mxu0 0.0
    %2476 = vmatpush1.msra.mxu0 0.0
    %2477 = vmatprep.subr.mxu0 0.0
    %2478 = vmatpush1.msra.mxu0 0.0
    %2479 = vmatprep.subr.mxu0 0.0
    %2480 = vmatpush1.msra.mxu0 0.0
    %2481 = vmatprep.subr.mxu0 0.0
    %2482 = vmatpush1.msra.mxu0 0.0
    %2483 = vmatprep.subr.mxu0 0.0
    %2484 = vmatpush1.msra.mxu0 0.0
    %2485 = vmatprep.subr.mxu0 0.0
    %2486 = vmatpush1.msra.mxu0 0.0
    %2487 = vmatprep.subr.mxu0 0.0
    %2488 = vmatpush1.msra.mxu0 0.0
    %2489 = vmatprep.subr.mxu0 0.0
    %2490 = vmatpush1.msra.mxu0 0.0
    %2491 = vmatprep.subr.mxu0 0.0
    %2492 = vmatpush1.msra.mxu0 0.0
    %2493 = vmatprep.subr.mxu0 0.0
    %2494 = vmatpush1.msra.mxu0 0.0
    %2495 = vmatprep.subr.mxu0 0.0
    %2496 = vmatpush1.msra.mxu0 0.0
    %2497 = vmatprep.mubr.f32.mxu0 0.0
    %2498 = vmatmul.mubr.f32.gmra.mrb[0].mxu0 %v2428
    %v2499 = vpop.f32.mrb[0].mxu0
    %v2500 = vadd.f32 0.0, %v2499
    %v2501 = vpop.f32.mrb[0].mxu0
    %2502 = vdwg.mxu0
    %v2503 = vadd.f32 %v2423, %v2500
    %v2504 = vld [vmem:[#allocation2 + $0x168] sm:$0xff]
    %v2505 = vld [vmem:[#allocation2 + $0x170] sm:$0xff]
    %v2506 = vld [vmem:[#allocation2 + $0x178] sm:$0xf]
    %v2507 = vrot.slane %v1703, 4
    %v2508 = vsel %vm1713, %v2507, 0
    %v2511 = vsel %vm38, %v2506, 0
    %2513 = vmatprep.subr.mxu0 0.0
    %2514 = vmatpush1.msra.mxu0 %v2504
    %2515 = vmatprep.subr.mxu0 0.0
    %2516 = vmatpush1.msra.mxu0 %v2505
    %2517 = vmatprep.subr.mxu0 0.0
    %2518 = vmatpush1.msra.mxu0 %v2511
    %2519 = vmatprep.subr.mxu0 0.0
    %2520 = vmatpush1.msra.mxu0 0.0
    %2521 = vmatprep.subr.mxu0 0.0
    %2522 = vmatpush1.msra.mxu0 0.0
    %2523 = vmatprep.subr.mxu0 0.0
    %2524 = vmatpush1.msra.mxu0 0.0
    %2525 = vmatprep.subr.mxu0 0.0
    %2526 = vmatpush1.msra.mxu0 0.0
    %2527 = vmatprep.subr.mxu0 0.0
    %2528 = vmatpush1.msra.mxu0 0.0
    %2529 = vmatprep.subr.mxu0 0.0
    %2530 = vmatpush1.msra.mxu0 0.0
    %2531 = vmatprep.subr.mxu0 0.0
    %2532 = vmatpush1.msra.mxu0 0.0
    %2533 = vmatprep.subr.mxu0 0.0
    %2534 = vmatpush1.msra.mxu0 0.0
    %2535 = vmatprep.subr.mxu0 0.0
    %2536 = vmatpush1.msra.mxu0 0.0
    %2537 = vmatprep.subr.mxu0 0.0
    %2538 = vmatpush1.msra.mxu0 0.0
    %2539 = vmatprep.subr.mxu0 0.0
    %2540 = vmatpush1.msra.mxu0 0.0
    %2541 = vmatprep.subr.mxu0 0.0
    %2542 = vmatpush1.msra.mxu0 0.0
    %2543 = vmatprep.subr.mxu0 0.0
    %2544 = vmatpush1.msra.mxu0 0.0
    %2545 = vmatprep.subr.mxu0 0.0
    %2546 = vmatpush1.msra.mxu0 0.0
    %2547 = vmatprep.subr.mxu0 0.0
    %2548 = vmatpush1.msra.mxu0 0.0
    %2549 = vmatprep.subr.mxu0 0.0
    %2550 = vmatpush1.msra.mxu0 0.0
    %2551 = vmatprep.subr.mxu0 0.0
    %2552 = vmatpush1.msra.mxu0 0.0
    %2553 = vmatprep.subr.mxu0 0.0
    %2554 = vmatpush1.msra.mxu0 0.0
    %2555 = vmatprep.subr.mxu0 0.0
    %2556 = vmatpush1.msra.mxu0 0.0
    %2557 = vmatprep.subr.mxu0 0.0
    %2558 = vmatpush1.msra.mxu0 0.0
    %2559 = vmatprep.subr.mxu0 0.0
    %2560 = vmatpush1.msra.mxu0 0.0
    %2561 = vmatprep.subr.mxu0 0.0
    %2562 = vmatpush1.msra.mxu0 0.0
    %2563 = vmatprep.subr.mxu0 0.0
    %2564 = vmatpush1.msra.mxu0 0.0
    %2565 = vmatprep.subr.mxu0 0.0
    %2566 = vmatpush1.msra.mxu0 0.0
    %2567 = vmatprep.subr.mxu0 0.0
    %2568 = vmatpush1.msra.mxu0 0.0
    %2569 = vmatprep.subr.mxu0 0.0
    %2570 = vmatpush1.msra.mxu0 0.0
    %2571 = vmatprep.subr.mxu0 0.0
    %2572 = vmatpush1.msra.mxu0 0.0
    %2573 = vmatprep.subr.mxu0 0.0
    %2574 = vmatpush1.msra.mxu0 0.0
    %2575 = vmatprep.subr.mxu0 0.0
    %2576 = vmatpush1.msra.mxu0 0.0
    %2577 = vmatprep.mubr.f32.mxu0 0.0
    %2578 = vmatmul.mubr.f32.gmra.mrb[0].mxu0 %v2508
    %v2579 = vpop.f32.mrb[0].mxu0
    %v2580 = vadd.f32 0.0, %v2579
    %v2581 = vpop.f32.mrb[0].mxu0
    %2582 = vdwg.mxu0
    %v2583 = vadd.f32 %v2503, %v2580
    %v2584 = vld [vmem:[#allocation2 + $0x17c] sm:$0xff]
    %v2585 = vld [vmem:[#allocation2 + $0x184] sm:$0xff]
    %v2586 = vld [vmem:[#allocation2 + $0x18c] sm:$0xf]
    %v2587 = vrot.slane %v1703, 6
    %v2588 = vsel %vm1713, %v2587, 0
    %v2591 = vsel %vm38, %v2586, 0
    %2593 = vmatprep.subr.mxu0 0.0
    %2594 = vmatpush1.msra.mxu0 %v2584
    %2595 = vmatprep.subr.mxu0 0.0
    %2596 = vmatpush1.msra.mxu0 %v2585
    %2597 = vmatprep.subr.mxu0 0.0
    %2598 = vmatpush1.msra.mxu0 %v2591
    %2599 = vmatprep.subr.mxu0 0.0
    %2600 = vmatpush1.msra.mxu0 0.0
    %2601 = vmatprep.subr.mxu0 0.0
    %2602 = vmatpush1.msra.mxu0 0.0
    %2603 = vmatprep.subr.mxu0 0.0
    %2604 = vmatpush1.msra.mxu0 0.0
    %2605 = vmatprep.subr.mxu0 0.0
    %2606 = vmatpush1.msra.mxu0 0.0
    %2607 = vmatprep.subr.mxu0 0.0
    %2608 = vmatpush1.msra.mxu0 0.0
    %2609 = vmatprep.subr.mxu0 0.0
    %2610 = vmatpush1.msra.mxu0 0.0
    %2611 = vmatprep.subr.mxu0 0.0
    %2612 = vmatpush1.msra.mxu0 0.0
    %2613 = vmatprep.subr.mxu0 0.0
    %2614 = vmatpush1.msra.mxu0 0.0
    %2615 = vmatprep.subr.mxu0 0.0
    %2616 = vmatpush1.msra.mxu0 0.0
    %2617 = vmatprep.subr.mxu0 0.0
    %2618 = vmatpush1.msra.mxu0 0.0
    %2619 = vmatprep.subr.mxu0 0.0
    %2620 = vmatpush1.msra.mxu0 0.0
    %2621 = vmatprep.subr.mxu0 0.0
    %2622 = vmatpush1.msra.mxu0 0.0
    %2623 = vmatprep.subr.mxu0 0.0
    %2624 = vmatpush1.msra.mxu0 0.0
    %2625 = vmatprep.subr.mxu0 0.0
    %2626 = vmatpush1.msra.mxu0 0.0
    %2627 = vmatprep.subr.mxu0 0.0
    %2628 = vmatpush1.msra.mxu0 0.0
    %2629 = vmatprep.subr.mxu0 0.0
    %2630 = vmatpush1.msra.mxu0 0.0
    %2631 = vmatprep.subr.mxu0 0.0
    %2632 = vmatpush1.msra.mxu0 0.0
    %2633 = vmatprep.subr.mxu0 0.0
    %2634 = vmatpush1.msra.mxu0 0.0
    %2635 = vmatprep.subr.mxu0 0.0
    %2636 = vmatpush1.msra.mxu0 0.0
    %2637 = vmatprep.subr.mxu0 0.0
    %2638 = vmatpush1.msra.mxu0 0.0
    %2639 = vmatprep.subr.mxu0 0.0
    %2640 = vmatpush1.msra.mxu0 0.0
    %2641 = vmatprep.subr.mxu0 0.0
    %2642 = vmatpush1.msra.mxu0 0.0
    %2643 = vmatprep.subr.mxu0 0.0
    %2644 = vmatpush1.msra.mxu0 0.0
    %2645 = vmatprep.subr.mxu0 0.0
    %2646 = vmatpush1.msra.mxu0 0.0
    %2647 = vmatprep.subr.mxu0 0.0
    %2648 = vmatpush1.msra.mxu0 0.0
    %2649 = vmatprep.subr.mxu0 0.0
    %2650 = vmatpush1.msra.mxu0 0.0
    %2651 = vmatprep.subr.mxu0 0.0
    %2652 = vmatpush1.msra.mxu0 0.0
    %2653 = vmatprep.subr.mxu0 0.0
    %2654 = vmatpush1.msra.mxu0 0.0
    %2655 = vmatprep.subr.mxu0 0.0
    %2656 = vmatpush1.msra.mxu0 0.0
    %2657 = vmatprep.mubr.f32.mxu0 0.0
    %2658 = vmatmul.mubr.f32.gmra.mrb[0].mxu0 %v2588
    %v2659 = vpop.f32.mrb[0].mxu0
    %v2660 = vadd.f32 0.0, %v2659
    %v2661 = vpop.f32.mrb[0].mxu0
    %2662 = vdwg.mxu0
    %v2663 = vadd.f32 %v2583, %v2660
    %v2664 = vld [vmem:[#allocation2 + $0x190] sm:$0xff]
    %v2665 = vld [vmem:[#allocation2 + $0x198] sm:$0xff]
    %v2666 = vld [vmem:[#allocation2 + $0x1a0] sm:$0xf]
    %v2668 = vsel %vm1713, %v1704, 0
    %v2671 = vsel %vm38, %v2666, 0
    %2673 = vmatprep.subr.mxu0 0.0
    %2674 = vmatpush1.msra.mxu0 %v2664
    %2675 = vmatprep.subr.mxu0 0.0
    %2676 = vmatpush1.msra.mxu0 %v2665
    %2677 = vmatprep.subr.mxu0 0.0
    %2678 = vmatpush1.msra.mxu0 %v2671
    %2679 = vmatprep.subr.mxu0 0.0
    %2680 = vmatpush1.msra.mxu0 0.0
    %2681 = vmatprep.subr.mxu0 0.0
    %2682 = vmatpush1.msra.mxu0 0.0
    %2683 = vmatprep.subr.mxu0 0.0
    %2684 = vmatpush1.msra.mxu0 0.0
    %2685 = vmatprep.subr.mxu0 0.0
    %2686 = vmatpush1.msra.mxu0 0.0
    %2687 = vmatprep.subr.mxu0 0.0
    %2688 = vmatpush1.msra.mxu0 0.0
    %2689 = vmatprep.subr.mxu0 0.0
    %2690 = vmatpush1.msra.mxu0 0.0
    %2691 = vmatprep.subr.mxu0 0.0
    %2692 = vmatpush1.msra.mxu0 0.0
    %2693 = vmatprep.subr.mxu0 0.0
    %2694 = vmatpush1.msra.mxu0 0.0
    %2695 = vmatprep.subr.mxu0 0.0
    %2696 = vmatpush1.msra.mxu0 0.0
    %2697 = vmatprep.subr.mxu0 0.0
    %2698 = vmatpush1.msra.mxu0 0.0
    %2699 = vmatprep.subr.mxu0 0.0
    %2700 = vmatpush1.msra.mxu0 0.0
    %2701 = vmatprep.subr.mxu0 0.0
    %2702 = vmatpush1.msra.mxu0 0.0
    %2703 = vmatprep.subr.mxu0 0.0
    %2704 = vmatpush1.msra.mxu0 0.0
    %2705 = vmatprep.subr.mxu0 0.0
    %2706 = vmatpush1.msra.mxu0 0.0
    %2707 = vmatprep.subr.mxu0 0.0
    %2708 = vmatpush1.msra.mxu0 0.0
    %2709 = vmatprep.subr.mxu0 0.0
    %2710 = vmatpush1.msra.mxu0 0.0
    %2711 = vmatprep.subr.mxu0 0.0
    %2712 = vmatpush1.msra.mxu0 0.0
    %2713 = vmatprep.subr.mxu0 0.0
    %2714 = vmatpush1.msra.mxu0 0.0
    %2715 = vmatprep.subr.mxu0 0.0
    %2716 = vmatpush1.msra.mxu0 0.0
    %2717 = vmatprep.subr.mxu0 0.0
    %2718 = vmatpush1.msra.mxu0 0.0
    %2719 = vmatprep.subr.mxu0 0.0
    %2720 = vmatpush1.msra.mxu0 0.0
    %2721 = vmatprep.subr.mxu0 0.0
    %2722 = vmatpush1.msra.mxu0 0.0
    %2723 = vmatprep.subr.mxu0 0.0
    %2724 = vmatpush1.msra.mxu0 0.0
    %2725 = vmatprep.subr.mxu0 0.0
    %2726 = vmatpush1.msra.mxu0 0.0
    %2727 = vmatprep.subr.mxu0 0.0
    %2728 = vmatpush1.msra.mxu0 0.0
    %2729 = vmatprep.subr.mxu0 0.0
    %2730 = vmatpush1.msra.mxu0 0.0
    %2731 = vmatprep.subr.mxu0 0.0
    %2732 = vmatpush1.msra.mxu0 0.0
    %2733 = vmatprep.subr.mxu0 0.0
    %2734 = vmatpush1.msra.mxu0 0.0
    %2735 = vmatprep.subr.mxu0 0.0
    %2736 = vmatpush1.msra.mxu0 0.0
    %2737 = vmatprep.mubr.f32.mxu0 0.0
    %2738 = vmatmul.mubr.f32.gmra.mrb[0].mxu0 %v2668
    %v2739 = vpop.f32.mrb[0].mxu0
    %v2740 = vadd.f32 0.0, %v2739
    %v2741 = vpop.f32.mrb[0].mxu0
    %2742 = vdwg.mxu0
    %v2743 = vadd.f32 %v2663, %v2740
    %v2744 = vld [vmem:[#allocation2 + $0x1a4] sm:$0xff]
    %v2745 = vld [vmem:[#allocation2 + $0x1ac] sm:$0xff]
    %v2746 = vld [vmem:[#allocation2 + $0x1b4] sm:$0xf]
    %v2747 = vrot.slane %v1704, 2
    %v2748 = vsel %vm1713, %v2747, 0
    %v2751 = vsel %vm38, %v2746, 0
    %2753 = vmatprep.subr.mxu0 0.0
    %2754 = vmatpush1.msra.mxu0 %v2744
    %2755 = vmatprep.subr.mxu0 0.0
    %2756 = vmatpush1.msra.mxu0 %v2745
    %2757 = vmatprep.subr.mxu0 0.0
    %2758 = vmatpush1.msra.mxu0 %v2751
    %2759 = vmatprep.subr.mxu0 0.0
    %2760 = vmatpush1.msra.mxu0 0.0
    %2761 = vmatprep.subr.mxu0 0.0
    %2762 = vmatpush1.msra.mxu0 0.0
    %2763 = vmatprep.subr.mxu0 0.0
    %2764 = vmatpush1.msra.mxu0 0.0
    %2765 = vmatprep.subr.mxu0 0.0
    %2766 = vmatpush1.msra.mxu0 0.0
    %2767 = vmatprep.subr.mxu0 0.0
    %2768 = vmatpush1.msra.mxu0 0.0
    %2769 = vmatprep.subr.mxu0 0.0
    %2770 = vmatpush1.msra.mxu0 0.0
    %2771 = vmatprep.subr.mxu0 0.0
    %2772 = vmatpush1.msra.mxu0 0.0
    %2773 = vmatprep.subr.mxu0 0.0
    %2774 = vmatpush1.msra.mxu0 0.0
    %2775 = vmatprep.subr.mxu0 0.0
    %2776 = vmatpush1.msra.mxu0 0.0
    %2777 = vmatprep.subr.mxu0 0.0
    %2778 = vmatpush1.msra.mxu0 0.0
    %2779 = vmatprep.subr.mxu0 0.0
    %2780 = vmatpush1.msra.mxu0 0.0
    %2781 = vmatprep.subr.mxu0 0.0
    %2782 = vmatpush1.msra.mxu0 0.0
    %2783 = vmatprep.subr.mxu0 0.0
    %2784 = vmatpush1.msra.mxu0 0.0
    %2785 = vmatprep.subr.mxu0 0.0
    %2786 = vmatpush1.msra.mxu0 0.0
    %2787 = vmatprep.subr.mxu0 0.0
    %2788 = vmatpush1.msra.mxu0 0.0
    %2789 = vmatprep.subr.mxu0 0.0
    %2790 = vmatpush1.msra.mxu0 0.0
    %2791 = vmatprep.subr.mxu0 0.0
    %2792 = vmatpush1.msra.mxu0 0.0
    %2793 = vmatprep.subr.mxu0 0.0
    %2794 = vmatpush1.msra.mxu0 0.0
    %2795 = vmatprep.subr.mxu0 0.0
    %2796 = vmatpush1.msra.mxu0 0.0
    %2797 = vmatprep.subr.mxu0 0.0
    %2798 = vmatpush1.msra.mxu0 0.0
    %2799 = vmatprep.subr.mxu0 0.0
    %2800 = vmatpush1.msra.mxu0 0.0
    %2801 = vmatprep.subr.mxu0 0.0
    %2802 = vmatpush1.msra.mxu0 0.0
    %2803 = vmatprep.subr.mxu0 0.0
    %2804 = vmatpush1.msra.mxu0 0.0
    %2805 = vmatprep.subr.mxu0 0.0
    %2806 = vmatpush1.msra.mxu0 0.0
    %2807 = vmatprep.subr.mxu0 0.0
    %2808 = vmatpush1.msra.mxu0 0.0
    %2809 = vmatprep.subr.mxu0 0.0
    %2810 = vmatpush1.msra.mxu0 0.0
    %2811 = vmatprep.subr.mxu0 0.0
    %2812 = vmatpush1.msra.mxu0 0.0
    %2813 = vmatprep.subr.mxu0 0.0
    %2814 = vmatpush1.msra.mxu0 0.0
    %2815 = vmatprep.subr.mxu0 0.0
    %2816 = vmatpush1.msra.mxu0 0.0
    %2817 = vmatprep.mubr.f32.mxu0 0.0
    %2818 = vmatmul.mubr.f32.gmra.mrb[0].mxu0 %v2748
    %v2819 = vpop.f32.mrb[0].mxu0
    %v2820 = vadd.f32 0.0, %v2819
    %v2821 = vpop.f32.mrb[0].mxu0
    %2822 = vdwg.mxu0
    %v2823 = vadd.f32 %v2743, %v2820
    %v2824 = vld [vmem:[#allocation2 + $0x1b8] sm:$0xff]
    %v2825 = vld [vmem:[#allocation2 + $0x1c0] sm:$0xff]
    %v2826 = vld [vmem:[#allocation2 + $0x1c8] sm:$0xf]
    %v2827 = vrot.slane %v1704, 4
    %v2828 = vsel %vm1713, %v2827, 0
    %v2831 = vsel %vm38, %v2826, 0
    %2833 = vmatprep.subr.mxu0 0.0
    %2834 = vmatpush1.msra.mxu0 %v2824
    %2835 = vmatprep.subr.mxu0 0.0
    %2836 = vmatpush1.msra.mxu0 %v2825
    %2837 = vmatprep.subr.mxu0 0.0
    %2838 = vmatpush1.msra.mxu0 %v2831
    %2839 = vmatprep.subr.mxu0 0.0
    %2840 = vmatpush1.msra.mxu0 0.0
    %2841 = vmatprep.subr.mxu0 0.0
    %2842 = vmatpush1.msra.mxu0 0.0
    %2843 = vmatprep.subr.mxu0 0.0
    %2844 = vmatpush1.msra.mxu0 0.0
    %2845 = vmatprep.subr.mxu0 0.0
    %2846 = vmatpush1.msra.mxu0 0.0
    %2847 = vmatprep.subr.mxu0 0.0
    %2848 = vmatpush1.msra.mxu0 0.0
    %2849 = vmatprep.subr.mxu0 0.0
    %2850 = vmatpush1.msra.mxu0 0.0
    %2851 = vmatprep.subr.mxu0 0.0
    %2852 = vmatpush1.msra.mxu0 0.0
    %2853 = vmatprep.subr.mxu0 0.0
    %2854 = vmatpush1.msra.mxu0 0.0
    %2855 = vmatprep.subr.mxu0 0.0
    %2856 = vmatpush1.msra.mxu0 0.0
    %2857 = vmatprep.subr.mxu0 0.0
    %2858 = vmatpush1.msra.mxu0 0.0
    %2859 = vmatprep.subr.mxu0 0.0
    %2860 = vmatpush1.msra.mxu0 0.0
    %2861 = vmatprep.subr.mxu0 0.0
    %2862 = vmatpush1.msra.mxu0 0.0
    %2863 = vmatprep.subr.mxu0 0.0
    %2864 = vmatpush1.msra.mxu0 0.0
    %2865 = vmatprep.subr.mxu0 0.0
    %2866 = vmatpush1.msra.mxu0 0.0
    %2867 = vmatprep.subr.mxu0 0.0
    %2868 = vmatpush1.msra.mxu0 0.0
    %2869 = vmatprep.subr.mxu0 0.0
    %2870 = vmatpush1.msra.mxu0 0.0
    %2871 = vmatprep.subr.mxu0 0.0
    %2872 = vmatpush1.msra.mxu0 0.0
    %2873 = vmatprep.subr.mxu0 0.0
    %2874 = vmatpush1.msra.mxu0 0.0
    %2875 = vmatprep.subr.mxu0 0.0
    %2876 = vmatpush1.msra.mxu0 0.0
    %2877 = vmatprep.subr.mxu0 0.0
    %2878 = vmatpush1.msra.mxu0 0.0
    %2879 = vmatprep.subr.mxu0 0.0
    %2880 = vmatpush1.msra.mxu0 0.0
    %2881 = vmatprep.subr.mxu0 0.0
    %2882 = vmatpush1.msra.mxu0 0.0
    %2883 = vmatprep.subr.mxu0 0.0
    %2884 = vmatpush1.msra.mxu0 0.0
    %2885 = vmatprep.subr.mxu0 0.0
    %2886 = vmatpush1.msra.mxu0 0.0
    %2887 = vmatprep.subr.mxu0 0.0
    %2888 = vmatpush1.msra.mxu0 0.0
    %2889 = vmatprep.subr.mxu0 0.0
    %2890 = vmatpush1.msra.mxu0 0.0
    %2891 = vmatprep.subr.mxu0 0.0
    %2892 = vmatpush1.msra.mxu0 0.0
    %2893 = vmatprep.subr.mxu0 0.0
    %2894 = vmatpush1.msra.mxu0 0.0
    %2895 = vmatprep.subr.mxu0 0.0
    %2896 = vmatpush1.msra.mxu0 0.0
    %2897 = vmatprep.mubr.f32.mxu0 0.0
    %2898 = vmatmul.mubr.f32.gmra.mrb[0].mxu0 %v2828
    %v2899 = vpop.f32.mrb[0].mxu0
    %v2900 = vadd.f32 0.0, %v2899
    %v2901 = vpop.f32.mrb[0].mxu0
    %2902 = vdwg.mxu0
    %v2903 = vadd.f32 %v2823, %v2900
    %v2904 = vld [vmem:[#allocation2 + $0x1cc] sm:$0xff]
    %v2905 = vld [vmem:[#allocation2 + $0x1d4] sm:$0xff]
    %v2906 = vld [vmem:[#allocation2 + $0x1dc] sm:$0xf]
    %v2907 = vrot.slane %v1704, 6
    %v2908 = vsel %vm1713, %v2907, 0
    %v2911 = vsel %vm38, %v2906, 0
    %2913 = vmatprep.subr.mxu0 0.0
    %2914 = vmatpush1.msra.mxu0 %v2904
    %2915 = vmatprep.subr.mxu0 0.0
    %2916 = vmatpush1.msra.mxu0 %v2905
    %2917 = vmatprep.subr.mxu0 0.0
    %2918 = vmatpush1.msra.mxu0 %v2911
    %2919 = vmatprep.subr.mxu0 0.0
    %2920 = vmatpush1.msra.mxu0 0.0
    %2921 = vmatprep.subr.mxu0 0.0
    %2922 = vmatpush1.msra.mxu0 0.0
    %2923 = vmatprep.subr.mxu0 0.0
    %2924 = vmatpush1.msra.mxu0 0.0
    %2925 = vmatprep.subr.mxu0 0.0
    %2926 = vmatpush1.msra.mxu0 0.0
    %2927 = vmatprep.subr.mxu0 0.0
    %2928 = vmatpush1.msra.mxu0 0.0
    %2929 = vmatprep.subr.mxu0 0.0
    %2930 = vmatpush1.msra.mxu0 0.0
    %2931 = vmatprep.subr.mxu0 0.0
    %2932 = vmatpush1.msra.mxu0 0.0
    %2933 = vmatprep.subr.mxu0 0.0
    %2934 = vmatpush1.msra.mxu0 0.0
    %2935 = vmatprep.subr.mxu0 0.0
    %2936 = vmatpush1.msra.mxu0 0.0
    %2937 = vmatprep.subr.mxu0 0.0
    %2938 = vmatpush1.msra.mxu0 0.0
    %2939 = vmatprep.subr.mxu0 0.0
    %2940 = vmatpush1.msra.mxu0 0.0
    %2941 = vmatprep.subr.mxu0 0.0
    %2942 = vmatpush1.msra.mxu0 0.0
    %2943 = vmatprep.subr.mxu0 0.0
    %2944 = vmatpush1.msra.mxu0 0.0
    %2945 = vmatprep.subr.mxu0 0.0
    %2946 = vmatpush1.msra.mxu0 0.0
    %2947 = vmatprep.subr.mxu0 0.0
    %2948 = vmatpush1.msra.mxu0 0.0
    %2949 = vmatprep.subr.mxu0 0.0
    %2950 = vmatpush1.msra.mxu0 0.0
    %2951 = vmatprep.subr.mxu0 0.0
    %2952 = vmatpush1.msra.mxu0 0.0
    %2953 = vmatprep.subr.mxu0 0.0
    %2954 = vmatpush1.msra.mxu0 0.0
    %2955 = vmatprep.subr.mxu0 0.0
    %2956 = vmatpush1.msra.mxu0 0.0
    %2957 = vmatprep.subr.mxu0 0.0
    %2958 = vmatpush1.msra.mxu0 0.0
    %2959 = vmatprep.subr.mxu0 0.0
    %2960 = vmatpush1.msra.mxu0 0.0
    %2961 = vmatprep.subr.mxu0 0.0
    %2962 = vmatpush1.msra.mxu0 0.0
    %2963 = vmatprep.subr.mxu0 0.0
    %2964 = vmatpush1.msra.mxu0 0.0
    %2965 = vmatprep.subr.mxu0 0.0
    %2966 = vmatpush1.msra.mxu0 0.0
    %2967 = vmatprep.subr.mxu0 0.0
    %2968 = vmatpush1.msra.mxu0 0.0
    %2969 = vmatprep.subr.mxu0 0.0
    %2970 = vmatpush1.msra.mxu0 0.0
    %2971 = vmatprep.subr.mxu0 0.0
    %2972 = vmatpush1.msra.mxu0 0.0
    %2973 = vmatprep.subr.mxu0 0.0
    %2974 = vmatpush1.msra.mxu0 0.0
    %2975 = vmatprep.subr.mxu0 0.0
    %2976 = vmatpush1.msra.mxu0 0.0
    %2977 = vmatprep.mubr.f32.mxu0 0.0
    %2978 = vmatmul.mubr.f32.gmra.mrb[0].mxu0 %v2908
    %v2979 = vpop.f32.mrb[0].mxu0
    %v2980 = vadd.f32 0.0, %v2979
    %v2981 = vpop.f32.mrb[0].mxu0
    %2982 = vdwg.mxu0
    %v2983 = vadd.f32 %v2903, %v2980
    %v2984 = vld [vmem:[#allocation2 + $0x1e0] sm:$0x1]
    %v2985 = vlaneseq
    %v2986 = vshrl.u32 %v2985, 7
    %v2987 = vsub.s32 0, %v2986
    %v2988 = vrot.slane %v2984, %v2987
    %v2989 = vadd.f32 %v2983, %v2988
    %v2990 = vmax.f32 %v2989, 0.0
    %v2991 = vld [vmem:[#allocation2 + $0x1e8] sm:$0xff]
    %v2992 = vld [vmem:[#allocation2 + $0x1f0] sm:$0xff]
    %v2993 = vld [vmem:[#allocation2 + $0x1f8] sm:$0xff]
    %v2994 = vld [vmem:[#allocation2 + $0x200] sm:$0xff]
    %v2995 = vld [vmem:[#allocation2 + $0x208] sm:$0xff]
    %v2996 = vld [vmem:[#allocation2 + $0x210] sm:$0xff]
    %v2997 = vld [vmem:[#allocation2 + $0x218] sm:$0xff]
    %v2998 = vld [vmem:[#allocation2 + $0x220] sm:$0xff]
    %v2999 = vld [vmem:[#allocation2 + $0x228] sm:$0xff]
    %v3000 = vld [vmem:[#allocation2 + $0x230] sm:$0xff]
    %v3001 = vld [vmem:[#allocation2 + $0x238] sm:$0xff]
    %v3002 = vld [vmem:[#allocation2 + $0x240] sm:$0xff]
    %v3003 = vld [vmem:[#allocation2 + $0x248] sm:$0xff]
    %v3004 = vld [vmem:[#allocation2 + $0x250] sm:$0xff]
    %v3005 = vld [vmem:[#allocation2 + $0x258] sm:$0xff]
    %v3006 = vld [vmem:[#allocation2 + $0x260] sm:$0xff]
    %v3007 = vld [vmem:[#allocation2 + $0x268] sm:$0x1]
    %v3008 = vlaneseq
    %v3009 = vshrl.u32 %v3008, 7
    %v3010 = vsub.s32 0, %v3009
    %v3011 = vrot.slane %v3007, %v3010
    %3012 = vmatprep.subr.mxu0 0.0
    %3013 = vmatpush1.msra.mxu0 %v2991
    %3014 = vmatprep.subr.mxu0 0.0
    %3015 = vmatpush1.msra.mxu0 %v2992
    %3016 = vmatprep.subr.mxu0 0.0
    %3017 = vmatpush1.msra.mxu0 %v2993
    %3018 = vmatprep.subr.mxu0 0.0
    %3019 = vmatpush1.msra.mxu0 %v2994
    %3020 = vmatprep.subr.mxu0 0.0
    %3021 = vmatpush1.msra.mxu0 %v2995
    %3022 = vmatprep.subr.mxu0 0.0
    %3023 = vmatpush1.msra.mxu0 %v2996
    %3024 = vmatprep.subr.mxu0 0.0
    %3025 = vmatpush1.msra.mxu0 %v2997
    %3026 = vmatprep.subr.mxu0 0.0
    %3027 = vmatpush1.msra.mxu0 %v2998
    %3028 = vmatprep.subr.mxu0 0.0
    %3029 = vmatpush1.msra.mxu0 %v2999
    %3030 = vmatprep.subr.mxu0 0.0
    %3031 = vmatpush1.msra.mxu0 %v3000
    %3032 = vmatprep.subr.mxu0 0.0
    %3033 = vmatpush1.msra.mxu0 %v3001
    %3034 = vmatprep.subr.mxu0 0.0
    %3035 = vmatpush1.msra.mxu0 %v3002
    %3036 = vmatprep.subr.mxu0 0.0
    %3037 = vmatpush1.msra.mxu0 %v3003
    %3038 = vmatprep.subr.mxu0 0.0
    %3039 = vmatpush1.msra.mxu0 %v3004
    %3040 = vmatprep.subr.mxu0 0.0
    %3041 = vmatpush1.msra.mxu0 %v3005
    %3042 = vmatprep.subr.mxu0 0.0
    %3043 = vmatpush1.msra.mxu0 %v3006
    %3044 = vmatprep.subr.mxu0 0.0
    %3045 = vmatpush1.msra.mxu0 0.0
    %3046 = vmatprep.subr.mxu0 0.0
    %3047 = vmatpush1.msra.mxu0 0.0
    %3048 = vmatprep.subr.mxu0 0.0
    %3049 = vmatpush1.msra.mxu0 0.0
    %3050 = vmatprep.subr.mxu0 0.0
    %3051 = vmatpush1.msra.mxu0 0.0
    %3052 = vmatprep.subr.mxu0 0.0
    %3053 = vmatpush1.msra.mxu0 0.0
    %3054 = vmatprep.subr.mxu0 0.0
    %3055 = vmatpush1.msra.mxu0 0.0
    %3056 = vmatprep.subr.mxu0 0.0
    %3057 = vmatpush1.msra.mxu0 0.0
    %3058 = vmatprep.subr.mxu0 0.0
    %3059 = vmatpush1.msra.mxu0 0.0
    %3060 = vmatprep.subr.mxu0 0.0
    %3061 = vmatpush1.msra.mxu0 0.0
    %3062 = vmatprep.subr.mxu0 0.0
    %3063 = vmatpush1.msra.mxu0 0.0
    %3064 = vmatprep.subr.mxu0 0.0
    %3065 = vmatpush1.msra.mxu0 0.0
    %3066 = vmatprep.subr.mxu0 0.0
    %3067 = vmatpush1.msra.mxu0 0.0
    %3068 = vmatprep.subr.mxu0 0.0
    %3069 = vmatpush1.msra.mxu0 0.0
    %3070 = vmatprep.subr.mxu0 0.0
    %3071 = vmatpush1.msra.mxu0 0.0
    %3072 = vmatprep.subr.mxu0 0.0
    %3073 = vmatpush1.msra.mxu0 0.0
    %3074 = vmatprep.subr.mxu0 0.0
    %3075 = vmatpush1.msra.mxu0 0.0
    %3076 = vmatprep.mubr.f32.mxu0 0.0
    %3077 = vmatmul.mubr.f32.gmra.mrb[0].mxu0 %v2990
    %v3078 = vpop.f32.mrb[0].mxu0
    %v3079 = vadd.f32 %v3011, %v3078
    %v3080 = vpop.f32.mrb[0].mxu0
    %3081 = vdwg.mxu0
    %3082 = vst [vmem:[#allocation5] sm:$0x3] %v3079
    // Predicated region
    $region14: #{tpu_custom_call.1} parent=1 // pred_check
      _
    $region15: #{tpu_custom_call.1} parent=1 // pred_check_branch
      %3084 = sbr.rel (0) target = $region17
    $region16: #{tpu_custom_call.1} parent=1 // pred_region
      %s3086 = ssub.s32 32, 32
      %3087 = vsyncadd [#allocation4], %s3086
      %s3089 = sshll.u32 [#allocation5], 4
      %s3090 = int_to_ptr.vmem [resolvable:$true] %s3089
      %3092 = dma.vmem_to_hbm [thread:$0]  %s3090, 32, %s2, [#allocation4]
    $region17: #{tpu_custom_call.1} parent=1 // pred_fallthru
      _
    // Predicated region
    $region18: #{tpu_custom_call.1} parent=1 // pred_check
      _
    $region19: #{tpu_custom_call.1} parent=1 // pred_check_branch
      %3094 = sbr.rel (0) target = $region21
    $region20: #{tpu_custom_call.1} parent=1 // pred_region
      %3095 = dma.done [#allocation4], 32
    $region21: #{tpu_custom_call.1} parent=1 // pred_fallthru
      _
    %3096 = vsyncpa [#allocation3], 1
    %3097 = vsyncpa [#allocation4], 1

</llo_original>
